<compile_context>
chip_gen: v5e
topology: v5e:2x2
jax: 0.10.0
libtpu: 0.0.40
codegen_flags: <defaults>
</compile_context>

<pallas_src>
from functools import partial

import jax
import jax.numpy as jnp
from jax.experimental import pallas as pl
from jax.experimental.pallas import tpu as pltpu

EPS = 1e-5


def aux_head_kernel(x_ref, w1t_ref, gb1_ref, w2s_ref, gb2_ref, wlb_ref, out_ref):
    f32 = jnp.float32
    mm_dtype = w1t_ref.dtype

    # ---- ReLU on the (channel-last) input ---------------------------------
    x = jnp.maximum(x_ref[...].astype(f32), 0.0)          # (B, 8, 8, C)
    B = x.shape[0]

    # ---- AvgPool2d(5, stride=3, pad=0): 8x8 -> 2x2 -------------------------
    # Row windows (H is an outer dim => slicing/summing it is cheap).
    rs = [jnp.sum(x[:, 0:5, :, :], axis=1),                # rows 0..4
          jnp.sum(x[:, 3:8, :, :], axis=1)]                # rows 3..7, (B, 8, C)
    # Column windows via masked full-sublane reductions (no sublane slicing).
    col = jax.lax.broadcasted_iota(jnp.int32, rs[0].shape, 1)
    cmasks = (col < 5, col >= 3)
    # pooled[w]: (B, C), window w = i*2 + j == conv2x2 kernel position (kh, kw)
    pooled = [jnp.sum(jnp.where(cmasks[j], rs[i], 0.0), axis=1) * (1.0 / 25.0)
              for i in (0, 1) for j in (0, 1)]

    # ---- Conv1x1 (C -> 128), per pool window (MXU, f32 accumulate) --------
    h = [jnp.dot(p.astype(mm_dtype), w1t_ref[...], preferred_element_type=f32)
         for p in pooled]                                  # 4 x (B, 128)

    # ---- BatchNorm(128): training stats over all 4*B samples --------------
    g1 = gb1_ref[0:1, :]
    b1 = gb1_ref[1:2, :]
    inv_n1 = 1.0 / (4.0 * B)
    mean1 = sum(jnp.sum(v, axis=0, keepdims=True) for v in h) * inv_n1
    ex2_1 = sum(jnp.sum(v * v, axis=0, keepdims=True) for v in h) * inv_n1
    var1 = jnp.maximum(ex2_1 - mean1 * mean1, 0.0)         # clamp cancellation
    inv1 = jax.lax.rsqrt(var1 + EPS)
    scale1 = g1 * inv1
    shift1 = b1 - mean1 * scale1

    # ---- ReLU + Conv2x2 (128 -> 768): 4 accumulated per-window matmuls ----
    acc = None
    for w in range(4):
        hw = jnp.maximum(h[w] * scale1 + shift1, 0.0).astype(mm_dtype)
        d = jnp.dot(hw, w2s_ref[w], preferred_element_type=f32)   # (B, 768)
        acc = d if acc is None else acc + d

    # ---- BatchNorm(768): spatial is 1x1, stats over batch only ------------
    g2 = gb2_ref[0:1, :]
    b2 = gb2_ref[1:2, :]
    inv_nb = 1.0 / B
    mean2 = jnp.sum(acc, axis=0, keepdims=True) * inv_nb
    ex2_2 = jnp.sum(acc * acc, axis=0, keepdims=True) * inv_nb
    var2 = jnp.maximum(ex2_2 - mean2 * mean2, 0.0)
    inv2 = jax.lax.rsqrt(var2 + EPS)
    scale2 = g2 * inv2
    shift2 = b2 - mean2 * scale2
    y = jnp.maximum(acc * scale2 + shift2, 0.0)            # (B, 768)

    # ---- Linear classifier: weight rows 0..767, bias packed in row 768 ----
    out_ref[...] = (jnp.dot(y.astype(mm_dtype), wlb_ref[0:768, :],
                            preferred_element_type=f32)
                    + wlb_ref[768:769, :].astype(f32))     # (B, nc_pad)


def prepare_params(w1, g1, b1, w2, g2, b2, wl, bl, matmul_dtype=jnp.bfloat16):
    """One-time parameter re-layout (hoisted out of the forward path)."""
    nc = wl.shape[0]
    nc_pad = max(128, ((nc + 127) // 128) * 128)

    # Conv1x1 weight (128, C, 1, 1) -> (C, 128)
    w1t = jnp.transpose(w1[:, :, 0, 0], (1, 0)).astype(matmul_dtype)
    gb1 = jnp.stack([g1, b1], axis=0).astype(jnp.float32)               # (2, 128)
    # Conv2x2 weight (768,128,2,2) -> (kh,kw,cin,cout) -> (4,128,768); w = kh*2+kw
    w2s = jnp.transpose(w2, (2, 3, 1, 0)).reshape(4, 128, 768).astype(matmul_dtype)
    gb2 = jnp.stack([g2, b2], axis=0).astype(jnp.float32)               # (2, 768)
    # Classifier: weight.T padded to lane-dense nc_pad, bias packed as row 768.
    wl_t = jnp.pad(jnp.transpose(wl, (1, 0)).astype(jnp.float32),
                   ((0, 0), (0, nc_pad - nc)))                          # (768, nc_pad)
    bl_row = jnp.pad(bl.astype(jnp.float32), (0, nc_pad - nc)).reshape(1, nc_pad)
    wlb = jnp.concatenate([wl_t, bl_row], axis=0).astype(matmul_dtype)  # (769, nc_pad)

    return dict(w1t=w1t, gb1=gb1, w2s=w2s, gb2=gb2, wlb=wlb, nc=nc)


@partial(jax.jit, static_argnames=("num_classes",))
def _forward_impl(x, w1t, gb1, w2s, gb2, wlb, *, num_classes):
    B, C = x.shape[0], x.shape[1]
    nc_pad = wlb.shape[1]

    # NCHW -> NHWC; allow_input_fusion lets XLA fold this into the input DMA
    # instead of a separate HBM round trip.
    x_cl = jnp.transpose(x, (0, 2, 3, 1))                  # (B, 8, 8, C)

    flops = (2 * B * 64 * C                                # relu + pool
             + 2 * 4 * B * C * 128                         # conv1x1
             + 2 * 4 * B * 128 * 768                       # conv2x2
             + 2 * B * 768 * nc_pad                        # classifier
             + 12 * B * (4 * 128 + 768))                   # BN / relu epsilon
    bytes_accessed = (x.size * x.dtype.itemsize
                      + w1t.size * w1t.dtype.itemsize
                      + gb1.size * 4
                      + w2s.size * w2s.dtype.itemsize
                      + gb2.size * 4
                      + wlb.size * wlb.dtype.itemsize
                      + B * nc_pad * 4)

    vspec = pl.BlockSpec(memory_space=pltpu.MemorySpace.VMEM)
    out_pad = pl.pallas_call(
        aux_head_kernel,
        out_shape=jax.ShapeDtypeStruct((B, nc_pad), jnp.float32),
        in_specs=[vspec] * 6,
        out_specs=vspec,
        compiler_params=pltpu.CompilerParams(
            allow_input_fusion=[True, False, False, False, False, False],
            vmem_limit_bytes=32 * 1024 * 1024),
        cost_estimate=pl.CostEstimate(flops=int(flops),
                                      transcendentals=128 + 768,
                                      bytes_accessed=int(bytes_accessed)),
    )(x_cl, w1t, gb1, w2s, gb2, wlb)
    # Lane-dense padded logits; consumers that can mask in the loss may take
    # out_pad directly and skip this slice.
    return out_pad[:, :num_classes]


def aux_head_forward(x, params):
    assert x.shape[2] == 8 and x.shape[3] == 8, "module assumes 8x8 input"
    return _forward_impl(x, params["w1t"], params["gb1"], params["w2s"],
                         params["gb2"], params["wlb"], num_classes=params["nc"])


def aux_head_reference(x, w1, g1, b1, w2, g2, b2, wl, bl,
                       matmul_dtype=jnp.bfloat16):
    """Pure-JAX reference mirroring the PyTorch forward (training-mode BN).

    Matmul operands cast to `matmul_dtype` (f32 accumulation) to mirror the
    kernel's deliberate bf16-MXU numerics; BN/elementwise math is f32.
    """
    f32 = jnp.float32
    x = jnp.maximum(x, 0.0)
    rows = []
    for i in range(2):
        cols = [jnp.mean(x[:, :, 3 * i:3 * i + 5, 3 * j:3 * j + 5], axis=(2, 3))
                for j in range(2)]
        rows.append(jnp.stack(cols, axis=-1))
    pooled = jnp.stack(rows, axis=-2)                      # (B, C, 2, 2)

    h = jnp.einsum('bcij,kc->bkij', pooled.astype(matmul_dtype),
                   w1[:, :, 0, 0].astype(matmul_dtype),
                   preferred_element_type=f32)
    m = jnp.mean(h, axis=(0, 2, 3))
    v = jnp.var(h, axis=(0, 2, 3))
    h = (h - m[None, :, None, None]) * jax.lax.rsqrt(v + EPS)[None, :, None, None]
    h = jnp.maximum(h * g1[None, :, None, None] + b1[None, :, None, None], 0.0)

    y = jnp.einsum('bcij,kcij->bk', h.astype(matmul_dtype),
                   w2.astype(matmul_dtype), preferred_element_type=f32)
    m2 = jnp.mean(y, axis=0)
    v2 = jnp.var(y, axis=0)
    y = (y - m2[None, :]) * jax.lax.rsqrt(v2 + EPS)[None, :]
    y = jnp.maximum(y * g2[None, :] + b2[None, :], 0.0)

    return (jnp.dot(y.astype(matmul_dtype), jnp.transpose(wl).astype(matmul_dtype),
                    preferred_element_type=f32) + bl[None, :])


if __name__ == "__main__":
    B, C, NC = 8, 64, 10                       # module assumes 8x8 spatial input
    key = jax.random.PRNGKey(0)
    ks = jax.random.split(key, 9)

    x = jax.random.normal(ks[0], (B, C, 8, 8), jnp.float32)
    w1 = jax.random.normal(ks[1], (128, C, 1, 1), jnp.float32) * 0.2
    g1 = 1.0 + 0.1 * jax.random.normal(ks[2], (128,), jnp.float32)
    b1 = 0.1 * jax.random.normal(ks[3], (128,), jnp.float32)
    w2 = jax.random.normal(ks[4], (768, 128, 2, 2), jnp.float32) * 0.05
    g2 = 1.0 + 0.1 * jax.random.normal(ks[5], (768,), jnp.float32)
    b2 = 0.1 * jax.random.normal(ks[6], (768,), jnp.float32)
    wl = jax.random.normal(ks[7], (NC, 768), jnp.float32) * 0.03
    bl = 0.1 * jax.random.normal(ks[8], (NC,), jnp.float32)

    params = prepare_params(w1, g1, b1, w2, g2, b2, wl, bl)
    out = jax.block_until_ready(aux_head_forward(x, params))

    ref = jax.block_until_ready(
        aux_head_reference(x, w1, g1, b1, w2, g2, b2, wl, bl))
    assert out.shape == (B, NC), out.shape
    assert jnp.allclose(out, ref, atol=2e-2, rtol=2e-2), \
        f"max abs diff {jnp.max(jnp.abs(out - ref))}"

    print("KERNEL_OK")
</pallas_src>

<mosaic_0001>
module attributes {stable_mosaic.version = 11 : i64} {
  func.func @aux_head_kernel(%arg0: memref<8x8x8x64xf32, #tpu.memory_space<vmem>>, %arg1: memref<64x128xbf16, #tpu.memory_space<vmem>>, %arg2: memref<2x128xf32, #tpu.memory_space<vmem>>, %arg3: memref<4x128x768xbf16, #tpu.memory_space<vmem>>, %arg4: memref<2x768xf32, #tpu.memory_space<vmem>>, %arg5: memref<769x128xbf16, #tpu.memory_space<vmem>>, %arg6: memref<8x128xf32, #tpu.memory_space<vmem>>) attributes {dimension_semantics = [], scalar_prefetch = 0 : i64, scratch_operands = 0 : i64, tpu.core_type = #tpu.core_type<tc>} {
    %c0 = arith.constant 0 : index
    %c0_0 = arith.constant 0 : index
    %c0_1 = arith.constant 0 : index
    %c0_2 = arith.constant 0 : index
    %0 = vector.load %arg0[%c0, %c0_0, %c0_1, %c0_2] : memref<8x8x8x64xf32, #tpu.memory_space<vmem>>, vector<8x8x8x64xf32>
    %cst = arith.constant 0.000000e+00 : f32
    %1 = vector.broadcast %cst : f32 to vector<8x8x8x64xf32>
    %2 = arith.maximumf %0, %1 : vector<8x8x8x64xf32>
    %3 = vector.extract_strided_slice %2 {offsets = [0, 0, 0, 0], sizes = [8, 5, 8, 64], strides = [1, 1, 1, 1]} : vector<8x8x8x64xf32> to vector<8x5x8x64xf32>
    %cst_3 = arith.constant dense<0.000000e+00> : vector<8x8x64xf32>
    %4 = vector.multi_reduction <add>, %3, %cst_3 [1] : vector<8x5x8x64xf32> to vector<8x8x64xf32>
    %5 = vector.extract_strided_slice %2 {offsets = [0, 3, 0, 0], sizes = [8, 5, 8, 64], strides = [1, 1, 1, 1]} : vector<8x8x8x64xf32> to vector<8x5x8x64xf32>
    %cst_4 = arith.constant dense<0.000000e+00> : vector<8x8x64xf32>
    %6 = vector.multi_reduction <add>, %5, %cst_4 [1] : vector<8x5x8x64xf32> to vector<8x8x64xf32>
    %7 = tpu.iota {dimensions = array<i32: 1>} : vector<8x8x64xi32>
    %c5_i32 = arith.constant 5 : i32
    %8 = vector.broadcast %c5_i32 : i32 to vector<8x8x64xi32>
    %9 = arith.cmpi slt, %7, %8 : vector<8x8x64xi32>
    %c3_i32 = arith.constant 3 : i32
    %10 = vector.broadcast %c3_i32 : i32 to vector<8x8x64xi32>
    %11 = arith.cmpi sge, %7, %10 : vector<8x8x64xi32>
    %cst_5 = arith.constant 0.000000e+00 : f32
    %12 = vector.broadcast %cst_5 : f32 to vector<8x8x64xf32>
    %13 = arith.select %9, %4, %12 : vector<8x8x64xi1>, vector<8x8x64xf32>
    %cst_6 = arith.constant dense<0.000000e+00> : vector<8x64xf32>
    %14 = vector.multi_reduction <add>, %13, %cst_6 [1] : vector<8x8x64xf32> to vector<8x64xf32>
    %cst_7 = arith.constant 4.000000e-02 : f32
    %15 = vector.broadcast %cst_7 : f32 to vector<8x64xf32>
    %16 = arith.mulf %14, %15 : vector<8x64xf32>
    %cst_8 = arith.constant 0.000000e+00 : f32
    %17 = vector.broadcast %cst_8 : f32 to vector<8x8x64xf32>
    %18 = arith.select %11, %4, %17 : vector<8x8x64xi1>, vector<8x8x64xf32>
    %cst_9 = arith.constant dense<0.000000e+00> : vector<8x64xf32>
    %19 = vector.multi_reduction <add>, %18, %cst_9 [1] : vector<8x8x64xf32> to vector<8x64xf32>
    %cst_10 = arith.constant 4.000000e-02 : f32
    %20 = vector.broadcast %cst_10 : f32 to vector<8x64xf32>
    %21 = arith.mulf %19, %20 : vector<8x64xf32>
    %cst_11 = arith.constant 0.000000e+00 : f32
    %22 = vector.broadcast %cst_11 : f32 to vector<8x8x64xf32>
    %23 = arith.select %9, %6, %22 : vector<8x8x64xi1>, vector<8x8x64xf32>
    %cst_12 = arith.constant dense<0.000000e+00> : vector<8x64xf32>
    %24 = vector.multi_reduction <add>, %23, %cst_12 [1] : vector<8x8x64xf32> to vector<8x64xf32>
    %cst_13 = arith.constant 4.000000e-02 : f32
    %25 = vector.broadcast %cst_13 : f32 to vector<8x64xf32>
    %26 = arith.mulf %24, %25 : vector<8x64xf32>
    %cst_14 = arith.constant 0.000000e+00 : f32
    %27 = vector.broadcast %cst_14 : f32 to vector<8x8x64xf32>
    %28 = arith.select %11, %6, %27 : vector<8x8x64xi1>, vector<8x8x64xf32>
    %cst_15 = arith.constant dense<0.000000e+00> : vector<8x64xf32>
    %29 = vector.multi_reduction <add>, %28, %cst_15 [1] : vector<8x8x64xf32> to vector<8x64xf32>
    %cst_16 = arith.constant 4.000000e-02 : f32
    %30 = vector.broadcast %cst_16 : f32 to vector<8x64xf32>
    %31 = arith.mulf %29, %30 : vector<8x64xf32>
    %32 = arith.truncf %16 : vector<8x64xf32> to vector<8x64xbf16>
    %c0_17 = arith.constant 0 : index
    %c0_18 = arith.constant 0 : index
    %33 = vector.load %arg1[%c0_17, %c0_18] : memref<64x128xbf16, #tpu.memory_space<vmem>>, vector<64x128xbf16>
    %cst_19 = arith.constant dense<0.000000e+00> : vector<8x128xf32>
    %34 = tpu.matmul %32, %33, %cst_19 {dimension_numbers = #tpu.dot_dimension_numbers<[1], [0], [0], [1], [0, 0, 1, 1], [], []>} : vector<8x64xbf16>, vector<64x128xbf16>, vector<8x128xf32> -> vector<8x128xf32>
    %35 = arith.truncf %21 : vector<8x64xf32> to vector<8x64xbf16>
    %c0_20 = arith.constant 0 : index
    %c0_21 = arith.constant 0 : index
    %36 = vector.load %arg1[%c0_20, %c0_21] : memref<64x128xbf16, #tpu.memory_space<vmem>>, vector<64x128xbf16>
    %cst_22 = arith.constant dense<0.000000e+00> : vector<8x128xf32>
    %37 = tpu.matmul %35, %36, %cst_22 {dimension_numbers = #tpu.dot_dimension_numbers<[1], [0], [0], [1], [0, 0, 1, 1], [], []>} : vector<8x64xbf16>, vector<64x128xbf16>, vector<8x128xf32> -> vector<8x128xf32>
    %38 = arith.truncf %26 : vector<8x64xf32> to vector<8x64xbf16>
    %c0_23 = arith.constant 0 : index
    %c0_24 = arith.constant 0 : index
    %39 = vector.load %arg1[%c0_23, %c0_24] : memref<64x128xbf16, #tpu.memory_space<vmem>>, vector<64x128xbf16>
    %cst_25 = arith.constant dense<0.000000e+00> : vector<8x128xf32>
    %40 = tpu.matmul %38, %39, %cst_25 {dimension_numbers = #tpu.dot_dimension_numbers<[1], [0], [0], [1], [0, 0, 1, 1], [], []>} : vector<8x64xbf16>, vector<64x128xbf16>, vector<8x128xf32> -> vector<8x128xf32>
    %41 = arith.truncf %31 : vector<8x64xf32> to vector<8x64xbf16>
    %c0_26 = arith.constant 0 : index
    %c0_27 = arith.constant 0 : index
    %42 = vector.load %arg1[%c0_26, %c0_27] : memref<64x128xbf16, #tpu.memory_space<vmem>>, vector<64x128xbf16>
    %cst_28 = arith.constant dense<0.000000e+00> : vector<8x128xf32>
    %43 = tpu.matmul %41, %42, %cst_28 {dimension_numbers = #tpu.dot_dimension_numbers<[1], [0], [0], [1], [0, 0, 1, 1], [], []>} : vector<8x64xbf16>, vector<64x128xbf16>, vector<8x128xf32> -> vector<8x128xf32>
    %c0_29 = arith.constant 0 : index
    %c0_30 = arith.constant 0 : index
    %44 = vector.load %arg2[%c0_29, %c0_30] : memref<2x128xf32, #tpu.memory_space<vmem>>, vector<1x128xf32>
    %c1 = arith.constant 1 : index
    %c0_31 = arith.constant 0 : index
    %45 = vector.load %arg2[%c1, %c0_31] : memref<2x128xf32, #tpu.memory_space<vmem>>, vector<1x128xf32>
    %cst_32 = arith.constant dense<0.000000e+00> : vector<128xf32>
    %46 = vector.multi_reduction <add>, %34, %cst_32 [0] : vector<8x128xf32> to vector<128xf32>
    %47 = vector.shape_cast %46 : vector<128xf32> to vector<1x128xf32>
    %cst_33 = arith.constant 0.000000e+00 : f32
    %48 = vector.broadcast %cst_33 : f32 to vector<1x128xf32>
    %49 = arith.addf %48, %47 : vector<1x128xf32>
    %cst_34 = arith.constant dense<0.000000e+00> : vector<128xf32>
    %50 = vector.multi_reduction <add>, %37, %cst_34 [0] : vector<8x128xf32> to vector<128xf32>
    %51 = vector.shape_cast %50 : vector<128xf32> to vector<1x128xf32>
    %52 = arith.addf %49, %51 : vector<1x128xf32>
    %cst_35 = arith.constant dense<0.000000e+00> : vector<128xf32>
    %53 = vector.multi_reduction <add>, %40, %cst_35 [0] : vector<8x128xf32> to vector<128xf32>
    %54 = vector.shape_cast %53 : vector<128xf32> to vector<1x128xf32>
    %55 = arith.addf %52, %54 : vector<1x128xf32>
    %cst_36 = arith.constant dense<0.000000e+00> : vector<128xf32>
    %56 = vector.multi_reduction <add>, %43, %cst_36 [0] : vector<8x128xf32> to vector<128xf32>
    %57 = vector.shape_cast %56 : vector<128xf32> to vector<1x128xf32>
    %58 = arith.addf %55, %57 : vector<1x128xf32>
    %cst_37 = arith.constant 3.125000e-02 : f32
    %59 = vector.broadcast %cst_37 : f32 to vector<1x128xf32>
    %60 = arith.mulf %58, %59 : vector<1x128xf32>
    %61 = arith.mulf %34, %34 : vector<8x128xf32>
    %cst_38 = arith.constant dense<0.000000e+00> : vector<128xf32>
    %62 = vector.multi_reduction <add>, %61, %cst_38 [0] : vector<8x128xf32> to vector<128xf32>
    %63 = vector.shape_cast %62 : vector<128xf32> to vector<1x128xf32>
    %cst_39 = arith.constant 0.000000e+00 : f32
    %64 = vector.broadcast %cst_39 : f32 to vector<1x128xf32>
    %65 = arith.addf %64, %63 : vector<1x128xf32>
    %66 = arith.mulf %37, %37 : vector<8x128xf32>
    %cst_40 = arith.constant dense<0.000000e+00> : vector<128xf32>
    %67 = vector.multi_reduction <add>, %66, %cst_40 [0] : vector<8x128xf32> to vector<128xf32>
    %68 = vector.shape_cast %67 : vector<128xf32> to vector<1x128xf32>
    %69 = arith.addf %65, %68 : vector<1x128xf32>
    %70 = arith.mulf %40, %40 : vector<8x128xf32>
    %cst_41 = arith.constant dense<0.000000e+00> : vector<128xf32>
    %71 = vector.multi_reduction <add>, %70, %cst_41 [0] : vector<8x128xf32> to vector<128xf32>
    %72 = vector.shape_cast %71 : vector<128xf32> to vector<1x128xf32>
    %73 = arith.addf %69, %72 : vector<1x128xf32>
    %74 = arith.mulf %43, %43 : vector<8x128xf32>
    %cst_42 = arith.constant dense<0.000000e+00> : vector<128xf32>
    %75 = vector.multi_reduction <add>, %74, %cst_42 [0] : vector<8x128xf32> to vector<128xf32>
    %76 = vector.shape_cast %75 : vector<128xf32> to vector<1x128xf32>
    %77 = arith.addf %73, %76 : vector<1x128xf32>
    %cst_43 = arith.constant 3.125000e-02 : f32
    %78 = vector.broadcast %cst_43 : f32 to vector<1x128xf32>
    %79 = arith.mulf %77, %78 : vector<1x128xf32>
    %80 = arith.mulf %60, %60 : vector<1x128xf32>
    %81 = arith.subf %79, %80 : vector<1x128xf32>
    %cst_44 = arith.constant 0.000000e+00 : f32
    %82 = vector.broadcast %cst_44 : f32 to vector<1x128xf32>
    %83 = arith.maximumf %81, %82 : vector<1x128xf32>
    %cst_45 = arith.constant 9.99999974E-6 : f32
    %84 = vector.broadcast %cst_45 : f32 to vector<1x128xf32>
    %85 = arith.addf %83, %84 : vector<1x128xf32>
    %86 = math.rsqrt %85 : vector<1x128xf32>
    %87 = arith.mulf %44, %86 : vector<1x128xf32>
    %88 = arith.mulf %60, %87 : vector<1x128xf32>
    %89 = arith.subf %45, %88 : vector<1x128xf32>
    %90 = vector.broadcast %87 : vector<1x128xf32> to vector<8x128xf32>
    %91 = arith.mulf %34, %90 : vector<8x128xf32>
    %92 = vector.broadcast %89 : vector<1x128xf32> to vector<8x128xf32>
    %93 = arith.addf %91, %92 : vector<8x128xf32>
    %cst_46 = arith.constant 0.000000e+00 : f32
    %94 = vector.broadcast %cst_46 : f32 to vector<8x128xf32>
    %95 = arith.maximumf %93, %94 : vector<8x128xf32>
    %96 = arith.truncf %95 : vector<8x128xf32> to vector<8x128xbf16>
    %c0_47 = arith.constant 0 : index
    %c0_48 = arith.constant 0 : index
    %c0_49 = arith.constant 0 : index
    %97 = vector.load %arg3[%c0_47, %c0_48, %c0_49] : memref<4x128x768xbf16, #tpu.memory_space<vmem>>, vector<1x128x768xbf16>
    %98 = vector.shape_cast %97 : vector<1x128x768xbf16> to vector<128x768xbf16>
    %cst_50 = arith.constant dense<0.000000e+00> : vector<8x768xf32>
    %99 = tpu.matmul %96, %98, %cst_50 {dimension_numbers = #tpu.dot_dimension_numbers<[1], [0], [0], [1], [0, 0, 1, 1], [], []>} : vector<8x128xbf16>, vector<128x768xbf16>, vector<8x768xf32> -> vector<8x768xf32>
    %100 = vector.broadcast %87 : vector<1x128xf32> to vector<8x128xf32>
    %101 = arith.mulf %37, %100 : vector<8x128xf32>
    %102 = vector.broadcast %89 : vector<1x128xf32> to vector<8x128xf32>
    %103 = arith.addf %101, %102 : vector<8x128xf32>
    %cst_51 = arith.constant 0.000000e+00 : f32
    %104 = vector.broadcast %cst_51 : f32 to vector<8x128xf32>
    %105 = arith.maximumf %103, %104 : vector<8x128xf32>
    %106 = arith.truncf %105 : vector<8x128xf32> to vector<8x128xbf16>
    %c1_52 = arith.constant 1 : index
    %c0_53 = arith.constant 0 : index
    %c0_54 = arith.constant 0 : index
    %107 = vector.load %arg3[%c1_52, %c0_53, %c0_54] : memref<4x128x768xbf16, #tpu.memory_space<vmem>>, vector<1x128x768xbf16>
    %108 = vector.shape_cast %107 : vector<1x128x768xbf16> to vector<128x768xbf16>
    %cst_55 = arith.constant dense<0.000000e+00> : vector<8x768xf32>
    %109 = tpu.matmul %106, %108, %cst_55 {dimension_numbers = #tpu.dot_dimension_numbers<[1], [0], [0], [1], [0, 0, 1, 1], [], []>} : vector<8x128xbf16>, vector<128x768xbf16>, vector<8x768xf32> -> vector<8x768xf32>
    %110 = arith.addf %99, %109 : vector<8x768xf32>
    %111 = vector.broadcast %87 : vector<1x128xf32> to vector<8x128xf32>
    %112 = arith.mulf %40, %111 : vector<8x128xf32>
    %113 = vector.broadcast %89 : vector<1x128xf32> to vector<8x128xf32>
    %114 = arith.addf %112, %113 : vector<8x128xf32>
    %cst_56 = arith.constant 0.000000e+00 : f32
    %115 = vector.broadcast %cst_56 : f32 to vector<8x128xf32>
    %116 = arith.maximumf %114, %115 : vector<8x128xf32>
    %117 = arith.truncf %116 : vector<8x128xf32> to vector<8x128xbf16>
    %c2 = arith.constant 2 : index
    %c0_57 = arith.constant 0 : index
    %c0_58 = arith.constant 0 : index
    %118 = vector.load %arg3[%c2, %c0_57, %c0_58] : memref<4x128x768xbf16, #tpu.memory_space<vmem>>, vector<1x128x768xbf16>
    %119 = vector.shape_cast %118 : vector<1x128x768xbf16> to vector<128x768xbf16>
    %cst_59 = arith.constant dense<0.000000e+00> : vector<8x768xf32>
    %120 = tpu.matmul %117, %119, %cst_59 {dimension_numbers = #tpu.dot_dimension_numbers<[1], [0], [0], [1], [0, 0, 1, 1], [], []>} : vector<8x128xbf16>, vector<128x768xbf16>, vector<8x768xf32> -> vector<8x768xf32>
    %121 = arith.addf %110, %120 : vector<8x768xf32>
    %122 = vector.broadcast %87 : vector<1x128xf32> to vector<8x128xf32>
    %123 = arith.mulf %43, %122 : vector<8x128xf32>
    %124 = vector.broadcast %89 : vector<1x128xf32> to vector<8x128xf32>
    %125 = arith.addf %123, %124 : vector<8x128xf32>
    %cst_60 = arith.constant 0.000000e+00 : f32
    %126 = vector.broadcast %cst_60 : f32 to vector<8x128xf32>
    %127 = arith.maximumf %125, %126 : vector<8x128xf32>
    %128 = arith.truncf %127 : vector<8x128xf32> to vector<8x128xbf16>
    %c3 = arith.constant 3 : index
    %c0_61 = arith.constant 0 : index
    %c0_62 = arith.constant 0 : index
    %129 = vector.load %arg3[%c3, %c0_61, %c0_62] : memref<4x128x768xbf16, #tpu.memory_space<vmem>>, vector<1x128x768xbf16>
    %130 = vector.shape_cast %129 : vector<1x128x768xbf16> to vector<128x768xbf16>
    %cst_63 = arith.constant dense<0.000000e+00> : vector<8x768xf32>
    %131 = tpu.matmul %128, %130, %cst_63 {dimension_numbers = #tpu.dot_dimension_numbers<[1], [0], [0], [1], [0, 0, 1, 1], [], []>} : vector<8x128xbf16>, vector<128x768xbf16>, vector<8x768xf32> -> vector<8x768xf32>
    %132 = arith.addf %121, %131 : vector<8x768xf32>
    %c0_64 = arith.constant 0 : index
    %c0_65 = arith.constant 0 : index
    %133 = vector.load %arg4[%c0_64, %c0_65] : memref<2x768xf32, #tpu.memory_space<vmem>>, vector<1x768xf32>
    %c1_66 = arith.constant 1 : index
    %c0_67 = arith.constant 0 : index
    %134 = vector.load %arg4[%c1_66, %c0_67] : memref<2x768xf32, #tpu.memory_space<vmem>>, vector<1x768xf32>
    %cst_68 = arith.constant dense<0.000000e+00> : vector<768xf32>
    %135 = vector.multi_reduction <add>, %132, %cst_68 [0] : vector<8x768xf32> to vector<768xf32>
    %136 = vector.shape_cast %135 : vector<768xf32> to vector<1x768xf32>
    %cst_69 = arith.constant 1.250000e-01 : f32
    %137 = vector.broadcast %cst_69 : f32 to vector<1x768xf32>
    %138 = arith.mulf %136, %137 : vector<1x768xf32>
    %139 = arith.mulf %132, %132 : vector<8x768xf32>
    %cst_70 = arith.constant dense<0.000000e+00> : vector<768xf32>
    %140 = vector.multi_reduction <add>, %139, %cst_70 [0] : vector<8x768xf32> to vector<768xf32>
    %141 = vector.shape_cast %140 : vector<768xf32> to vector<1x768xf32>
    %cst_71 = arith.constant 1.250000e-01 : f32
    %142 = vector.broadcast %cst_71 : f32 to vector<1x768xf32>
    %143 = arith.mulf %141, %142 : vector<1x768xf32>
    %144 = arith.mulf %138, %138 : vector<1x768xf32>
    %145 = arith.subf %143, %144 : vector<1x768xf32>
    %cst_72 = arith.constant 0.000000e+00 : f32
    %146 = vector.broadcast %cst_72 : f32 to vector<1x768xf32>
    %147 = arith.maximumf %145, %146 : vector<1x768xf32>
    %cst_73 = arith.constant 9.99999974E-6 : f32
    %148 = vector.broadcast %cst_73 : f32 to vector<1x768xf32>
    %149 = arith.addf %147, %148 : vector<1x768xf32>
    %150 = math.rsqrt %149 : vector<1x768xf32>
    %151 = arith.mulf %133, %150 : vector<1x768xf32>
    %152 = arith.mulf %138, %151 : vector<1x768xf32>
    %153 = arith.subf %134, %152 : vector<1x768xf32>
    %154 = vector.broadcast %151 : vector<1x768xf32> to vector<8x768xf32>
    %155 = arith.mulf %132, %154 : vector<8x768xf32>
    %156 = vector.broadcast %153 : vector<1x768xf32> to vector<8x768xf32>
    %157 = arith.addf %155, %156 : vector<8x768xf32>
    %cst_74 = arith.constant 0.000000e+00 : f32
    %158 = vector.broadcast %cst_74 : f32 to vector<8x768xf32>
    %159 = arith.maximumf %157, %158 : vector<8x768xf32>
    %160 = arith.truncf %159 : vector<8x768xf32> to vector<8x768xbf16>
    %c0_75 = arith.constant 0 : index
    %c0_76 = arith.constant 0 : index
    %161 = vector.load %arg5[%c0_75, %c0_76] : memref<769x128xbf16, #tpu.memory_space<vmem>>, vector<768x128xbf16>
    %cst_77 = arith.constant dense<0.000000e+00> : vector<8x128xf32>
    %162 = tpu.matmul %160, %161, %cst_77 {dimension_numbers = #tpu.dot_dimension_numbers<[1], [0], [0], [1], [0, 0, 1, 1], [], []>} : vector<8x768xbf16>, vector<768x128xbf16>, vector<8x128xf32> -> vector<8x128xf32>
    %c768 = arith.constant 768 : index
    %c0_78 = arith.constant 0 : index
    %163 = vector.load %arg5[%c768, %c0_78] : memref<769x128xbf16, #tpu.memory_space<vmem>>, vector<1x128xbf16>
    %164 = arith.extf %163 : vector<1x128xbf16> to vector<1x128xf32>
    %165 = vector.broadcast %164 : vector<1x128xf32> to vector<8x128xf32>
    %166 = arith.addf %162, %165 : vector<8x128xf32>
    %c0_79 = arith.constant 0 : index
    %c0_80 = arith.constant 0 : index
    %167 = vector.load %arg6[%c0_79, %c0_80] : memref<8x128xf32, #tpu.memory_space<vmem>>, vector<8x128xf32>
    tpu.vector_store %arg6[%c0_79, %c0_80], %166 {strides = array<i32>} : memref<8x128xf32, #tpu.memory_space<vmem>>, vector<8x128xf32>,
    return
  }
}

</mosaic_0001>

<llo_original>
// kernel: _forward_impl.2
$region0: #{_forward_impl.2}
  #allocation0 [shape = 'u32[]', space=smem, size = 0x4, offset = 0x4, fixed_abs, tag = 'smem constant byte address 0x4 - core index']
  #allocation1 [shape = 'u32[72,128]{1,0:T(1,128)}', space=vmem, size = 0x9000, scoped, tag = 'internal scratch']
  %s0 = inlined_call_operand.hbm [shape: bf16[64,128], index: 0, kind: input, shape index: {}]
  %s1 = inlined_call_operand.hbm [shape: f32[2,128], index: 1, kind: input, shape index: {}]
  %s2 = inlined_call_operand.hbm [shape: bf16[4,128,768], index: 2, kind: input, shape index: {}]
  %s3 = inlined_call_operand.hbm [shape: f32[2,768], index: 3, kind: input, shape index: {}]
  %s4 = inlined_call_operand.hbm [shape: bf16[769,128], index: 4, kind: input, shape index: {}]
  %s5 = inlined_call_operand.vmem [shape: f32[8,64,8,8], index: 5, kind: input, shape index: {}]
  %s6 = inlined_call_operand.hbm [shape: f32[8,128], index: 6, kind: output, shape index: {}]
  %s7 = sld [smem:[#allocation0]]
  $region54: #{_forward_impl.2} parent=0
    _
  %s9 = ssub.s32 1, %s7
  %s10 = scalar_select 0, %s9, %s7
  $region1: #{_forward_impl.2} parent=0
    #allocation2 [shape = 'u8[16384]{0}', space=vmem, size = 0x4000, scoped, tag = 'input window, operand 1, single buffered']
    #allocation3 [shape = 's32[1]{0}', space=sflag, size = 0x4, scoped, tag = 'scoped memory for _forward_impl.2']
    #allocation4 [shape = 's32[1]{0}', space=sflag, size = 0x4, scoped, tag = 'scoped memory for _forward_impl.2']
    #allocation5 [shape = 'u8[1024]{0}', space=vmem, size = 0x400, scoped, tag = 'input window, operand 2, single buffered']
    #allocation6 [shape = 's32[1]{0}', space=sflag, size = 0x4, scoped, tag = 'scoped memory for _forward_impl.2']
    #allocation7 [shape = 'u8[786432]{0}', space=vmem, size = 0xc0000, scoped, tag = 'input window, operand 3, single buffered']
    #allocation8 [shape = 'u8[6144]{0}', space=vmem, size = 0x1800, scoped, tag = 'input window, operand 4, single buffered']
    #allocation9 [shape = 's32[1]{0}', space=sflag, size = 0x4, scoped, tag = 'scoped memory for _forward_impl.2']
    #allocation10 [shape = 'u8[198656]{0}', space=vmem, size = 0x30800, scoped, tag = 'input window, operand 5, single buffered']
    #allocation11 [shape = 'u8[4096]{0}', space=vmem, size = 0x1000, scoped, tag = 'output window, operand 0, single buffered']
    #allocation12 [shape = 'u8[262144]{0}', space=vmem, size = 0x40000, dematerialized = true, scoped, tag = 'FusionAdapter Buffer %fusion.1 = f32[8,8,8,64]{3,2,1,0:T(8,128)} fusion(%param_5.1), kind=kLoop, calls=%fused_computation.1.clone, metadata={op_name="jit(_forward_impl)/transpose" stack_frame_id=8}']
    %11 = vsyncpa [#allocation3], 0
    %12 = vsyncpa [#allocation6], 0
    %13 = vsyncpa [#allocation9], 0
    %14 = vsyncpa [#allocation4], 0
    // Predicated region
    $region2: #{_forward_impl.2} parent=1 // pred_check
      _
    $region3: #{_forward_impl.2} parent=1 // pred_check_branch
      %16 = sbr.rel (0) target = $region5
    $region4: #{_forward_impl.2} parent=1 // pred_region
      _
    $region5: #{_forward_impl.2} parent=1 // pred_fallthru
      _
    // Predicated region
    $region6: #{_forward_impl.2} parent=1 // pred_check
      _
    $region7: #{_forward_impl.2} parent=1 // pred_check_branch
      %18 = sbr.rel (0) target = $region9
    $region8: #{_forward_impl.2} parent=1 // pred_region
      %20 = vsyncadd [#allocation3], 0
      %s21 = sshll.u32 %s0, 4
      %s22 = int_to_ptr.hbm [resolvable:$true] %s21
      %s23 = sshll.u32 [#allocation2], 4
      %s24 = int_to_ptr.vmem [resolvable:$true] %s23
      %29 = dma.hbm_to_vmem [thread:$0]  %s22, 512, %s24, [#allocation3], 64, 64, 4
    $region9: #{_forward_impl.2} parent=1 // pred_fallthru
      _
    // Predicated region
    $region10: #{_forward_impl.2} parent=1 // pred_check
      _
    $region11: #{_forward_impl.2} parent=1 // pred_check_branch
      %31 = sbr.rel (0) target = $region13
    $region12: #{_forward_impl.2} parent=1 // pred_region
      %33 = vsyncadd [#allocation6], 0
      %s35 = sshll.u32 %s1, 4
      %s36 = int_to_ptr.hbm [resolvable:$true] %s35
      %s37 = sshll.u32 [#allocation5], 4
      %s38 = int_to_ptr.vmem [resolvable:$true] %s37
      %40 = dma.hbm_to_vmem [thread:$0]  %s36, 32, %s38, [#allocation6]
    $region13: #{_forward_impl.2} parent=1 // pred_fallthru
      _
    // Predicated region
    $region14: #{_forward_impl.2} parent=1 // pred_check
      _
    $region15: #{_forward_impl.2} parent=1 // pred_check_branch
      %42 = sbr.rel (0) target = $region17
    $region16: #{_forward_impl.2} parent=1 // pred_region
      %44 = vsyncadd [#allocation6], 0
      %s45 = sshll.u32 %s2, 4
      %s46 = int_to_ptr.hbm [resolvable:$true] %s45
      %s47 = sshll.u32 [#allocation7], 4
      %s48 = int_to_ptr.vmem [resolvable:$true] %s47
      %53 = dma.hbm_to_vmem [thread:$0]  %s46, 24576, %s48, [#allocation6], 384, 384, 24
    $region17: #{_forward_impl.2} parent=1 // pred_fallthru
      _
    // Predicated region
    $region18: #{_forward_impl.2} parent=1 // pred_check
      _
    $region19: #{_forward_impl.2} parent=1 // pred_check_branch
      %55 = sbr.rel (0) target = $region21
    $region20: #{_forward_impl.2} parent=1 // pred_region
      %57 = vsyncadd [#allocation9], 0
      %s59 = sshll.u32 %s3, 4
      %s60 = int_to_ptr.hbm [resolvable:$true] %s59
      %s61 = sshll.u32 [#allocation8], 4
      %s62 = int_to_ptr.vmem [resolvable:$true] %s61
      %64 = dma.hbm_to_vmem [thread:$0]  %s60, 192, %s62, [#allocation9]
    $region21: #{_forward_impl.2} parent=1 // pred_fallthru
      _
    // Predicated region
    $region22: #{_forward_impl.2} parent=1 // pred_check
      _
    $region23: #{_forward_impl.2} parent=1 // pred_check_branch
      %66 = sbr.rel (0) target = $region25
    $region24: #{_forward_impl.2} parent=1 // pred_region
      %68 = vsyncadd [#allocation9], 0
      %s69 = sshll.u32 %s4, 4
      %s70 = int_to_ptr.hbm [resolvable:$true] %s69
      %s71 = sshll.u32 [#allocation10], 4
      %s72 = int_to_ptr.vmem [resolvable:$true] %s71
      %77 = dma.hbm_to_vmem [thread:$0]  %s70, 6208, %s72, [#allocation9], 64, 64, 4
    $region25: #{_forward_impl.2} parent=1 // pred_fallthru
      _
    // Predicated region
    $region26: #{_forward_impl.2} parent=1 // pred_check
      _
    $region27: #{_forward_impl.2} parent=1 // pred_check_branch
      %79 = sbr.rel (0) target = $region29
    $region28: #{_forward_impl.2} parent=1 // pred_region
      %81 = dma.done [#allocation3], 512
    $region29: #{_forward_impl.2} parent=1 // pred_fallthru
      _
    // Predicated region
    $region30: #{_forward_impl.2} parent=1 // pred_check
      _
    $region31: #{_forward_impl.2} parent=1 // pred_check_branch
      %83 = sbr.rel (0) target = $region33
    $region32: #{_forward_impl.2} parent=1 // pred_region
      %85 = dma.done [#allocation6], 32
    $region33: #{_forward_impl.2} parent=1 // pred_fallthru
      _
    // Predicated region
    $region34: #{_forward_impl.2} parent=1 // pred_check
      _
    $region35: #{_forward_impl.2} parent=1 // pred_check_branch
      %87 = sbr.rel (0) target = $region37
    $region36: #{_forward_impl.2} parent=1 // pred_region
      %89 = dma.done [#allocation6], 24576
    $region37: #{_forward_impl.2} parent=1 // pred_fallthru
      _
    // Predicated region
    $region38: #{_forward_impl.2} parent=1 // pred_check
      _
    $region39: #{_forward_impl.2} parent=1 // pred_check_branch
      %91 = sbr.rel (0) target = $region41
    $region40: #{_forward_impl.2} parent=1 // pred_region
      %93 = dma.done [#allocation9], 192
    $region41: #{_forward_impl.2} parent=1 // pred_fallthru
      _
    // Predicated region
    $region42: #{_forward_impl.2} parent=1 // pred_check
      _
    $region43: #{_forward_impl.2} parent=1 // pred_check_branch
      %95 = sbr.rel (0) target = $region45
    $region44: #{_forward_impl.2} parent=1 // pred_region
      %97 = dma.done [#allocation9], 6208
    $region45: #{_forward_impl.2} parent=1 // pred_fallthru
      _
    %v98 = vld [vmem:[%s5] sm:$0xff]
    %s100 = ssub.s32 256, 1
    %101 = vst [vmem:[#allocation12] sm:%s100] %v98
    %s102 = scalar_lea.vmem %s5, 8
    %v103 = vld [vmem:[%s102] sm:$0xff]
    %s104 = scalar_lea.vmem [#allocation12], 8
    %s106 = ssub.s32 256, 1
    %107 = vst [vmem:[%s104] sm:%s106] %v103
    %s108 = scalar_lea.vmem %s5, 16
    %v109 = vld [vmem:[%s108] sm:$0xff]
    %s110 = scalar_lea.vmem [#allocation12], 16
    %s112 = ssub.s32 256, 1
    %113 = vst [vmem:[%s110] sm:%s112] %v109
    %s114 = scalar_lea.vmem %s5, 24
    %v115 = vld [vmem:[%s114] sm:$0xff]
    %s116 = scalar_lea.vmem [#allocation12], 24
    %s118 = ssub.s32 256, 1
    %119 = vst [vmem:[%s116] sm:%s118] %v115
    %s120 = scalar_lea.vmem %s5, 32
    %v121 = vld [vmem:[%s120] sm:$0xff]
    %s122 = scalar_lea.vmem [#allocation12], 32
    %s124 = ssub.s32 256, 1
    %125 = vst [vmem:[%s122] sm:%s124] %v121
    %s126 = scalar_lea.vmem %s5, 40
    %v127 = vld [vmem:[%s126] sm:$0xff]
    %s128 = scalar_lea.vmem [#allocation12], 40
    %s130 = ssub.s32 256, 1
    %131 = vst [vmem:[%s128] sm:%s130] %v127
    %s132 = scalar_lea.vmem %s5, 48
    %v133 = vld [vmem:[%s132] sm:$0xff]
    %s134 = scalar_lea.vmem [#allocation12], 48
    %s136 = ssub.s32 256, 1
    %137 = vst [vmem:[%s134] sm:%s136] %v133
    %s138 = scalar_lea.vmem %s5, 56
    %v139 = vld [vmem:[%s138] sm:$0xff]
    %s140 = scalar_lea.vmem [#allocation12], 56
    %s142 = ssub.s32 256, 1
    %143 = vst [vmem:[%s140] sm:%s142] %v139
    %s144 = scalar_lea.vmem %s5, 64
    %v145 = vld [vmem:[%s144] sm:$0xff]
    %s146 = scalar_lea.vmem [#allocation12], 64
    %s148 = ssub.s32 256, 1
    %149 = vst [vmem:[%s146] sm:%s148] %v145
    %s150 = scalar_lea.vmem %s5, 72
    %v151 = vld [vmem:[%s150] sm:$0xff]
    %s152 = scalar_lea.vmem [#allocation12], 72
    %s154 = ssub.s32 256, 1
    %155 = vst [vmem:[%s152] sm:%s154] %v151
    %s156 = scalar_lea.vmem %s5, 80
    %v157 = vld [vmem:[%s156] sm:$0xff]
    %s158 = scalar_lea.vmem [#allocation12], 80
    %s160 = ssub.s32 256, 1
    %161 = vst [vmem:[%s158] sm:%s160] %v157
    %s162 = scalar_lea.vmem %s5, 88
    %v163 = vld [vmem:[%s162] sm:$0xff]
    %s164 = scalar_lea.vmem [#allocation12], 88
    %s166 = ssub.s32 256, 1
    %167 = vst [vmem:[%s164] sm:%s166] %v163
    %s168 = scalar_lea.vmem %s5, 96
    %v169 = vld [vmem:[%s168] sm:$0xff]
    %s170 = scalar_lea.vmem [#allocation12], 96
    %s172 = ssub.s32 256, 1
    %173 = vst [vmem:[%s170] sm:%s172] %v169
    %s174 = scalar_lea.vmem %s5, 104
    %v175 = vld [vmem:[%s174] sm:$0xff]
    %s176 = scalar_lea.vmem [#allocation12], 104
    %s178 = ssub.s32 256, 1
    %179 = vst [vmem:[%s176] sm:%s178] %v175
    %s180 = scalar_lea.vmem %s5, 112
    %v181 = vld [vmem:[%s180] sm:$0xff]
    %s182 = scalar_lea.vmem [#allocation12], 112
    %s184 = ssub.s32 256, 1
    %185 = vst [vmem:[%s182] sm:%s184] %v181
    %s186 = scalar_lea.vmem %s5, 120
    %v187 = vld [vmem:[%s186] sm:$0xff]
    %s188 = scalar_lea.vmem [#allocation12], 120
    %s190 = ssub.s32 256, 1
    %191 = vst [vmem:[%s188] sm:%s190] %v187
    %s192 = scalar_lea.vmem %s5, 128
    %v193 = vld [vmem:[%s192] sm:$0xff]
    %s194 = scalar_lea.vmem [#allocation12], 128
    %s196 = ssub.s32 256, 1
    %197 = vst [vmem:[%s194] sm:%s196] %v193
    %s198 = scalar_lea.vmem %s5, 136
    %v199 = vld [vmem:[%s198] sm:$0xff]
    %s200 = scalar_lea.vmem [#allocation12], 136
    %s202 = ssub.s32 256, 1
    %203 = vst [vmem:[%s200] sm:%s202] %v199
    %s204 = scalar_lea.vmem %s5, 144
    %v205 = vld [vmem:[%s204] sm:$0xff]
    %s206 = scalar_lea.vmem [#allocation12], 144
    %s208 = ssub.s32 256, 1
    %209 = vst [vmem:[%s206] sm:%s208] %v205
    %s210 = scalar_lea.vmem %s5, 152
    %v211 = vld [vmem:[%s210] sm:$0xff]
    %s212 = scalar_lea.vmem [#allocation12], 152
    %s214 = ssub.s32 256, 1
    %215 = vst [vmem:[%s212] sm:%s214] %v211
    %s216 = scalar_lea.vmem %s5, 160
    %v217 = vld [vmem:[%s216] sm:$0xff]
    %s218 = scalar_lea.vmem [#allocation12], 160
    %s220 = ssub.s32 256, 1
    %221 = vst [vmem:[%s218] sm:%s220] %v217
    %s222 = scalar_lea.vmem %s5, 168
    %v223 = vld [vmem:[%s222] sm:$0xff]
    %s224 = scalar_lea.vmem [#allocation12], 168
    %s226 = ssub.s32 256, 1
    %227 = vst [vmem:[%s224] sm:%s226] %v223
    %s228 = scalar_lea.vmem %s5, 176
    %v229 = vld [vmem:[%s228] sm:$0xff]
    %s230 = scalar_lea.vmem [#allocation12], 176
    %s232 = ssub.s32 256, 1
    %233 = vst [vmem:[%s230] sm:%s232] %v229
    %s234 = scalar_lea.vmem %s5, 184
    %v235 = vld [vmem:[%s234] sm:$0xff]
    %s236 = scalar_lea.vmem [#allocation12], 184
    %s238 = ssub.s32 256, 1
    %239 = vst [vmem:[%s236] sm:%s238] %v235
    %s240 = scalar_lea.vmem %s5, 192
    %v241 = vld [vmem:[%s240] sm:$0xff]
    %s242 = scalar_lea.vmem [#allocation12], 192
    %s244 = ssub.s32 256, 1
    %245 = vst [vmem:[%s242] sm:%s244] %v241
    %s246 = scalar_lea.vmem %s5, 200
    %v247 = vld [vmem:[%s246] sm:$0xff]
    %s248 = scalar_lea.vmem [#allocation12], 200
    %s250 = ssub.s32 256, 1
    %251 = vst [vmem:[%s248] sm:%s250] %v247
    %s252 = scalar_lea.vmem %s5, 208
    %v253 = vld [vmem:[%s252] sm:$0xff]
    %s254 = scalar_lea.vmem [#allocation12], 208
    %s256 = ssub.s32 256, 1
    %257 = vst [vmem:[%s254] sm:%s256] %v253
    %s258 = scalar_lea.vmem %s5, 216
    %v259 = vld [vmem:[%s258] sm:$0xff]
    %s260 = scalar_lea.vmem [#allocation12], 216
    %s262 = ssub.s32 256, 1
    %263 = vst [vmem:[%s260] sm:%s262] %v259
    %s264 = scalar_lea.vmem %s5, 224
    %v265 = vld [vmem:[%s264] sm:$0xff]
    %s266 = scalar_lea.vmem [#allocation12], 224
    %s268 = ssub.s32 256, 1
    %269 = vst [vmem:[%s266] sm:%s268] %v265
    %s270 = scalar_lea.vmem %s5, 232
    %v271 = vld [vmem:[%s270] sm:$0xff]
    %s272 = scalar_lea.vmem [#allocation12], 232
    %s274 = ssub.s32 256, 1
    %275 = vst [vmem:[%s272] sm:%s274] %v271
    %s276 = scalar_lea.vmem %s5, 240
    %v277 = vld [vmem:[%s276] sm:$0xff]
    %s278 = scalar_lea.vmem [#allocation12], 240
    %s280 = ssub.s32 256, 1
    %281 = vst [vmem:[%s278] sm:%s280] %v277
    %s282 = scalar_lea.vmem %s5, 248
    %v283 = vld [vmem:[%s282] sm:$0xff]
    %s284 = scalar_lea.vmem [#allocation12], 248
    %s286 = ssub.s32 256, 1
    %287 = vst [vmem:[%s284] sm:%s286] %v283
    %s288 = scalar_lea.vmem %s5, 256
    %v289 = vld [vmem:[%s288] sm:$0xff]
    %s290 = scalar_lea.vmem [#allocation12], 256
    %s292 = ssub.s32 256, 1
    %293 = vst [vmem:[%s290] sm:%s292] %v289
    %s294 = scalar_lea.vmem %s5, 264
    %v295 = vld [vmem:[%s294] sm:$0xff]
    %s296 = scalar_lea.vmem [#allocation12], 264
    %s298 = ssub.s32 256, 1
    %299 = vst [vmem:[%s296] sm:%s298] %v295
    %s300 = scalar_lea.vmem %s5, 272
    %v301 = vld [vmem:[%s300] sm:$0xff]
    %s302 = scalar_lea.vmem [#allocation12], 272
    %s304 = ssub.s32 256, 1
    %305 = vst [vmem:[%s302] sm:%s304] %v301
    %s306 = scalar_lea.vmem %s5, 280
    %v307 = vld [vmem:[%s306] sm:$0xff]
    %s308 = scalar_lea.vmem [#allocation12], 280
    %s310 = ssub.s32 256, 1
    %311 = vst [vmem:[%s308] sm:%s310] %v307
    %s312 = scalar_lea.vmem %s5, 288
    %v313 = vld [vmem:[%s312] sm:$0xff]
    %s314 = scalar_lea.vmem [#allocation12], 288
    %s316 = ssub.s32 256, 1
    %317 = vst [vmem:[%s314] sm:%s316] %v313
    %s318 = scalar_lea.vmem %s5, 296
    %v319 = vld [vmem:[%s318] sm:$0xff]
    %s320 = scalar_lea.vmem [#allocation12], 296
    %s322 = ssub.s32 256, 1
    %323 = vst [vmem:[%s320] sm:%s322] %v319
    %s324 = scalar_lea.vmem %s5, 304
    %v325 = vld [vmem:[%s324] sm:$0xff]
    %s326 = scalar_lea.vmem [#allocation12], 304
    %s328 = ssub.s32 256, 1
    %329 = vst [vmem:[%s326] sm:%s328] %v325
    %s330 = scalar_lea.vmem %s5, 312
    %v331 = vld [vmem:[%s330] sm:$0xff]
    %s332 = scalar_lea.vmem [#allocation12], 312
    %s334 = ssub.s32 256, 1
    %335 = vst [vmem:[%s332] sm:%s334] %v331
    %s336 = scalar_lea.vmem %s5, 320
    %v337 = vld [vmem:[%s336] sm:$0xff]
    %s338 = scalar_lea.vmem [#allocation12], 320
    %s340 = ssub.s32 256, 1
    %341 = vst [vmem:[%s338] sm:%s340] %v337
    %s342 = scalar_lea.vmem %s5, 328
    %v343 = vld [vmem:[%s342] sm:$0xff]
    %s344 = scalar_lea.vmem [#allocation12], 328
    %s346 = ssub.s32 256, 1
    %347 = vst [vmem:[%s344] sm:%s346] %v343
    %s348 = scalar_lea.vmem %s5, 336
    %v349 = vld [vmem:[%s348] sm:$0xff]
    %s350 = scalar_lea.vmem [#allocation12], 336
    %s352 = ssub.s32 256, 1
    %353 = vst [vmem:[%s350] sm:%s352] %v349
    %s354 = scalar_lea.vmem %s5, 344
    %v355 = vld [vmem:[%s354] sm:$0xff]
    %s356 = scalar_lea.vmem [#allocation12], 344
    %s358 = ssub.s32 256, 1
    %359 = vst [vmem:[%s356] sm:%s358] %v355
    %s360 = scalar_lea.vmem %s5, 352
    %v361 = vld [vmem:[%s360] sm:$0xff]
    %s362 = scalar_lea.vmem [#allocation12], 352
    %s364 = ssub.s32 256, 1
    %365 = vst [vmem:[%s362] sm:%s364] %v361
    %s366 = scalar_lea.vmem %s5, 360
    %v367 = vld [vmem:[%s366] sm:$0xff]
    %s368 = scalar_lea.vmem [#allocation12], 360
    %s370 = ssub.s32 256, 1
    %371 = vst [vmem:[%s368] sm:%s370] %v367
    %s372 = scalar_lea.vmem %s5, 368
    %v373 = vld [vmem:[%s372] sm:$0xff]
    %s374 = scalar_lea.vmem [#allocation12], 368
    %s376 = ssub.s32 256, 1
    %377 = vst [vmem:[%s374] sm:%s376] %v373
    %s378 = scalar_lea.vmem %s5, 376
    %v379 = vld [vmem:[%s378] sm:$0xff]
    %s380 = scalar_lea.vmem [#allocation12], 376
    %s382 = ssub.s32 256, 1
    %383 = vst [vmem:[%s380] sm:%s382] %v379
    %s384 = scalar_lea.vmem %s5, 384
    %v385 = vld [vmem:[%s384] sm:$0xff]
    %s386 = scalar_lea.vmem [#allocation12], 384
    %s388 = ssub.s32 256, 1
    %389 = vst [vmem:[%s386] sm:%s388] %v385
    %s390 = scalar_lea.vmem %s5, 392
    %v391 = vld [vmem:[%s390] sm:$0xff]
    %s392 = scalar_lea.vmem [#allocation12], 392
    %s394 = ssub.s32 256, 1
    %395 = vst [vmem:[%s392] sm:%s394] %v391
    %s396 = scalar_lea.vmem %s5, 400
    %v397 = vld [vmem:[%s396] sm:$0xff]
    %s398 = scalar_lea.vmem [#allocation12], 400
    %s400 = ssub.s32 256, 1
    %401 = vst [vmem:[%s398] sm:%s400] %v397
    %s402 = scalar_lea.vmem %s5, 408
    %v403 = vld [vmem:[%s402] sm:$0xff]
    %s404 = scalar_lea.vmem [#allocation12], 408
    %s406 = ssub.s32 256, 1
    %407 = vst [vmem:[%s404] sm:%s406] %v403
    %s408 = scalar_lea.vmem %s5, 416
    %v409 = vld [vmem:[%s408] sm:$0xff]
    %s410 = scalar_lea.vmem [#allocation12], 416
    %s412 = ssub.s32 256, 1
    %413 = vst [vmem:[%s410] sm:%s412] %v409
    %s414 = scalar_lea.vmem %s5, 424
    %v415 = vld [vmem:[%s414] sm:$0xff]
    %s416 = scalar_lea.vmem [#allocation12], 424
    %s418 = ssub.s32 256, 1
    %419 = vst [vmem:[%s416] sm:%s418] %v415
    %s420 = scalar_lea.vmem %s5, 432
    %v421 = vld [vmem:[%s420] sm:$0xff]
    %s422 = scalar_lea.vmem [#allocation12], 432
    %s424 = ssub.s32 256, 1
    %425 = vst [vmem:[%s422] sm:%s424] %v421
    %s426 = scalar_lea.vmem %s5, 440
    %v427 = vld [vmem:[%s426] sm:$0xff]
    %s428 = scalar_lea.vmem [#allocation12], 440
    %s430 = ssub.s32 256, 1
    %431 = vst [vmem:[%s428] sm:%s430] %v427
    %s432 = scalar_lea.vmem %s5, 448
    %v433 = vld [vmem:[%s432] sm:$0xff]
    %s434 = scalar_lea.vmem [#allocation12], 448
    %s436 = ssub.s32 256, 1
    %437 = vst [vmem:[%s434] sm:%s436] %v433
    %s438 = scalar_lea.vmem %s5, 456
    %v439 = vld [vmem:[%s438] sm:$0xff]
    %s440 = scalar_lea.vmem [#allocation12], 456
    %s442 = ssub.s32 256, 1
    %443 = vst [vmem:[%s440] sm:%s442] %v439
    %s444 = scalar_lea.vmem %s5, 464
    %v445 = vld [vmem:[%s444] sm:$0xff]
    %s446 = scalar_lea.vmem [#allocation12], 464
    %s448 = ssub.s32 256, 1
    %449 = vst [vmem:[%s446] sm:%s448] %v445
    %s450 = scalar_lea.vmem %s5, 472
    %v451 = vld [vmem:[%s450] sm:$0xff]
    %s452 = scalar_lea.vmem [#allocation12], 472
    %s454 = ssub.s32 256, 1
    %455 = vst [vmem:[%s452] sm:%s454] %v451
    %s456 = scalar_lea.vmem %s5, 480
    %v457 = vld [vmem:[%s456] sm:$0xff]
    %s458 = scalar_lea.vmem [#allocation12], 480
    %s460 = ssub.s32 256, 1
    %461 = vst [vmem:[%s458] sm:%s460] %v457
    %s462 = scalar_lea.vmem %s5, 488
    %v463 = vld [vmem:[%s462] sm:$0xff]
    %s464 = scalar_lea.vmem [#allocation12], 488
    %s466 = ssub.s32 256, 1
    %467 = vst [vmem:[%s464] sm:%s466] %v463
    %s468 = scalar_lea.vmem %s5, 496
    %v469 = vld [vmem:[%s468] sm:$0xff]
    %s470 = scalar_lea.vmem [#allocation12], 496
    %s472 = ssub.s32 256, 1
    %473 = vst [vmem:[%s470] sm:%s472] %v469
    %s474 = scalar_lea.vmem %s5, 504
    %v475 = vld [vmem:[%s474] sm:$0xff]
    %s476 = scalar_lea.vmem [#allocation12], 504
    %s478 = ssub.s32 256, 1
    %479 = vst [vmem:[%s476] sm:%s478] %v475
    %v481 = vld [vmem:[#allocation12] sm:$0xff]
    %v482 = vld [vmem:[#allocation12 + $0x8] sm:$0xff]
    %v483 = vld [vmem:[#allocation12 + $0x10] sm:$0xff]
    %v484 = vld [vmem:[#allocation12 + $0x18] sm:$0xff]
    %v485 = vld [vmem:[#allocation12 + $0x20] sm:$0xff]
    %v486 = vld [vmem:[#allocation12 + $0x28] sm:$0xff]
    %v487 = vld [vmem:[#allocation12 + $0x30] sm:$0xff]
    %v488 = vld [vmem:[#allocation12 + $0x38] sm:$0xff]
    %v489 = vld [vmem:[#allocation12 + $0x40] sm:$0xff]
    %v490 = vld [vmem:[#allocation12 + $0x48] sm:$0xff]
    %v491 = vld [vmem:[#allocation12 + $0x50] sm:$0xff]
    %v492 = vld [vmem:[#allocation12 + $0x58] sm:$0xff]
    %v493 = vld [vmem:[#allocation12 + $0x60] sm:$0xff]
    %v494 = vld [vmem:[#allocation12 + $0x68] sm:$0xff]
    %v495 = vld [vmem:[#allocation12 + $0x70] sm:$0xff]
    %v496 = vld [vmem:[#allocation12 + $0x78] sm:$0xff]
    %v497 = vld [vmem:[#allocation12 + $0x80] sm:$0xff]
    %v498 = vld [vmem:[#allocation12 + $0x88] sm:$0xff]
    %v499 = vld [vmem:[#allocation12 + $0x90] sm:$0xff]
    %v500 = vld [vmem:[#allocation12 + $0x98] sm:$0xff]
    %v501 = vld [vmem:[#allocation12 + $0xa0] sm:$0xff]
    %v502 = vld [vmem:[#allocation12 + $0xa8] sm:$0xff]
    %v503 = vld [vmem:[#allocation12 + $0xb0] sm:$0xff]
    %v504 = vld [vmem:[#allocation12 + $0xb8] sm:$0xff]
    %v505 = vld [vmem:[#allocation12 + $0xc0] sm:$0xff]
    %v506 = vld [vmem:[#allocation12 + $0xc8] sm:$0xff]
    %v507 = vld [vmem:[#allocation12 + $0xd0] sm:$0xff]
    %v508 = vld [vmem:[#allocation12 + $0xd8] sm:$0xff]
    %v509 = vld [vmem:[#allocation12 + $0xe0] sm:$0xff]
    %v510 = vld [vmem:[#allocation12 + $0xe8] sm:$0xff]
    %v511 = vld [vmem:[#allocation12 + $0xf0] sm:$0xff]
    %v512 = vld [vmem:[#allocation12 + $0xf8] sm:$0xff]
    %v513 = vld [vmem:[#allocation12 + $0x100] sm:$0xff]
    %v514 = vld [vmem:[#allocation12 + $0x108] sm:$0xff]
    %v515 = vld [vmem:[#allocation12 + $0x110] sm:$0xff]
    %v516 = vld [vmem:[#allocation12 + $0x118] sm:$0xff]
    %v517 = vld [vmem:[#allocation12 + $0x120] sm:$0xff]
    %v518 = vld [vmem:[#allocation12 + $0x128] sm:$0xff]
    %v519 = vld [vmem:[#allocation12 + $0x130] sm:$0xff]
    %v520 = vld [vmem:[#allocation12 + $0x138] sm:$0xff]
    %v521 = vld [vmem:[#allocation12 + $0x140] sm:$0xff]
    %v522 = vld [vmem:[#allocation12 + $0x148] sm:$0xff]
    %v523 = vld [vmem:[#allocation12 + $0x150] sm:$0xff]
    %v524 = vld [vmem:[#allocation12 + $0x158] sm:$0xff]
    %v525 = vld [vmem:[#allocation12 + $0x160] sm:$0xff]
    %v526 = vld [vmem:[#allocation12 + $0x168] sm:$0xff]
    %v527 = vld [vmem:[#allocation12 + $0x170] sm:$0xff]
    %v528 = vld [vmem:[#allocation12 + $0x178] sm:$0xff]
    %v529 = vld [vmem:[#allocation12 + $0x180] sm:$0xff]
    %v530 = vld [vmem:[#allocation12 + $0x188] sm:$0xff]
    %v531 = vld [vmem:[#allocation12 + $0x190] sm:$0xff]
    %v532 = vld [vmem:[#allocation12 + $0x198] sm:$0xff]
    %v533 = vld [vmem:[#allocation12 + $0x1a0] sm:$0xff]
    %v534 = vld [vmem:[#allocation12 + $0x1a8] sm:$0xff]
    %v535 = vld [vmem:[#allocation12 + $0x1b0] sm:$0xff]
    %v536 = vld [vmem:[#allocation12 + $0x1b8] sm:$0xff]
    %v537 = vld [vmem:[#allocation12 + $0x1c0] sm:$0xff]
    %v538 = vld [vmem:[#allocation12 + $0x1c8] sm:$0xff]
    %v539 = vld [vmem:[#allocation12 + $0x1d0] sm:$0xff]
    %v540 = vld [vmem:[#allocation12 + $0x1d8] sm:$0xff]
    %v541 = vld [vmem:[#allocation12 + $0x1e0] sm:$0xff]
    %v542 = vld [vmem:[#allocation12 + $0x1e8] sm:$0xff]
    %v543 = vld [vmem:[#allocation12 + $0x1f0] sm:$0xff]
    %v544 = vld [vmem:[#allocation12 + $0x1f8] sm:$0xff]
    %v545 = vmax.f32 %v481, 0.0
    %v546 = vmax.f32 %v482, 0.0
    %v547 = vmax.f32 %v483, 0.0
    %v548 = vmax.f32 %v484, 0.0
    %v549 = vmax.f32 %v485, 0.0
    %v550 = vmax.f32 %v486, 0.0
    %v551 = vmax.f32 %v487, 0.0
    %v552 = vmax.f32 %v488, 0.0
    %v553 = vmax.f32 %v489, 0.0
    %v554 = vmax.f32 %v490, 0.0
    %v555 = vmax.f32 %v491, 0.0
    %v556 = vmax.f32 %v492, 0.0
    %v557 = vmax.f32 %v493, 0.0
    %v558 = vmax.f32 %v494, 0.0
    %v559 = vmax.f32 %v495, 0.0
    %v560 = vmax.f32 %v496, 0.0
    %v561 = vmax.f32 %v497, 0.0
    %v562 = vmax.f32 %v498, 0.0
    %v563 = vmax.f32 %v499, 0.0
    %v564 = vmax.f32 %v500, 0.0
    %v565 = vmax.f32 %v501, 0.0
    %v566 = vmax.f32 %v502, 0.0
    %v567 = vmax.f32 %v503, 0.0
    %v568 = vmax.f32 %v504, 0.0
    %v569 = vmax.f32 %v505, 0.0
    %v570 = vmax.f32 %v506, 0.0
    %v571 = vmax.f32 %v507, 0.0
    %v572 = vmax.f32 %v508, 0.0
    %v573 = vmax.f32 %v509, 0.0
    %v574 = vmax.f32 %v510, 0.0
    %v575 = vmax.f32 %v511, 0.0
    %v576 = vmax.f32 %v512, 0.0
    %v577 = vmax.f32 %v513, 0.0
    %v578 = vmax.f32 %v514, 0.0
    %v579 = vmax.f32 %v515, 0.0
    %v580 = vmax.f32 %v516, 0.0
    %v581 = vmax.f32 %v517, 0.0
    %v582 = vmax.f32 %v518, 0.0
    %v583 = vmax.f32 %v519, 0.0
    %v584 = vmax.f32 %v520, 0.0
    %v585 = vmax.f32 %v521, 0.0
    %v586 = vmax.f32 %v522, 0.0
    %v587 = vmax.f32 %v523, 0.0
    %v588 = vmax.f32 %v524, 0.0
    %v589 = vmax.f32 %v525, 0.0
    %v590 = vmax.f32 %v526, 0.0
    %v591 = vmax.f32 %v527, 0.0
    %v592 = vmax.f32 %v528, 0.0
    %v593 = vmax.f32 %v529, 0.0
    %v594 = vmax.f32 %v530, 0.0
    %v595 = vmax.f32 %v531, 0.0
    %v596 = vmax.f32 %v532, 0.0
    %v597 = vmax.f32 %v533, 0.0
    %v598 = vmax.f32 %v534, 0.0
    %v599 = vmax.f32 %v535, 0.0
    %v600 = vmax.f32 %v536, 0.0
    %v601 = vmax.f32 %v537, 0.0
    %v602 = vmax.f32 %v538, 0.0
    %v603 = vmax.f32 %v539, 0.0
    %v604 = vmax.f32 %v540, 0.0
    %v605 = vmax.f32 %v541, 0.0
    %v606 = vmax.f32 %v542, 0.0
    %v607 = vmax.f32 %v543, 0.0
    %v608 = vmax.f32 %v544, 0.0
    %vm609 = vcmask 523264
    %v610 = vsel %vm609, %v545, 0.0
    %v611 = vsel %vm609, %v546, 0.0
    %v612 = vadd.f32 %v610, %v611
    %v613 = vsel %vm609, %v547, 0.0
    %v614 = vadd.f32 %v612, %v613
    %v615 = vsel %vm609, %v548, 0.0
    %v616 = vadd.f32 %v614, %v615
    %v617 = vsel %vm609, %v549, 0.0
    %v618 = vadd.f32 %v616, %v617
    %v619 = vsel %vm609, %v553, 0.0
    %v620 = vsel %vm609, %v554, 0.0
    %v621 = vadd.f32 %v619, %v620
    %v622 = vsel %vm609, %v555, 0.0
    %v623 = vadd.f32 %v621, %v622
    %v624 = vsel %vm609, %v556, 0.0
    %v625 = vadd.f32 %v623, %v624
    %v626 = vsel %vm609, %v557, 0.0
    %v627 = vadd.f32 %v625, %v626
    %v628 = vsel %vm609, %v561, 0.0
    %v629 = vsel %vm609, %v562, 0.0
    %v630 = vadd.f32 %v628, %v629
    %v631 = vsel %vm609, %v563, 0.0
    %v632 = vadd.f32 %v630, %v631
    %v633 = vsel %vm609, %v564, 0.0
    %v634 = vadd.f32 %v632, %v633
    %v635 = vsel %vm609, %v565, 0.0
    %v636 = vadd.f32 %v634, %v635
    %v637 = vsel %vm609, %v569, 0.0
    %v638 = vsel %vm609, %v570, 0.0
    %v639 = vadd.f32 %v637, %v638
    %v640 = vsel %vm609, %v571, 0.0
    %v641 = vadd.f32 %v639, %v640
    %v642 = vsel %vm609, %v572, 0.0
    %v643 = vadd.f32 %v641, %v642
    %v644 = vsel %vm609, %v573, 0.0
    %v645 = vadd.f32 %v643, %v644
    %v646 = vsel %vm609, %v577, 0.0
    %v647 = vsel %vm609, %v578, 0.0
    %v648 = vadd.f32 %v646, %v647
    %v649 = vsel %vm609, %v579, 0.0
    %v650 = vadd.f32 %v648, %v649
    %v651 = vsel %vm609, %v580, 0.0
    %v652 = vadd.f32 %v650, %v651
    %v653 = vsel %vm609, %v581, 0.0
    %v654 = vadd.f32 %v652, %v653
    %v655 = vsel %vm609, %v585, 0.0
    %v656 = vsel %vm609, %v586, 0.0
    %v657 = vadd.f32 %v655, %v656
    %v658 = vsel %vm609, %v587, 0.0
    %v659 = vadd.f32 %v657, %v658
    %v660 = vsel %vm609, %v588, 0.0
    %v661 = vadd.f32 %v659, %v660
    %v662 = vsel %vm609, %v589, 0.0
    %v663 = vadd.f32 %v661, %v662
    %v664 = vsel %vm609, %v593, 0.0
    %v665 = vsel %vm609, %v594, 0.0
    %v666 = vadd.f32 %v664, %v665
    %v667 = vsel %vm609, %v595, 0.0
    %v668 = vadd.f32 %v666, %v667
    %v669 = vsel %vm609, %v596, 0.0
    %v670 = vadd.f32 %v668, %v669
    %v671 = vsel %vm609, %v597, 0.0
    %v672 = vadd.f32 %v670, %v671
    %v673 = vsel %vm609, %v601, 0.0
    %v674 = vsel %vm609, %v602, 0.0
    %v675 = vadd.f32 %v673, %v674
    %v676 = vsel %vm609, %v603, 0.0
    %v677 = vadd.f32 %v675, %v676
    %v678 = vsel %vm609, %v604, 0.0
    %v679 = vadd.f32 %v677, %v678
    %v680 = vsel %vm609, %v605, 0.0
    %v681 = vadd.f32 %v679, %v680
    %v682 = vadd.f32 %v615, %v617
    %v683 = vsel %vm609, %v550, 0.0
    %v684 = vadd.f32 %v682, %v683
    %v685 = vsel %vm609, %v551, 0.0
    %v686 = vadd.f32 %v684, %v685
    %v687 = vsel %vm609, %v552, 0.0
    %v688 = vadd.f32 %v686, %v687
    %v689 = vadd.f32 %v624, %v626
    %v690 = vsel %vm609, %v558, 0.0
    %v691 = vadd.f32 %v689, %v690
    %v692 = vsel %vm609, %v559, 0.0
    %v693 = vadd.f32 %v691, %v692
    %v694 = vsel %vm609, %v560, 0.0
    %v695 = vadd.f32 %v693, %v694
    %v696 = vadd.f32 %v633, %v635
    %v697 = vsel %vm609, %v566, 0.0
    %v698 = vadd.f32 %v696, %v697
    %v699 = vsel %vm609, %v567, 0.0
    %v700 = vadd.f32 %v698, %v699
    %v701 = vsel %vm609, %v568, 0.0
    %v702 = vadd.f32 %v700, %v701
    %v703 = vadd.f32 %v642, %v644
    %v704 = vsel %vm609, %v574, 0.0
    %v705 = vadd.f32 %v703, %v704
    %v706 = vsel %vm609, %v575, 0.0
    %v707 = vadd.f32 %v705, %v706
    %v708 = vsel %vm609, %v576, 0.0
    %v709 = vadd.f32 %v707, %v708
    %v710 = vadd.f32 %v651, %v653
    %v711 = vsel %vm609, %v582, 0.0
    %v712 = vadd.f32 %v710, %v711
    %v713 = vsel %vm609, %v583, 0.0
    %v714 = vadd.f32 %v712, %v713
    %v715 = vsel %vm609, %v584, 0.0
    %v716 = vadd.f32 %v714, %v715
    %v717 = vadd.f32 %v660, %v662
    %v718 = vsel %vm609, %v590, 0.0
    %v719 = vadd.f32 %v717, %v718
    %v720 = vsel %vm609, %v591, 0.0
    %v721 = vadd.f32 %v719, %v720
    %v722 = vsel %vm609, %v592, 0.0
    %v723 = vadd.f32 %v721, %v722
    %v724 = vadd.f32 %v669, %v671
    %v725 = vsel %vm609, %v598, 0.0
    %v726 = vadd.f32 %v724, %v725
    %v727 = vsel %vm609, %v599, 0.0
    %v728 = vadd.f32 %v726, %v727
    %v729 = vsel %vm609, %v600, 0.0
    %v730 = vadd.f32 %v728, %v729
    %v731 = vadd.f32 %v678, %v680
    %v732 = vsel %vm609, %v606, 0.0
    %v733 = vadd.f32 %v731, %v732
    %v734 = vsel %vm609, %v607, 0.0
    %v735 = vadd.f32 %v733, %v734
    %v736 = vsel %vm609, %v608, 0.0
    %v737 = vadd.f32 %v735, %v736
    %v738 = vlaneseq
    %v739 = vshrl.u32 %v738, 7
    %vm740 = vcmp.lt.s32.totalorder %v739, 5
    %vm741 = vcmp.ge.s32.totalorder %v739, 3
    %v742 = vsel %vm740, %v618, 0.0
    %v743 = vsel %vm740, %v627, 0.0
    %v744 = vsel %vm740, %v636, 0.0
    %v745 = vsel %vm740, %v645, 0.0
    %v746 = vsel %vm740, %v654, 0.0
    %v747 = vsel %vm740, %v663, 0.0
    %v748 = vsel %vm740, %v672, 0.0
    %v749 = vsel %vm740, %v681, 0.0
    %v750 = vsel %vm609, %v742, 0.0
    %v751 = vrot.slane %v750, 4
    %v752 = vadd.f32 %v750, %v751
    %v753 = vrot.slane %v752, 2
    %v754 = vadd.f32 %v752, %v753
    %v755 = vrot.slane %v754, 1
    %v756 = vadd.f32 %v754, %v755
    %v757 = vsel %vm609, %v743, 0.0
    %v758 = vrot.slane %v757, 4
    %v759 = vadd.f32 %v757, %v758
    %v760 = vrot.slane %v759, 2
    %v761 = vadd.f32 %v759, %v760
    %v762 = vrot.slane %v761, 1
    %v763 = vadd.f32 %v761, %v762
    %v764 = vsel %vm609, %v744, 0.0
    %v765 = vrot.slane %v764, 4
    %v766 = vadd.f32 %v764, %v765
    %v767 = vrot.slane %v766, 2
    %v768 = vadd.f32 %v766, %v767
    %v769 = vrot.slane %v768, 1
    %v770 = vadd.f32 %v768, %v769
    %v771 = vsel %vm609, %v745, 0.0
    %v772 = vrot.slane %v771, 4
    %v773 = vadd.f32 %v771, %v772
    %v774 = vrot.slane %v773, 2
    %v775 = vadd.f32 %v773, %v774
    %v776 = vrot.slane %v775, 1
    %v777 = vadd.f32 %v775, %v776
    %v778 = vsel %vm609, %v746, 0.0
    %v779 = vrot.slane %v778, 4
    %v780 = vadd.f32 %v778, %v779
    %v781 = vrot.slane %v780, 2
    %v782 = vadd.f32 %v780, %v781
    %v783 = vrot.slane %v782, 1
    %v784 = vadd.f32 %v782, %v783
    %v785 = vsel %vm609, %v747, 0.0
    %v786 = vrot.slane %v785, 4
    %v787 = vadd.f32 %v785, %v786
    %v788 = vrot.slane %v787, 2
    %v789 = vadd.f32 %v787, %v788
    %v790 = vrot.slane %v789, 1
    %v791 = vadd.f32 %v789, %v790
    %v792 = vsel %vm609, %v748, 0.0
    %v793 = vrot.slane %v792, 4
    %v794 = vadd.f32 %v792, %v793
    %v795 = vrot.slane %v794, 2
    %v796 = vadd.f32 %v794, %v795
    %v797 = vrot.slane %v796, 1
    %v798 = vadd.f32 %v796, %v797
    %v799 = vsel %vm609, %v749, 0.0
    %v800 = vrot.slane %v799, 4
    %v801 = vadd.f32 %v799, %v800
    %v802 = vrot.slane %v801, 2
    %v803 = vadd.f32 %v801, %v802
    %v804 = vrot.slane %v803, 1
    %v805 = vadd.f32 %v803, %v804
    %v806 = vmul.f32 %v756, 0.04
    %v807 = vmul.f32 %v763, 0.04
    %v808 = vmul.f32 %v770, 0.04
    %v809 = vmul.f32 %v777, 0.04
    %v810 = vmul.f32 %v784, 0.04
    %v811 = vmul.f32 %v791, 0.04
    %v812 = vmul.f32 %v798, 0.04
    %v813 = vmul.f32 %v805, 0.04
    %v814 = vsel %vm741, %v618, 0.0
    %v815 = vsel %vm741, %v627, 0.0
    %v816 = vsel %vm741, %v636, 0.0
    %v817 = vsel %vm741, %v645, 0.0
    %v818 = vsel %vm741, %v654, 0.0
    %v819 = vsel %vm741, %v663, 0.0
    %v820 = vsel %vm741, %v672, 0.0
    %v821 = vsel %vm741, %v681, 0.0
    %v822 = vsel %vm609, %v814, 0.0
    %v823 = vrot.slane %v822, 4
    %v824 = vadd.f32 %v822, %v823
    %v825 = vrot.slane %v824, 2
    %v826 = vadd.f32 %v824, %v825
    %v827 = vrot.slane %v826, 1
    %v828 = vadd.f32 %v826, %v827
    %v829 = vsel %vm609, %v815, 0.0
    %v830 = vrot.slane %v829, 4
    %v831 = vadd.f32 %v829, %v830
    %v832 = vrot.slane %v831, 2
    %v833 = vadd.f32 %v831, %v832
    %v834 = vrot.slane %v833, 1
    %v835 = vadd.f32 %v833, %v834
    %v836 = vsel %vm609, %v816, 0.0
    %v837 = vrot.slane %v836, 4
    %v838 = vadd.f32 %v836, %v837
    %v839 = vrot.slane %v838, 2
    %v840 = vadd.f32 %v838, %v839
    %v841 = vrot.slane %v840, 1
    %v842 = vadd.f32 %v840, %v841
    %v843 = vsel %vm609, %v817, 0.0
    %v844 = vrot.slane %v843, 4
    %v845 = vadd.f32 %v843, %v844
    %v846 = vrot.slane %v845, 2
    %v847 = vadd.f32 %v845, %v846
    %v848 = vrot.slane %v847, 1
    %v849 = vadd.f32 %v847, %v848
    %v850 = vsel %vm609, %v818, 0.0
    %v851 = vrot.slane %v850, 4
    %v852 = vadd.f32 %v850, %v851
    %v853 = vrot.slane %v852, 2
    %v854 = vadd.f32 %v852, %v853
    %v855 = vrot.slane %v854, 1
    %v856 = vadd.f32 %v854, %v855
    %v857 = vsel %vm609, %v819, 0.0
    %v858 = vrot.slane %v857, 4
    %v859 = vadd.f32 %v857, %v858
    %v860 = vrot.slane %v859, 2
    %v861 = vadd.f32 %v859, %v860
    %v862 = vrot.slane %v861, 1
    %v863 = vadd.f32 %v861, %v862
    %v864 = vsel %vm609, %v820, 0.0
    %v865 = vrot.slane %v864, 4
    %v866 = vadd.f32 %v864, %v865
    %v867 = vrot.slane %v866, 2
    %v868 = vadd.f32 %v866, %v867
    %v869 = vrot.slane %v868, 1
    %v870 = vadd.f32 %v868, %v869
    %v871 = vsel %vm609, %v821, 0.0
    %v872 = vrot.slane %v871, 4
    %v873 = vadd.f32 %v871, %v872
    %v874 = vrot.slane %v873, 2
    %v875 = vadd.f32 %v873, %v874
    %v876 = vrot.slane %v875, 1
    %v877 = vadd.f32 %v875, %v876
    %v878 = vmul.f32 %v828, 0.04
    %v879 = vmul.f32 %v835, 0.04
    %v880 = vmul.f32 %v842, 0.04
    %v881 = vmul.f32 %v849, 0.04
    %v882 = vmul.f32 %v856, 0.04
    %v883 = vmul.f32 %v863, 0.04
    %v884 = vmul.f32 %v870, 0.04
    %v885 = vmul.f32 %v877, 0.04
    %v886 = vsel %vm740, %v688, 0.0
    %v887 = vsel %vm740, %v695, 0.0
    %v888 = vsel %vm740, %v702, 0.0
    %v889 = vsel %vm740, %v709, 0.0
    %v890 = vsel %vm740, %v716, 0.0
    %v891 = vsel %vm740, %v723, 0.0
    %v892 = vsel %vm740, %v730, 0.0
    %v893 = vsel %vm740, %v737, 0.0
    %v894 = vsel %vm609, %v886, 0.0
    %v895 = vrot.slane %v894, 4
    %v896 = vadd.f32 %v894, %v895
    %v897 = vrot.slane %v896, 2
    %v898 = vadd.f32 %v896, %v897
    %v899 = vrot.slane %v898, 1
    %v900 = vadd.f32 %v898, %v899
    %v901 = vsel %vm609, %v887, 0.0
    %v902 = vrot.slane %v901, 4
    %v903 = vadd.f32 %v901, %v902
    %v904 = vrot.slane %v903, 2
    %v905 = vadd.f32 %v903, %v904
    %v906 = vrot.slane %v905, 1
    %v907 = vadd.f32 %v905, %v906
    %v908 = vsel %vm609, %v888, 0.0
    %v909 = vrot.slane %v908, 4
    %v910 = vadd.f32 %v908, %v909
    %v911 = vrot.slane %v910, 2
    %v912 = vadd.f32 %v910, %v911
    %v913 = vrot.slane %v912, 1
    %v914 = vadd.f32 %v912, %v913
    %v915 = vsel %vm609, %v889, 0.0
    %v916 = vrot.slane %v915, 4
    %v917 = vadd.f32 %v915, %v916
    %v918 = vrot.slane %v917, 2
    %v919 = vadd.f32 %v917, %v918
    %v920 = vrot.slane %v919, 1
    %v921 = vadd.f32 %v919, %v920
    %v922 = vsel %vm609, %v890, 0.0
    %v923 = vrot.slane %v922, 4
    %v924 = vadd.f32 %v922, %v923
    %v925 = vrot.slane %v924, 2
    %v926 = vadd.f32 %v924, %v925
    %v927 = vrot.slane %v926, 1
    %v928 = vadd.f32 %v926, %v927
    %v929 = vsel %vm609, %v891, 0.0
    %v930 = vrot.slane %v929, 4
    %v931 = vadd.f32 %v929, %v930
    %v932 = vrot.slane %v931, 2
    %v933 = vadd.f32 %v931, %v932
    %v934 = vrot.slane %v933, 1
    %v935 = vadd.f32 %v933, %v934
    %v936 = vsel %vm609, %v892, 0.0
    %v937 = vrot.slane %v936, 4
    %v938 = vadd.f32 %v936, %v937
    %v939 = vrot.slane %v938, 2
    %v940 = vadd.f32 %v938, %v939
    %v941 = vrot.slane %v940, 1
    %v942 = vadd.f32 %v940, %v941
    %v943 = vsel %vm609, %v893, 0.0
    %v944 = vrot.slane %v943, 4
    %v945 = vadd.f32 %v943, %v944
    %v946 = vrot.slane %v945, 2
    %v947 = vadd.f32 %v945, %v946
    %v948 = vrot.slane %v947, 1
    %v949 = vadd.f32 %v947, %v948
    %v950 = vmul.f32 %v900, 0.04
    %v951 = vmul.f32 %v907, 0.04
    %v952 = vmul.f32 %v914, 0.04
    %v953 = vmul.f32 %v921, 0.04
    %v954 = vmul.f32 %v928, 0.04
    %v955 = vmul.f32 %v935, 0.04
    %v956 = vmul.f32 %v942, 0.04
    %v957 = vmul.f32 %v949, 0.04
    %v958 = vsel %vm741, %v688, 0.0
    %v959 = vsel %vm741, %v695, 0.0
    %v960 = vsel %vm741, %v702, 0.0
    %v961 = vsel %vm741, %v709, 0.0
    %v962 = vsel %vm741, %v716, 0.0
    %v963 = vsel %vm741, %v723, 0.0
    %v964 = vsel %vm741, %v730, 0.0
    %v965 = vsel %vm741, %v737, 0.0
    %v966 = vsel %vm609, %v958, 0.0
    %v967 = vrot.slane %v966, 4
    %v968 = vadd.f32 %v966, %v967
    %v969 = vrot.slane %v968, 2
    %v970 = vadd.f32 %v968, %v969
    %v971 = vrot.slane %v970, 1
    %v972 = vadd.f32 %v970, %v971
    %v973 = vsel %vm609, %v959, 0.0
    %v974 = vrot.slane %v973, 4
    %v975 = vadd.f32 %v973, %v974
    %v976 = vrot.slane %v975, 2
    %v977 = vadd.f32 %v975, %v976
    %v978 = vrot.slane %v977, 1
    %v979 = vadd.f32 %v977, %v978
    %v980 = vsel %vm609, %v960, 0.0
    %v981 = vrot.slane %v980, 4
    %v982 = vadd.f32 %v980, %v981
    %v983 = vrot.slane %v982, 2
    %v984 = vadd.f32 %v982, %v983
    %v985 = vrot.slane %v984, 1
    %v986 = vadd.f32 %v984, %v985
    %v987 = vsel %vm609, %v961, 0.0
    %v988 = vrot.slane %v987, 4
    %v989 = vadd.f32 %v987, %v988
    %v990 = vrot.slane %v989, 2
    %v991 = vadd.f32 %v989, %v990
    %v992 = vrot.slane %v991, 1
    %v993 = vadd.f32 %v991, %v992
    %v994 = vsel %vm609, %v962, 0.0
    %v995 = vrot.slane %v994, 4
    %v996 = vadd.f32 %v994, %v995
    %v997 = vrot.slane %v996, 2
    %v998 = vadd.f32 %v996, %v997
    %v999 = vrot.slane %v998, 1
    %v1000 = vadd.f32 %v998, %v999
    %v1001 = vsel %vm609, %v963, 0.0
    %v1002 = vrot.slane %v1001, 4
    %v1003 = vadd.f32 %v1001, %v1002
    %v1004 = vrot.slane %v1003, 2
    %v1005 = vadd.f32 %v1003, %v1004
    %v1006 = vrot.slane %v1005, 1
    %v1007 = vadd.f32 %v1005, %v1006
    %v1008 = vsel %vm609, %v964, 0.0
    %v1009 = vrot.slane %v1008, 4
    %v1010 = vadd.f32 %v1008, %v1009
    %v1011 = vrot.slane %v1010, 2
    %v1012 = vadd.f32 %v1010, %v1011
    %v1013 = vrot.slane %v1012, 1
    %v1014 = vadd.f32 %v1012, %v1013
    %v1015 = vsel %vm609, %v965, 0.0
    %v1016 = vrot.slane %v1015, 4
    %v1017 = vadd.f32 %v1015, %v1016
    %v1018 = vrot.slane %v1017, 2
    %v1019 = vadd.f32 %v1017, %v1018
    %v1020 = vrot.slane %v1019, 1
    %v1021 = vadd.f32 %v1019, %v1020
    %v1022 = vmul.f32 %v972, 0.04
    %v1023 = vmul.f32 %v979, 0.04
    %v1024 = vmul.f32 %v986, 0.04
    %v1025 = vmul.f32 %v993, 0.04
    %v1026 = vmul.f32 %v1000, 0.04
    %v1027 = vmul.f32 %v1007, 0.04
    %v1028 = vmul.f32 %v1014, 0.04
    %v1029 = vmul.f32 %v1021, 0.04
    %v1030 = vpack.c.bf16 %v806, %v806
    %v1031 = vpack.c.bf16 %v807, %v807
    %v1032 = vpack.c.bf16 %v808, %v808
    %v1033 = vpack.c.bf16 %v809, %v809
    %v1034 = vpack.c.bf16 %v810, %v810
    %v1035 = vpack.c.bf16 %v811, %v811
    %v1036 = vpack.c.bf16 %v812, %v812
    %v1037 = vpack.c.bf16 %v813, %v813
    %v1038 = vld [vmem:[#allocation2] sm:$0xf]
    %v1039 = vld [vmem:[#allocation2 + $0x4] sm:$0xf]
    %v1040 = vld [vmem:[#allocation2 + $0x8] sm:$0xf]
    %v1041 = vld [vmem:[#allocation2 + $0xc] sm:$0xf]
    %v1042 = vld [vmem:[#allocation2 + $0x10] sm:$0xf]
    %v1043 = vld [vmem:[#allocation2 + $0x14] sm:$0xf]
    %v1044 = vld [vmem:[#allocation2 + $0x18] sm:$0xf]
    %v1045 = vld [vmem:[#allocation2 + $0x1c] sm:$0xf]
    %v1054 = vunpack.c.l.b16 %v1030
    %v1055 = vunpack.c.l.b16 %v1031
    %v1056 = vunpack.c.l.b16 %v1032
    %v1057 = vunpack.c.l.b16 %v1033
    %v1058 = vunpack.c.l.b16 %v1034
    %v1059 = vunpack.c.l.b16 %v1035
    %v1060 = vunpack.c.l.b16 %v1036
    %v1061 = vunpack.c.l.b16 %v1037
    %vm1062 = vcmask 1041409
    %v1063 = vsel %vm1062, %v1055, %v1054
    %vm1064 = vcmask 1042434
    %v1065 = vsel %vm1064, %v1056, %v1063
    %vm1066 = vcmask 1043459
    %v1067 = vsel %vm1066, %v1057, %v1065
    %vm1068 = vcmask 1044484
    %v1069 = vsel %vm1068, %v1058, %v1067
    %vm1070 = vcmask 1045509
    %v1071 = vsel %vm1070, %v1059, %v1069
    %vm1072 = vcmask 1046534
    %v1073 = vsel %vm1072, %v1060, %v1071
    %vm1074 = vcmask 1047559
    %v1075 = vsel %vm1074, %v1061, %v1073
    %v1076 = vpack.c.b16 %v1075, %v1075
    %v1085 = vunpack.c.l.b16 %v1038
    %v1086 = vunpack.c.l.b16 %v1039
    %v1087 = vunpack.c.l.b16 %v1040
    %v1088 = vunpack.c.l.b16 %v1041
    %v1089 = vunpack.c.l.b16 %v1042
    %v1090 = vunpack.c.l.b16 %v1043
    %v1091 = vunpack.c.l.b16 %v1044
    %v1092 = vunpack.c.l.b16 %v1045
    %v1093 = vpack.c.b16 %v1086, %v1085
    %v1094 = vpack.c.b16 %v1088, %v1087
    %v1095 = vpack.c.b16 %v1090, %v1089
    %v1096 = vpack.c.b16 %v1092, %v1091
    %v1102 = vsel %vm609, %v1076, 0
    %1104 = vmatpush.bf16.msra.mxu0 0
    %1105 = vmatpush.bf16.msra.mxu0 0
    %1106 = vmatpush.bf16.msra.mxu0 0
    %1107 = vmatpush.bf16.msra.mxu0 0
    %1108 = vmatpush.bf16.msra.mxu0 %v1096
    %1109 = vmatpush.bf16.msra.mxu0 %v1095
    %1110 = vmatpush.bf16.msra.mxu0 %v1094
    %1111 = vmatpush.bf16.msra.mxu0 %v1093
    %1112 = vmatmul.bf16.gmra.mxu0 %v1102
    %v1113 = vpop.f32.mrf.mxu0
    %v1114 = vadd.f32 0.0, %v1113
    %v1115 = vpop.f32.mrf.mxu0
    %1116 = vdwg.mxu0
    %v1117 = vpack.c.bf16 %v878, %v878
    %v1118 = vpack.c.bf16 %v879, %v879
    %v1119 = vpack.c.bf16 %v880, %v880
    %v1120 = vpack.c.bf16 %v881, %v881
    %v1121 = vpack.c.bf16 %v882, %v882
    %v1122 = vpack.c.bf16 %v883, %v883
    %v1123 = vpack.c.bf16 %v884, %v884
    %v1124 = vpack.c.bf16 %v885, %v885
    %v1133 = vunpack.c.l.b16 %v1117
    %v1134 = vunpack.c.l.b16 %v1118
    %v1135 = vunpack.c.l.b16 %v1119
    %v1136 = vunpack.c.l.b16 %v1120
    %v1137 = vunpack.c.l.b16 %v1121
    %v1138 = vunpack.c.l.b16 %v1122
    %v1139 = vunpack.c.l.b16 %v1123
    %v1140 = vunpack.c.l.b16 %v1124
    %v1141 = vsel %vm1062, %v1134, %v1133
    %v1142 = vsel %vm1064, %v1135, %v1141
    %v1143 = vsel %vm1066, %v1136, %v1142
    %v1144 = vsel %vm1068, %v1137, %v1143
    %v1145 = vsel %vm1070, %v1138, %v1144
    %v1146 = vsel %vm1072, %v1139, %v1145
    %v1147 = vsel %vm1074, %v1140, %v1146
    %v1148 = vpack.c.b16 %v1147, %v1147
    %v1150 = vsel %vm609, %v1148, 0
    %1152 = vmatpush.bf16.msra.mxu0 0
    %1153 = vmatpush.bf16.msra.mxu0 0
    %1154 = vmatpush.bf16.msra.mxu0 0
    %1155 = vmatpush.bf16.msra.mxu0 0
    %1156 = vmatpush.bf16.msra.mxu0 %v1096
    %1157 = vmatpush.bf16.msra.mxu0 %v1095
    %1158 = vmatpush.bf16.msra.mxu0 %v1094
    %1159 = vmatpush.bf16.msra.mxu0 %v1093
    %1160 = vmatmul.bf16.gmra.mxu0 %v1150
    %v1161 = vpop.f32.mrf.mxu0
    %v1162 = vadd.f32 0.0, %v1161
    %v1163 = vpop.f32.mrf.mxu0
    %1164 = vdwg.mxu0
    %v1165 = vpack.c.bf16 %v950, %v950
    %v1166 = vpack.c.bf16 %v951, %v951
    %v1167 = vpack.c.bf16 %v952, %v952
    %v1168 = vpack.c.bf16 %v953, %v953
    %v1169 = vpack.c.bf16 %v954, %v954
    %v1170 = vpack.c.bf16 %v955, %v955
    %v1171 = vpack.c.bf16 %v956, %v956
    %v1172 = vpack.c.bf16 %v957, %v957
    %v1181 = vunpack.c.l.b16 %v1165
    %v1182 = vunpack.c.l.b16 %v1166
    %v1183 = vunpack.c.l.b16 %v1167
    %v1184 = vunpack.c.l.b16 %v1168
    %v1185 = vunpack.c.l.b16 %v1169
    %v1186 = vunpack.c.l.b16 %v1170
    %v1187 = vunpack.c.l.b16 %v1171
    %v1188 = vunpack.c.l.b16 %v1172
    %v1189 = vsel %vm1062, %v1182, %v1181
    %v1190 = vsel %vm1064, %v1183, %v1189
    %v1191 = vsel %vm1066, %v1184, %v1190
    %v1192 = vsel %vm1068, %v1185, %v1191
    %v1193 = vsel %vm1070, %v1186, %v1192
    %v1194 = vsel %vm1072, %v1187, %v1193
    %v1195 = vsel %vm1074, %v1188, %v1194
    %v1196 = vpack.c.b16 %v1195, %v1195
    %v1198 = vsel %vm609, %v1196, 0
    %1200 = vmatpush.bf16.msra.mxu0 0
    %1201 = vmatpush.bf16.msra.mxu0 0
    %1202 = vmatpush.bf16.msra.mxu0 0
    %1203 = vmatpush.bf16.msra.mxu0 0
    %1204 = vmatpush.bf16.msra.mxu0 %v1096
    %1205 = vmatpush.bf16.msra.mxu0 %v1095
    %1206 = vmatpush.bf16.msra.mxu0 %v1094
    %1207 = vmatpush.bf16.msra.mxu0 %v1093
    %1208 = vmatmul.bf16.gmra.mxu0 %v1198
    %v1209 = vpop.f32.mrf.mxu0
    %v1210 = vadd.f32 0.0, %v1209
    %v1211 = vpop.f32.mrf.mxu0
    %1212 = vdwg.mxu0
    %v1213 = vpack.c.bf16 %v1022, %v1022
    %v1214 = vpack.c.bf16 %v1023, %v1023
    %v1215 = vpack.c.bf16 %v1024, %v1024
    %v1216 = vpack.c.bf16 %v1025, %v1025
    %v1217 = vpack.c.bf16 %v1026, %v1026
    %v1218 = vpack.c.bf16 %v1027, %v1027
    %v1219 = vpack.c.bf16 %v1028, %v1028
    %v1220 = vpack.c.bf16 %v1029, %v1029
    %v1229 = vunpack.c.l.b16 %v1213
    %v1230 = vunpack.c.l.b16 %v1214
    %v1231 = vunpack.c.l.b16 %v1215
    %v1232 = vunpack.c.l.b16 %v1216
    %v1233 = vunpack.c.l.b16 %v1217
    %v1234 = vunpack.c.l.b16 %v1218
    %v1235 = vunpack.c.l.b16 %v1219
    %v1236 = vunpack.c.l.b16 %v1220
    %v1237 = vsel %vm1062, %v1230, %v1229
    %v1238 = vsel %vm1064, %v1231, %v1237
    %v1239 = vsel %vm1066, %v1232, %v1238
    %v1240 = vsel %vm1068, %v1233, %v1239
    %v1241 = vsel %vm1070, %v1234, %v1240
    %v1242 = vsel %vm1072, %v1235, %v1241
    %v1243 = vsel %vm1074, %v1236, %v1242
    %v1244 = vpack.c.b16 %v1243, %v1243
    %v1246 = vsel %vm609, %v1244, 0
    %1248 = vmatpush.bf16.msra.mxu0 0
    %1249 = vmatpush.bf16.msra.mxu0 0
    %1250 = vmatpush.bf16.msra.mxu0 0
    %1251 = vmatpush.bf16.msra.mxu0 0
    %1252 = vmatpush.bf16.msra.mxu0 %v1096
    %1253 = vmatpush.bf16.msra.mxu0 %v1095
    %1254 = vmatpush.bf16.msra.mxu0 %v1094
    %1255 = vmatpush.bf16.msra.mxu0 %v1093
    %1256 = vmatmul.bf16.gmra.mxu0 %v1246
    %v1257 = vpop.f32.mrf.mxu0
    %v1258 = vadd.f32 0.0, %v1257
    %v1259 = vpop.f32.mrf.mxu0
    %1260 = vdwg.mxu0
    %v1261 = vld [vmem:[#allocation5] sm:$0x1]
    %v1262 = vld [vmem:[#allocation5 + $0x1] sm:$0x1]
    %v1263 = vrot.slane %v1114, 4
    %v1264 = vadd.f32 %v1114, %v1263
    %v1265 = vrot.slane %v1264, 2
    %v1266 = vadd.f32 %v1264, %v1265
    %v1267 = vrot.slane %v1266, 1
    %v1268 = vadd.f32 %v1266, %v1267
    %v1269 = vadd.f32 %v1268, 0.0
    %v1270 = vrot.slane %v1162, 4
    %v1271 = vadd.f32 %v1162, %v1270
    %v1272 = vrot.slane %v1271, 2
    %v1273 = vadd.f32 %v1271, %v1272
    %v1274 = vrot.slane %v1273, 1
    %v1275 = vadd.f32 %v1273, %v1274
    %v1276 = vadd.f32 %v1269, %v1275
    %v1277 = vrot.slane %v1210, 4
    %v1278 = vadd.f32 %v1210, %v1277
    %v1279 = vrot.slane %v1278, 2
    %v1280 = vadd.f32 %v1278, %v1279
    %v1281 = vrot.slane %v1280, 1
    %v1282 = vadd.f32 %v1280, %v1281
    %v1283 = vadd.f32 %v1276, %v1282
    %v1284 = vrot.slane %v1258, 4
    %v1285 = vadd.f32 %v1258, %v1284
    %v1286 = vrot.slane %v1285, 2
    %v1287 = vadd.f32 %v1285, %v1286
    %v1288 = vrot.slane %v1287, 1
    %v1289 = vadd.f32 %v1287, %v1288
    %v1290 = vadd.f32 %v1283, %v1289
    %v1291 = vmul.f32 %v1290, 0.03125
    %v1292 = vmul.f32 %v1114, %v1114
    %v1293 = vrot.slane %v1292, 4
    %v1294 = vadd.f32 %v1292, %v1293
    %v1295 = vrot.slane %v1294, 2
    %v1296 = vadd.f32 %v1294, %v1295
    %v1297 = vrot.slane %v1296, 1
    %v1298 = vadd.f32 %v1296, %v1297
    %v1299 = vadd.f32 %v1298, 0.0
    %v1300 = vmul.f32 %v1162, %v1162
    %v1301 = vrot.slane %v1300, 4
    %v1302 = vadd.f32 %v1300, %v1301
    %v1303 = vrot.slane %v1302, 2
    %v1304 = vadd.f32 %v1302, %v1303
    %v1305 = vrot.slane %v1304, 1
    %v1306 = vadd.f32 %v1304, %v1305
    %v1307 = vadd.f32 %v1299, %v1306
    %v1308 = vmul.f32 %v1210, %v1210
    %v1309 = vrot.slane %v1308, 4
    %v1310 = vadd.f32 %v1308, %v1309
    %v1311 = vrot.slane %v1310, 2
    %v1312 = vadd.f32 %v1310, %v1311
    %v1313 = vrot.slane %v1312, 1
    %v1314 = vadd.f32 %v1312, %v1313
    %v1315 = vadd.f32 %v1307, %v1314
    %v1316 = vmul.f32 %v1258, %v1258
    %v1317 = vrot.slane %v1316, 4
    %v1318 = vadd.f32 %v1316, %v1317
    %v1319 = vrot.slane %v1318, 2
    %v1320 = vadd.f32 %v1318, %v1319
    %v1321 = vrot.slane %v1320, 1
    %v1322 = vadd.f32 %v1320, %v1321
    %v1323 = vadd.f32 %v1315, %v1322
    %v1324 = vmul.f32 %v1323, 0.03125
    %v1325 = vmul.f32 %v1291, %v1291
    %v1326 = vsub.f32 %v1324, %v1325
    %v1327 = vmax.f32 %v1326, 0.0
    %v1328 = vadd.f32 %v1327, 1e-05
    %v1329 = vrsqrt.pop %v1328
    %v1330 = vmul.f32 %v1329, %v1328
    %v1331 = vmul.f32 %v1330, %v1329
    %v1332 = vmul.f32 0.5, %v1331
    %v1333 = vsub.f32 1.5, %v1332
    %v1334 = vmul.f32 %v1329, %v1333
    %vm1335 = vweird.f32 %v1328
    %vm1336 = vweird.f32 %v1329
    %vm1337 = vmor %vm1335, %vm1336
    %v1338 = vsel %vm1337, %v1329, %v1334
    %v1339 = vmul.f32 %v1261, %v1338
    %v1340 = vmul.f32 %v1291, %v1339
    %v1341 = vsub.f32 %v1262, %v1340
    %v1342 = vperm.slane %v1339, 0
    %v1343 = vmul.f32 %v1114, %v1342
    %v1344 = vperm.slane %v1341, 0
    %v1345 = vadd.f32 %v1343, %v1344
    %v1346 = vmax.f32 %v1345, 0.0
    %v1347 = vpack.c.bf16 %v1346, %v1346
    %v1348 = vld [vmem:[#allocation7] sm:$0xff]
    %v1349 = vld [vmem:[#allocation7 + $0x8] sm:$0xff]
    %v1350 = vld [vmem:[#allocation7 + $0x10] sm:$0xff]
    %v1351 = vld [vmem:[#allocation7 + $0x18] sm:$0xff]
    %v1352 = vld [vmem:[#allocation7 + $0x20] sm:$0xff]
    %v1353 = vld [vmem:[#allocation7 + $0x28] sm:$0xff]
    %v1354 = vld [vmem:[#allocation7 + $0x30] sm:$0xff]
    %v1355 = vld [vmem:[#allocation7 + $0x38] sm:$0xff]
    %v1356 = vld [vmem:[#allocation7 + $0x40] sm:$0xff]
    %v1357 = vld [vmem:[#allocation7 + $0x48] sm:$0xff]
    %v1358 = vld [vmem:[#allocation7 + $0x50] sm:$0xff]
    %v1359 = vld [vmem:[#allocation7 + $0x58] sm:$0xff]
    %v1360 = vld [vmem:[#allocation7 + $0x60] sm:$0xff]
    %v1361 = vld [vmem:[#allocation7 + $0x68] sm:$0xff]
    %v1362 = vld [vmem:[#allocation7 + $0x70] sm:$0xff]
    %v1363 = vld [vmem:[#allocation7 + $0x78] sm:$0xff]
    %v1364 = vld [vmem:[#allocation7 + $0x80] sm:$0xff]
    %v1365 = vld [vmem:[#allocation7 + $0x88] sm:$0xff]
    %v1366 = vld [vmem:[#allocation7 + $0x90] sm:$0xff]
    %v1367 = vld [vmem:[#allocation7 + $0x98] sm:$0xff]
    %v1368 = vld [vmem:[#allocation7 + $0xa0] sm:$0xff]
    %v1369 = vld [vmem:[#allocation7 + $0xa8] sm:$0xff]
    %v1370 = vld [vmem:[#allocation7 + $0xb0] sm:$0xff]
    %v1371 = vld [vmem:[#allocation7 + $0xb8] sm:$0xff]
    %v1372 = vld [vmem:[#allocation7 + $0xc0] sm:$0xff]
    %v1373 = vld [vmem:[#allocation7 + $0xc8] sm:$0xff]
    %v1374 = vld [vmem:[#allocation7 + $0xd0] sm:$0xff]
    %v1375 = vld [vmem:[#allocation7 + $0xd8] sm:$0xff]
    %v1376 = vld [vmem:[#allocation7 + $0xe0] sm:$0xff]
    %v1377 = vld [vmem:[#allocation7 + $0xe8] sm:$0xff]
    %v1378 = vld [vmem:[#allocation7 + $0xf0] sm:$0xff]
    %v1379 = vld [vmem:[#allocation7 + $0xf8] sm:$0xff]
    %v1380 = vld [vmem:[#allocation7 + $0x100] sm:$0xff]
    %v1381 = vld [vmem:[#allocation7 + $0x108] sm:$0xff]
    %v1382 = vld [vmem:[#allocation7 + $0x110] sm:$0xff]
    %v1383 = vld [vmem:[#allocation7 + $0x118] sm:$0xff]
    %v1384 = vld [vmem:[#allocation7 + $0x120] sm:$0xff]
    %v1385 = vld [vmem:[#allocation7 + $0x128] sm:$0xff]
    %v1386 = vld [vmem:[#allocation7 + $0x130] sm:$0xff]
    %v1387 = vld [vmem:[#allocation7 + $0x138] sm:$0xff]
    %v1388 = vld [vmem:[#allocation7 + $0x140] sm:$0xff]
    %v1389 = vld [vmem:[#allocation7 + $0x148] sm:$0xff]
    %v1390 = vld [vmem:[#allocation7 + $0x150] sm:$0xff]
    %v1391 = vld [vmem:[#allocation7 + $0x158] sm:$0xff]
    %v1392 = vld [vmem:[#allocation7 + $0x160] sm:$0xff]
    %v1393 = vld [vmem:[#allocation7 + $0x168] sm:$0xff]
    %v1394 = vld [vmem:[#allocation7 + $0x170] sm:$0xff]
    %v1395 = vld [vmem:[#allocation7 + $0x178] sm:$0xff]
    %v1396 = vmul.f32 %v1162, %v1342
    %v1397 = vadd.f32 %v1396, %v1344
    %v1398 = vmax.f32 %v1397, 0.0
    %v1399 = vpack.c.bf16 %v1398, %v1398
    %s1400 = scalar_lea.vmem [#allocation7], 384
    %v1401 = vld [vmem:[%s1400] sm:$0xff]
    %v1402 = vld [vmem:[%s1400 + $0x8] sm:$0xff]
    %v1403 = vld [vmem:[%s1400 + $0x10] sm:$0xff]
    %v1404 = vld [vmem:[%s1400 + $0x18] sm:$0xff]
    %v1405 = vld [vmem:[%s1400 + $0x20] sm:$0xff]
    %v1406 = vld [vmem:[%s1400 + $0x28] sm:$0xff]
    %v1407 = vld [vmem:[%s1400 + $0x30] sm:$0xff]
    %v1408 = vld [vmem:[%s1400 + $0x38] sm:$0xff]
    %v1409 = vld [vmem:[%s1400 + $0x40] sm:$0xff]
    %v1410 = vld [vmem:[%s1400 + $0x48] sm:$0xff]
    %v1411 = vld [vmem:[%s1400 + $0x50] sm:$0xff]
    %v1412 = vld [vmem:[%s1400 + $0x58] sm:$0xff]
    %v1413 = vld [vmem:[%s1400 + $0x60] sm:$0xff]
    %v1414 = vld [vmem:[%s1400 + $0x68] sm:$0xff]
    %v1415 = vld [vmem:[%s1400 + $0x70] sm:$0xff]
    %v1416 = vld [vmem:[%s1400 + $0x78] sm:$0xff]
    %v1417 = vld [vmem:[%s1400 + $0x80] sm:$0xff]
    %v1418 = vld [vmem:[%s1400 + $0x88] sm:$0xff]
    %v1419 = vld [vmem:[%s1400 + $0x90] sm:$0xff]
    %v1420 = vld [vmem:[%s1400 + $0x98] sm:$0xff]
    %v1421 = vld [vmem:[%s1400 + $0xa0] sm:$0xff]
    %v1422 = vld [vmem:[%s1400 + $0xa8] sm:$0xff]
    %v1423 = vld [vmem:[%s1400 + $0xb0] sm:$0xff]
    %v1424 = vld [vmem:[%s1400 + $0xb8] sm:$0xff]
    %v1425 = vld [vmem:[%s1400 + $0xc0] sm:$0xff]
    %v1426 = vld [vmem:[%s1400 + $0xc8] sm:$0xff]
    %v1427 = vld [vmem:[%s1400 + $0xd0] sm:$0xff]
    %v1428 = vld [vmem:[%s1400 + $0xd8] sm:$0xff]
    %v1429 = vld [vmem:[%s1400 + $0xe0] sm:$0xff]
    %v1430 = vld [vmem:[%s1400 + $0xe8] sm:$0xff]
    %v1431 = vld [vmem:[%s1400 + $0xf0] sm:$0xff]
    %v1432 = vld [vmem:[%s1400 + $0xf8] sm:$0xff]
    %v1433 = vld [vmem:[%s1400 + $0x100] sm:$0xff]
    %v1434 = vld [vmem:[%s1400 + $0x108] sm:$0xff]
    %v1435 = vld [vmem:[%s1400 + $0x110] sm:$0xff]
    %v1436 = vld [vmem:[%s1400 + $0x118] sm:$0xff]
    %v1437 = vld [vmem:[%s1400 + $0x120] sm:$0xff]
    %v1438 = vld [vmem:[%s1400 + $0x128] sm:$0xff]
    %v1439 = vld [vmem:[%s1400 + $0x130] sm:$0xff]
    %v1440 = vld [vmem:[%s1400 + $0x138] sm:$0xff]
    %v1441 = vld [vmem:[%s1400 + $0x140] sm:$0xff]
    %v1442 = vld [vmem:[%s1400 + $0x148] sm:$0xff]
    %v1443 = vld [vmem:[%s1400 + $0x150] sm:$0xff]
    %v1444 = vld [vmem:[%s1400 + $0x158] sm:$0xff]
    %v1445 = vld [vmem:[%s1400 + $0x160] sm:$0xff]
    %v1446 = vld [vmem:[%s1400 + $0x168] sm:$0xff]
    %v1447 = vld [vmem:[%s1400 + $0x170] sm:$0xff]
    %v1448 = vld [vmem:[%s1400 + $0x178] sm:$0xff]
    %v1497 = vunpack.c.l.b16 %v1401
    %v1498 = vunpack.c.h.b16 %v1401
    %v1499 = vunpack.c.l.b16 %v1402
    %v1500 = vunpack.c.h.b16 %v1402
    %v1501 = vunpack.c.l.b16 %v1403
    %v1502 = vunpack.c.h.b16 %v1403
    %v1503 = vunpack.c.l.b16 %v1404
    %v1504 = vunpack.c.h.b16 %v1404
    %v1505 = vunpack.c.l.b16 %v1405
    %v1506 = vunpack.c.h.b16 %v1405
    %v1507 = vunpack.c.l.b16 %v1406
    %v1508 = vunpack.c.h.b16 %v1406
    %v1509 = vunpack.c.l.b16 %v1407
    %v1510 = vunpack.c.h.b16 %v1407
    %v1511 = vunpack.c.l.b16 %v1408
    %v1512 = vunpack.c.h.b16 %v1408
    %v1513 = vunpack.c.l.b16 %v1409
    %v1514 = vunpack.c.h.b16 %v1409
    %v1515 = vunpack.c.l.b16 %v1410
    %v1516 = vunpack.c.h.b16 %v1410
    %v1517 = vunpack.c.l.b16 %v1411
    %v1518 = vunpack.c.h.b16 %v1411
    %v1519 = vunpack.c.l.b16 %v1412
    %v1520 = vunpack.c.h.b16 %v1412
    %v1521 = vunpack.c.l.b16 %v1413
    %v1522 = vunpack.c.h.b16 %v1413
    %v1523 = vunpack.c.l.b16 %v1414
    %v1524 = vunpack.c.h.b16 %v1414
    %v1525 = vunpack.c.l.b16 %v1415
    %v1526 = vunpack.c.h.b16 %v1415
    %v1527 = vunpack.c.l.b16 %v1416
    %v1528 = vunpack.c.h.b16 %v1416
    %v1529 = vunpack.c.l.b16 %v1417
    %v1530 = vunpack.c.h.b16 %v1417
    %v1531 = vunpack.c.l.b16 %v1418
    %v1532 = vunpack.c.h.b16 %v1418
    %v1533 = vunpack.c.l.b16 %v1419
    %v1534 = vunpack.c.h.b16 %v1419
    %v1535 = vunpack.c.l.b16 %v1420
    %v1536 = vunpack.c.h.b16 %v1420
    %v1537 = vunpack.c.l.b16 %v1421
    %v1538 = vunpack.c.h.b16 %v1421
    %v1539 = vunpack.c.l.b16 %v1422
    %v1540 = vunpack.c.h.b16 %v1422
    %v1541 = vunpack.c.l.b16 %v1423
    %v1542 = vunpack.c.h.b16 %v1423
    %v1543 = vunpack.c.l.b16 %v1424
    %v1544 = vunpack.c.h.b16 %v1424
    %v1545 = vunpack.c.l.b16 %v1425
    %v1546 = vunpack.c.h.b16 %v1425
    %v1547 = vunpack.c.l.b16 %v1426
    %v1548 = vunpack.c.h.b16 %v1426
    %v1549 = vunpack.c.l.b16 %v1427
    %v1550 = vunpack.c.h.b16 %v1427
    %v1551 = vunpack.c.l.b16 %v1428
    %v1552 = vunpack.c.h.b16 %v1428
    %v1553 = vunpack.c.l.b16 %v1429
    %v1554 = vunpack.c.h.b16 %v1429
    %v1555 = vunpack.c.l.b16 %v1430
    %v1556 = vunpack.c.h.b16 %v1430
    %v1557 = vunpack.c.l.b16 %v1431
    %v1558 = vunpack.c.h.b16 %v1431
    %v1559 = vunpack.c.l.b16 %v1432
    %v1560 = vunpack.c.h.b16 %v1432
    %v1561 = vunpack.c.l.b16 %v1433
    %v1562 = vunpack.c.h.b16 %v1433
    %v1563 = vunpack.c.l.b16 %v1434
    %v1564 = vunpack.c.h.b16 %v1434
    %v1565 = vunpack.c.l.b16 %v1435
    %v1566 = vunpack.c.h.b16 %v1435
    %v1567 = vunpack.c.l.b16 %v1436
    %v1568 = vunpack.c.h.b16 %v1436
    %v1569 = vunpack.c.l.b16 %v1437
    %v1570 = vunpack.c.h.b16 %v1437
    %v1571 = vunpack.c.l.b16 %v1438
    %v1572 = vunpack.c.h.b16 %v1438
    %v1573 = vunpack.c.l.b16 %v1439
    %v1574 = vunpack.c.h.b16 %v1439
    %v1575 = vunpack.c.l.b16 %v1440
    %v1576 = vunpack.c.h.b16 %v1440
    %v1577 = vunpack.c.l.b16 %v1441
    %v1578 = vunpack.c.h.b16 %v1441
    %v1579 = vunpack.c.l.b16 %v1442
    %v1580 = vunpack.c.h.b16 %v1442
    %v1581 = vunpack.c.l.b16 %v1443
    %v1582 = vunpack.c.h.b16 %v1443
    %v1583 = vunpack.c.l.b16 %v1444
    %v1584 = vunpack.c.h.b16 %v1444
    %v1585 = vunpack.c.l.b16 %v1445
    %v1586 = vunpack.c.h.b16 %v1445
    %v1587 = vunpack.c.l.b16 %v1446
    %v1588 = vunpack.c.h.b16 %v1446
    %v1589 = vunpack.c.l.b16 %v1447
    %v1590 = vunpack.c.h.b16 %v1447
    %v1591 = vunpack.c.l.b16 %v1448
    %v1592 = vunpack.c.h.b16 %v1448
    %v1593 = vpack.c.b16 %v1503, %v1497
    %v1594 = vpack.c.b16 %v1504, %v1498
    %v1595 = vpack.c.b16 %v1505, %v1499
    %v1596 = vpack.c.b16 %v1506, %v1500
    %v1597 = vpack.c.b16 %v1507, %v1501
    %v1598 = vpack.c.b16 %v1508, %v1502
    %v1599 = vpack.c.b16 %v1515, %v1509
    %v1600 = vpack.c.b16 %v1516, %v1510
    %v1601 = vpack.c.b16 %v1517, %v1511
    %v1602 = vpack.c.b16 %v1518, %v1512
    %v1603 = vpack.c.b16 %v1519, %v1513
    %v1604 = vpack.c.b16 %v1520, %v1514
    %v1605 = vpack.c.b16 %v1527, %v1521
    %v1606 = vpack.c.b16 %v1528, %v1522
    %v1607 = vpack.c.b16 %v1529, %v1523
    %v1608 = vpack.c.b16 %v1530, %v1524
    %v1609 = vpack.c.b16 %v1531, %v1525
    %v1610 = vpack.c.b16 %v1532, %v1526
    %v1611 = vpack.c.b16 %v1539, %v1533
    %v1612 = vpack.c.b16 %v1540, %v1534
    %v1613 = vpack.c.b16 %v1541, %v1535
    %v1614 = vpack.c.b16 %v1542, %v1536
    %v1615 = vpack.c.b16 %v1543, %v1537
    %v1616 = vpack.c.b16 %v1544, %v1538
    %v1617 = vpack.c.b16 %v1551, %v1545
    %v1618 = vpack.c.b16 %v1552, %v1546
    %v1619 = vpack.c.b16 %v1553, %v1547
    %v1620 = vpack.c.b16 %v1554, %v1548
    %v1621 = vpack.c.b16 %v1555, %v1549
    %v1622 = vpack.c.b16 %v1556, %v1550
    %v1623 = vpack.c.b16 %v1563, %v1557
    %v1624 = vpack.c.b16 %v1564, %v1558
    %v1625 = vpack.c.b16 %v1565, %v1559
    %v1626 = vpack.c.b16 %v1566, %v1560
    %v1627 = vpack.c.b16 %v1567, %v1561
    %v1628 = vpack.c.b16 %v1568, %v1562
    %v1629 = vpack.c.b16 %v1575, %v1569
    %v1630 = vpack.c.b16 %v1576, %v1570
    %v1631 = vpack.c.b16 %v1577, %v1571
    %v1632 = vpack.c.b16 %v1578, %v1572
    %v1633 = vpack.c.b16 %v1579, %v1573
    %v1634 = vpack.c.b16 %v1580, %v1574
    %v1635 = vpack.c.b16 %v1587, %v1581
    %v1636 = vpack.c.b16 %v1588, %v1582
    %v1637 = vpack.c.b16 %v1589, %v1583
    %v1638 = vpack.c.b16 %v1590, %v1584
    %v1639 = vpack.c.b16 %v1591, %v1585
    %v1640 = vpack.c.b16 %v1592, %v1586
    %1689 = vmatpush.bf16.msra.mxu0 %v1635
    %1690 = vmatpush.bf16.msra.mxu0 %v1629
    %1691 = vmatpush.bf16.msra.mxu0 %v1623
    %1692 = vmatpush.bf16.msra.mxu0 %v1617
    %1693 = vmatpush.bf16.msra.mxu0 %v1611
    %1694 = vmatpush.bf16.msra.mxu0 %v1605
    %1695 = vmatpush.bf16.msra.mxu0 %v1599
    %1696 = vmatpush.bf16.msra.mxu0 %v1593
    %1697 = vmatmul.bf16.gmra.mxu0 %v1399
    %v1698 = vpop.f32.mrf.mxu0
    %v1699 = vadd.f32 0.0, %v1698
    %v1700 = vpop.f32.mrf.mxu0
    %1701 = vdwg.mxu0
    %1702 = vmatpush.bf16.msra.mxu0 %v1636
    %1703 = vmatpush.bf16.msra.mxu0 %v1630
    %1704 = vmatpush.bf16.msra.mxu0 %v1624
    %1705 = vmatpush.bf16.msra.mxu0 %v1618
    %1706 = vmatpush.bf16.msra.mxu0 %v1612
    %1707 = vmatpush.bf16.msra.mxu0 %v1606
    %1708 = vmatpush.bf16.msra.mxu0 %v1600
    %1709 = vmatpush.bf16.msra.mxu0 %v1594
    %1710 = vmatmul.bf16.gmra.mxu0 %v1399
    %v1711 = vpop.f32.mrf.mxu0
    %v1712 = vadd.f32 0.0, %v1711
    %v1713 = vpop.f32.mrf.mxu0
    %1714 = vdwg.mxu0
    %1715 = vmatpush.bf16.msra.mxu0 %v1637
    %1716 = vmatpush.bf16.msra.mxu0 %v1631
    %1717 = vmatpush.bf16.msra.mxu0 %v1625
    %1718 = vmatpush.bf16.msra.mxu0 %v1619
    %1719 = vmatpush.bf16.msra.mxu0 %v1613
    %1720 = vmatpush.bf16.msra.mxu0 %v1607
    %1721 = vmatpush.bf16.msra.mxu0 %v1601
    %1722 = vmatpush.bf16.msra.mxu0 %v1595
    %1723 = vmatmul.bf16.gmra.mxu0 %v1399
    %v1724 = vpop.f32.mrf.mxu0
    %v1725 = vadd.f32 0.0, %v1724
    %v1726 = vpop.f32.mrf.mxu0
    %1727 = vdwg.mxu0
    %1728 = vmatpush.bf16.msra.mxu0 %v1638
    %1729 = vmatpush.bf16.msra.mxu0 %v1632
    %1730 = vmatpush.bf16.msra.mxu0 %v1626
    %1731 = vmatpush.bf16.msra.mxu0 %v1620
    %1732 = vmatpush.bf16.msra.mxu0 %v1614
    %1733 = vmatpush.bf16.msra.mxu0 %v1608
    %1734 = vmatpush.bf16.msra.mxu0 %v1602
    %1735 = vmatpush.bf16.msra.mxu0 %v1596
    %1736 = vmatmul.bf16.gmra.mxu0 %v1399
    %v1737 = vpop.f32.mrf.mxu0
    %v1738 = vadd.f32 0.0, %v1737
    %v1739 = vpop.f32.mrf.mxu0
    %1740 = vdwg.mxu0
    %1741 = vmatpush.bf16.msra.mxu0 %v1639
    %1742 = vmatpush.bf16.msra.mxu0 %v1633
    %1743 = vmatpush.bf16.msra.mxu0 %v1627
    %1744 = vmatpush.bf16.msra.mxu0 %v1621
    %1745 = vmatpush.bf16.msra.mxu0 %v1615
    %1746 = vmatpush.bf16.msra.mxu0 %v1609
    %1747 = vmatpush.bf16.msra.mxu0 %v1603
    %1748 = vmatpush.bf16.msra.mxu0 %v1597
    %1749 = vmatmul.bf16.gmra.mxu0 %v1399
    %v1750 = vpop.f32.mrf.mxu0
    %v1751 = vadd.f32 0.0, %v1750
    %v1752 = vpop.f32.mrf.mxu0
    %1753 = vdwg.mxu0
    %1754 = vmatpush.bf16.msra.mxu0 %v1640
    %1755 = vmatpush.bf16.msra.mxu0 %v1634
    %1756 = vmatpush.bf16.msra.mxu0 %v1628
    %1757 = vmatpush.bf16.msra.mxu0 %v1622
    %1758 = vmatpush.bf16.msra.mxu0 %v1616
    %1759 = vmatpush.bf16.msra.mxu0 %v1610
    %1760 = vmatpush.bf16.msra.mxu0 %v1604
    %1761 = vmatpush.bf16.msra.mxu0 %v1598
    %1762 = vmatmul.bf16.gmra.mxu0 %v1399
    %v1763 = vpop.f32.mrf.mxu0
    %v1764 = vadd.f32 0.0, %v1763
    %v1765 = vpop.f32.mrf.mxu0
    %1766 = vdwg.mxu0
    %v1815 = vunpack.c.l.b16 %v1348
    %v1816 = vunpack.c.h.b16 %v1348
    %v1817 = vunpack.c.l.b16 %v1349
    %v1818 = vunpack.c.h.b16 %v1349
    %v1819 = vunpack.c.l.b16 %v1350
    %v1820 = vunpack.c.h.b16 %v1350
    %v1821 = vunpack.c.l.b16 %v1351
    %v1822 = vunpack.c.h.b16 %v1351
    %v1823 = vunpack.c.l.b16 %v1352
    %v1824 = vunpack.c.h.b16 %v1352
    %v1825 = vunpack.c.l.b16 %v1353
    %v1826 = vunpack.c.h.b16 %v1353
    %v1827 = vunpack.c.l.b16 %v1354
    %v1828 = vunpack.c.h.b16 %v1354
    %v1829 = vunpack.c.l.b16 %v1355
    %v1830 = vunpack.c.h.b16 %v1355
    %v1831 = vunpack.c.l.b16 %v1356
    %v1832 = vunpack.c.h.b16 %v1356
    %v1833 = vunpack.c.l.b16 %v1357
    %v1834 = vunpack.c.h.b16 %v1357
    %v1835 = vunpack.c.l.b16 %v1358
    %v1836 = vunpack.c.h.b16 %v1358
    %v1837 = vunpack.c.l.b16 %v1359
    %v1838 = vunpack.c.h.b16 %v1359
    %v1839 = vunpack.c.l.b16 %v1360
    %v1840 = vunpack.c.h.b16 %v1360
    %v1841 = vunpack.c.l.b16 %v1361
    %v1842 = vunpack.c.h.b16 %v1361
    %v1843 = vunpack.c.l.b16 %v1362
    %v1844 = vunpack.c.h.b16 %v1362
    %v1845 = vunpack.c.l.b16 %v1363
    %v1846 = vunpack.c.h.b16 %v1363
    %v1847 = vunpack.c.l.b16 %v1364
    %v1848 = vunpack.c.h.b16 %v1364
    %v1849 = vunpack.c.l.b16 %v1365
    %v1850 = vunpack.c.h.b16 %v1365
    %v1851 = vunpack.c.l.b16 %v1366
    %v1852 = vunpack.c.h.b16 %v1366
    %v1853 = vunpack.c.l.b16 %v1367
    %v1854 = vunpack.c.h.b16 %v1367
    %v1855 = vunpack.c.l.b16 %v1368
    %v1856 = vunpack.c.h.b16 %v1368
    %v1857 = vunpack.c.l.b16 %v1369
    %v1858 = vunpack.c.h.b16 %v1369
    %v1859 = vunpack.c.l.b16 %v1370
    %v1860 = vunpack.c.h.b16 %v1370
    %v1861 = vunpack.c.l.b16 %v1371
    %v1862 = vunpack.c.h.b16 %v1371
    %v1863 = vunpack.c.l.b16 %v1372
    %v1864 = vunpack.c.h.b16 %v1372
    %v1865 = vunpack.c.l.b16 %v1373
    %v1866 = vunpack.c.h.b16 %v1373
    %v1867 = vunpack.c.l.b16 %v1374
    %v1868 = vunpack.c.h.b16 %v1374
    %v1869 = vunpack.c.l.b16 %v1375
    %v1870 = vunpack.c.h.b16 %v1375
    %v1871 = vunpack.c.l.b16 %v1376
    %v1872 = vunpack.c.h.b16 %v1376
    %v1873 = vunpack.c.l.b16 %v1377
    %v1874 = vunpack.c.h.b16 %v1377
    %v1875 = vunpack.c.l.b16 %v1378
    %v1876 = vunpack.c.h.b16 %v1378
    %v1877 = vunpack.c.l.b16 %v1379
    %v1878 = vunpack.c.h.b16 %v1379
    %v1879 = vunpack.c.l.b16 %v1380
    %v1880 = vunpack.c.h.b16 %v1380
    %v1881 = vunpack.c.l.b16 %v1381
    %v1882 = vunpack.c.h.b16 %v1381
    %v1883 = vunpack.c.l.b16 %v1382
    %v1884 = vunpack.c.h.b16 %v1382
    %v1885 = vunpack.c.l.b16 %v1383
    %v1886 = vunpack.c.h.b16 %v1383
    %v1887 = vunpack.c.l.b16 %v1384
    %v1888 = vunpack.c.h.b16 %v1384
    %v1889 = vunpack.c.l.b16 %v1385
    %v1890 = vunpack.c.h.b16 %v1385
    %v1891 = vunpack.c.l.b16 %v1386
    %v1892 = vunpack.c.h.b16 %v1386
    %v1893 = vunpack.c.l.b16 %v1387
    %v1894 = vunpack.c.h.b16 %v1387
    %v1895 = vunpack.c.l.b16 %v1388
    %v1896 = vunpack.c.h.b16 %v1388
    %v1897 = vunpack.c.l.b16 %v1389
    %v1898 = vunpack.c.h.b16 %v1389
    %v1899 = vunpack.c.l.b16 %v1390
    %v1900 = vunpack.c.h.b16 %v1390
    %v1901 = vunpack.c.l.b16 %v1391
    %v1902 = vunpack.c.h.b16 %v1391
    %v1903 = vunpack.c.l.b16 %v1392
    %v1904 = vunpack.c.h.b16 %v1392
    %v1905 = vunpack.c.l.b16 %v1393
    %v1906 = vunpack.c.h.b16 %v1393
    %v1907 = vunpack.c.l.b16 %v1394
    %v1908 = vunpack.c.h.b16 %v1394
    %v1909 = vunpack.c.l.b16 %v1395
    %v1910 = vunpack.c.h.b16 %v1395
    %v1911 = vpack.c.b16 %v1821, %v1815
    %v1912 = vpack.c.b16 %v1822, %v1816
    %v1913 = vpack.c.b16 %v1823, %v1817
    %v1914 = vpack.c.b16 %v1824, %v1818
    %v1915 = vpack.c.b16 %v1825, %v1819
    %v1916 = vpack.c.b16 %v1826, %v1820
    %v1917 = vpack.c.b16 %v1833, %v1827
    %v1918 = vpack.c.b16 %v1834, %v1828
    %v1919 = vpack.c.b16 %v1835, %v1829
    %v1920 = vpack.c.b16 %v1836, %v1830
    %v1921 = vpack.c.b16 %v1837, %v1831
    %v1922 = vpack.c.b16 %v1838, %v1832
    %v1923 = vpack.c.b16 %v1845, %v1839
    %v1924 = vpack.c.b16 %v1846, %v1840
    %v1925 = vpack.c.b16 %v1847, %v1841
    %v1926 = vpack.c.b16 %v1848, %v1842
    %v1927 = vpack.c.b16 %v1849, %v1843
    %v1928 = vpack.c.b16 %v1850, %v1844
    %v1929 = vpack.c.b16 %v1857, %v1851
    %v1930 = vpack.c.b16 %v1858, %v1852
    %v1931 = vpack.c.b16 %v1859, %v1853
    %v1932 = vpack.c.b16 %v1860, %v1854
    %v1933 = vpack.c.b16 %v1861, %v1855
    %v1934 = vpack.c.b16 %v1862, %v1856
    %v1935 = vpack.c.b16 %v1869, %v1863
    %v1936 = vpack.c.b16 %v1870, %v1864
    %v1937 = vpack.c.b16 %v1871, %v1865
    %v1938 = vpack.c.b16 %v1872, %v1866
    %v1939 = vpack.c.b16 %v1873, %v1867
    %v1940 = vpack.c.b16 %v1874, %v1868
    %v1941 = vpack.c.b16 %v1881, %v1875
    %v1942 = vpack.c.b16 %v1882, %v1876
    %v1943 = vpack.c.b16 %v1883, %v1877
    %v1944 = vpack.c.b16 %v1884, %v1878
    %v1945 = vpack.c.b16 %v1885, %v1879
    %v1946 = vpack.c.b16 %v1886, %v1880
    %v1947 = vpack.c.b16 %v1893, %v1887
    %v1948 = vpack.c.b16 %v1894, %v1888
    %v1949 = vpack.c.b16 %v1895, %v1889
    %v1950 = vpack.c.b16 %v1896, %v1890
    %v1951 = vpack.c.b16 %v1897, %v1891
    %v1952 = vpack.c.b16 %v1898, %v1892
    %v1953 = vpack.c.b16 %v1905, %v1899
    %v1954 = vpack.c.b16 %v1906, %v1900
    %v1955 = vpack.c.b16 %v1907, %v1901
    %v1956 = vpack.c.b16 %v1908, %v1902
    %v1957 = vpack.c.b16 %v1909, %v1903
    %v1958 = vpack.c.b16 %v1910, %v1904
    %2007 = vmatpush.bf16.msra.mxu0 %v1953
    %2008 = vmatpush.bf16.msra.mxu0 %v1947
    %2009 = vmatpush.bf16.msra.mxu0 %v1941
    %2010 = vmatpush.bf16.msra.mxu0 %v1935
    %2011 = vmatpush.bf16.msra.mxu0 %v1929
    %2012 = vmatpush.bf16.msra.mxu0 %v1923
    %2013 = vmatpush.bf16.msra.mxu0 %v1917
    %2014 = vmatpush.bf16.msra.mxu0 %v1911
    %2015 = vmatmul.bf16.gmra.mxu0 %v1347
    %v2016 = vpop.f32.mrf.mxu0
    %v2017 = vadd.f32 %v1699, %v2016
    %v2018 = vpop.f32.mrf.mxu0
    %2019 = vdwg.mxu0
    %2020 = vmatpush.bf16.msra.mxu0 %v1954
    %2021 = vmatpush.bf16.msra.mxu0 %v1948
    %2022 = vmatpush.bf16.msra.mxu0 %v1942
    %2023 = vmatpush.bf16.msra.mxu0 %v1936
    %2024 = vmatpush.bf16.msra.mxu0 %v1930
    %2025 = vmatpush.bf16.msra.mxu0 %v1924
    %2026 = vmatpush.bf16.msra.mxu0 %v1918
    %2027 = vmatpush.bf16.msra.mxu0 %v1912
    %2028 = vmatmul.bf16.gmra.mxu0 %v1347
    %v2029 = vpop.f32.mrf.mxu0
    %v2030 = vadd.f32 %v1712, %v2029
    %v2031 = vpop.f32.mrf.mxu0
    %2032 = vdwg.mxu0
    %2033 = vmatpush.bf16.msra.mxu0 %v1955
    %2034 = vmatpush.bf16.msra.mxu0 %v1949
    %2035 = vmatpush.bf16.msra.mxu0 %v1943
    %2036 = vmatpush.bf16.msra.mxu0 %v1937
    %2037 = vmatpush.bf16.msra.mxu0 %v1931
    %2038 = vmatpush.bf16.msra.mxu0 %v1925
    %2039 = vmatpush.bf16.msra.mxu0 %v1919
    %2040 = vmatpush.bf16.msra.mxu0 %v1913
    %2041 = vmatmul.bf16.gmra.mxu0 %v1347
    %v2042 = vpop.f32.mrf.mxu0
    %v2043 = vadd.f32 %v1725, %v2042
    %v2044 = vpop.f32.mrf.mxu0
    %2045 = vdwg.mxu0
    %2046 = vmatpush.bf16.msra.mxu0 %v1956
    %2047 = vmatpush.bf16.msra.mxu0 %v1950
    %2048 = vmatpush.bf16.msra.mxu0 %v1944
    %2049 = vmatpush.bf16.msra.mxu0 %v1938
    %2050 = vmatpush.bf16.msra.mxu0 %v1932
    %2051 = vmatpush.bf16.msra.mxu0 %v1926
    %2052 = vmatpush.bf16.msra.mxu0 %v1920
    %2053 = vmatpush.bf16.msra.mxu0 %v1914
    %2054 = vmatmul.bf16.gmra.mxu0 %v1347
    %v2055 = vpop.f32.mrf.mxu0
    %v2056 = vadd.f32 %v1738, %v2055
    %v2057 = vpop.f32.mrf.mxu0
    %2058 = vdwg.mxu0
    %2059 = vmatpush.bf16.msra.mxu0 %v1957
    %2060 = vmatpush.bf16.msra.mxu0 %v1951
    %2061 = vmatpush.bf16.msra.mxu0 %v1945
    %2062 = vmatpush.bf16.msra.mxu0 %v1939
    %2063 = vmatpush.bf16.msra.mxu0 %v1933
    %2064 = vmatpush.bf16.msra.mxu0 %v1927
    %2065 = vmatpush.bf16.msra.mxu0 %v1921
    %2066 = vmatpush.bf16.msra.mxu0 %v1915
    %2067 = vmatmul.bf16.gmra.mxu0 %v1347
    %v2068 = vpop.f32.mrf.mxu0
    %v2069 = vadd.f32 %v1751, %v2068
    %v2070 = vpop.f32.mrf.mxu0
    %2071 = vdwg.mxu0
    %2072 = vmatpush.bf16.msra.mxu0 %v1958
    %2073 = vmatpush.bf16.msra.mxu0 %v1952
    %2074 = vmatpush.bf16.msra.mxu0 %v1946
    %2075 = vmatpush.bf16.msra.mxu0 %v1940
    %2076 = vmatpush.bf16.msra.mxu0 %v1934
    %2077 = vmatpush.bf16.msra.mxu0 %v1928
    %2078 = vmatpush.bf16.msra.mxu0 %v1922
    %2079 = vmatpush.bf16.msra.mxu0 %v1916
    %2080 = vmatmul.bf16.gmra.mxu0 %v1347
    %v2081 = vpop.f32.mrf.mxu0
    %v2082 = vadd.f32 %v1764, %v2081
    %v2083 = vpop.f32.mrf.mxu0
    %2084 = vdwg.mxu0
    %v2085 = vmul.f32 %v1210, %v1342
    %v2086 = vadd.f32 %v2085, %v1344
    %v2087 = vmax.f32 %v2086, 0.0
    %v2088 = vpack.c.bf16 %v2087, %v2087
    %s2089 = scalar_lea.vmem [#allocation7], 768
    %v2090 = vld [vmem:[%s2089] sm:$0xff]
    %v2091 = vld [vmem:[%s2089 + $0x8] sm:$0xff]
    %v2092 = vld [vmem:[%s2089 + $0x10] sm:$0xff]
    %v2093 = vld [vmem:[%s2089 + $0x18] sm:$0xff]
    %v2094 = vld [vmem:[%s2089 + $0x20] sm:$0xff]
    %v2095 = vld [vmem:[%s2089 + $0x28] sm:$0xff]
    %v2096 = vld [vmem:[%s2089 + $0x30] sm:$0xff]
    %v2097 = vld [vmem:[%s2089 + $0x38] sm:$0xff]
    %v2098 = vld [vmem:[%s2089 + $0x40] sm:$0xff]
    %v2099 = vld [vmem:[%s2089 + $0x48] sm:$0xff]
    %v2100 = vld [vmem:[%s2089 + $0x50] sm:$0xff]
    %v2101 = vld [vmem:[%s2089 + $0x58] sm:$0xff]
    %v2102 = vld [vmem:[%s2089 + $0x60] sm:$0xff]
    %v2103 = vld [vmem:[%s2089 + $0x68] sm:$0xff]
    %v2104 = vld [vmem:[%s2089 + $0x70] sm:$0xff]
    %v2105 = vld [vmem:[%s2089 + $0x78] sm:$0xff]
    %v2106 = vld [vmem:[%s2089 + $0x80] sm:$0xff]
    %v2107 = vld [vmem:[%s2089 + $0x88] sm:$0xff]
    %v2108 = vld [vmem:[%s2089 + $0x90] sm:$0xff]
    %v2109 = vld [vmem:[%s2089 + $0x98] sm:$0xff]
    %v2110 = vld [vmem:[%s2089 + $0xa0] sm:$0xff]
    %v2111 = vld [vmem:[%s2089 + $0xa8] sm:$0xff]
    %v2112 = vld [vmem:[%s2089 + $0xb0] sm:$0xff]
    %v2113 = vld [vmem:[%s2089 + $0xb8] sm:$0xff]
    %v2114 = vld [vmem:[%s2089 + $0xc0] sm:$0xff]
    %v2115 = vld [vmem:[%s2089 + $0xc8] sm:$0xff]
    %v2116 = vld [vmem:[%s2089 + $0xd0] sm:$0xff]
    %v2117 = vld [vmem:[%s2089 + $0xd8] sm:$0xff]
    %v2118 = vld [vmem:[%s2089 + $0xe0] sm:$0xff]
    %v2119 = vld [vmem:[%s2089 + $0xe8] sm:$0xff]
    %v2120 = vld [vmem:[%s2089 + $0xf0] sm:$0xff]
    %v2121 = vld [vmem:[%s2089 + $0xf8] sm:$0xff]
    %v2122 = vld [vmem:[%s2089 + $0x100] sm:$0xff]
    %v2123 = vld [vmem:[%s2089 + $0x108] sm:$0xff]
    %v2124 = vld [vmem:[%s2089 + $0x110] sm:$0xff]
    %v2125 = vld [vmem:[%s2089 + $0x118] sm:$0xff]
    %v2126 = vld [vmem:[%s2089 + $0x120] sm:$0xff]
    %v2127 = vld [vmem:[%s2089 + $0x128] sm:$0xff]
    %v2128 = vld [vmem:[%s2089 + $0x130] sm:$0xff]
    %v2129 = vld [vmem:[%s2089 + $0x138] sm:$0xff]
    %v2130 = vld [vmem:[%s2089 + $0x140] sm:$0xff]
    %v2131 = vld [vmem:[%s2089 + $0x148] sm:$0xff]
    %v2132 = vld [vmem:[%s2089 + $0x150] sm:$0xff]
    %v2133 = vld [vmem:[%s2089 + $0x158] sm:$0xff]
    %v2134 = vld [vmem:[%s2089 + $0x160] sm:$0xff]
    %v2135 = vld [vmem:[%s2089 + $0x168] sm:$0xff]
    %v2136 = vld [vmem:[%s2089 + $0x170] sm:$0xff]
    %v2137 = vld [vmem:[%s2089 + $0x178] sm:$0xff]
    %v2186 = vunpack.c.l.b16 %v2090
    %v2187 = vunpack.c.h.b16 %v2090
    %v2188 = vunpack.c.l.b16 %v2091
    %v2189 = vunpack.c.h.b16 %v2091
    %v2190 = vunpack.c.l.b16 %v2092
    %v2191 = vunpack.c.h.b16 %v2092
    %v2192 = vunpack.c.l.b16 %v2093
    %v2193 = vunpack.c.h.b16 %v2093
    %v2194 = vunpack.c.l.b16 %v2094
    %v2195 = vunpack.c.h.b16 %v2094
    %v2196 = vunpack.c.l.b16 %v2095
    %v2197 = vunpack.c.h.b16 %v2095
    %v2198 = vunpack.c.l.b16 %v2096
    %v2199 = vunpack.c.h.b16 %v2096
    %v2200 = vunpack.c.l.b16 %v2097
    %v2201 = vunpack.c.h.b16 %v2097
    %v2202 = vunpack.c.l.b16 %v2098
    %v2203 = vunpack.c.h.b16 %v2098
    %v2204 = vunpack.c.l.b16 %v2099
    %v2205 = vunpack.c.h.b16 %v2099
    %v2206 = vunpack.c.l.b16 %v2100
    %v2207 = vunpack.c.h.b16 %v2100
    %v2208 = vunpack.c.l.b16 %v2101
    %v2209 = vunpack.c.h.b16 %v2101
    %v2210 = vunpack.c.l.b16 %v2102
    %v2211 = vunpack.c.h.b16 %v2102
    %v2212 = vunpack.c.l.b16 %v2103
    %v2213 = vunpack.c.h.b16 %v2103
    %v2214 = vunpack.c.l.b16 %v2104
    %v2215 = vunpack.c.h.b16 %v2104
    %v2216 = vunpack.c.l.b16 %v2105
    %v2217 = vunpack.c.h.b16 %v2105
    %v2218 = vunpack.c.l.b16 %v2106
    %v2219 = vunpack.c.h.b16 %v2106
    %v2220 = vunpack.c.l.b16 %v2107
    %v2221 = vunpack.c.h.b16 %v2107
    %v2222 = vunpack.c.l.b16 %v2108
    %v2223 = vunpack.c.h.b16 %v2108
    %v2224 = vunpack.c.l.b16 %v2109
    %v2225 = vunpack.c.h.b16 %v2109
    %v2226 = vunpack.c.l.b16 %v2110
    %v2227 = vunpack.c.h.b16 %v2110
    %v2228 = vunpack.c.l.b16 %v2111
    %v2229 = vunpack.c.h.b16 %v2111
    %v2230 = vunpack.c.l.b16 %v2112
    %v2231 = vunpack.c.h.b16 %v2112
    %v2232 = vunpack.c.l.b16 %v2113
    %v2233 = vunpack.c.h.b16 %v2113
    %v2234 = vunpack.c.l.b16 %v2114
    %v2235 = vunpack.c.h.b16 %v2114
    %v2236 = vunpack.c.l.b16 %v2115
    %v2237 = vunpack.c.h.b16 %v2115
    %v2238 = vunpack.c.l.b16 %v2116
    %v2239 = vunpack.c.h.b16 %v2116
    %v2240 = vunpack.c.l.b16 %v2117
    %v2241 = vunpack.c.h.b16 %v2117
    %v2242 = vunpack.c.l.b16 %v2118
    %v2243 = vunpack.c.h.b16 %v2118
    %v2244 = vunpack.c.l.b16 %v2119
    %v2245 = vunpack.c.h.b16 %v2119
    %v2246 = vunpack.c.l.b16 %v2120
    %v2247 = vunpack.c.h.b16 %v2120
    %v2248 = vunpack.c.l.b16 %v2121
    %v2249 = vunpack.c.h.b16 %v2121
    %v2250 = vunpack.c.l.b16 %v2122
    %v2251 = vunpack.c.h.b16 %v2122
    %v2252 = vunpack.c.l.b16 %v2123
    %v2253 = vunpack.c.h.b16 %v2123
    %v2254 = vunpack.c.l.b16 %v2124
    %v2255 = vunpack.c.h.b16 %v2124
    %v2256 = vunpack.c.l.b16 %v2125
    %v2257 = vunpack.c.h.b16 %v2125
    %v2258 = vunpack.c.l.b16 %v2126
    %v2259 = vunpack.c.h.b16 %v2126
    %v2260 = vunpack.c.l.b16 %v2127
    %v2261 = vunpack.c.h.b16 %v2127
    %v2262 = vunpack.c.l.b16 %v2128
    %v2263 = vunpack.c.h.b16 %v2128
    %v2264 = vunpack.c.l.b16 %v2129
    %v2265 = vunpack.c.h.b16 %v2129
    %v2266 = vunpack.c.l.b16 %v2130
    %v2267 = vunpack.c.h.b16 %v2130
    %v2268 = vunpack.c.l.b16 %v2131
    %v2269 = vunpack.c.h.b16 %v2131
    %v2270 = vunpack.c.l.b16 %v2132
    %v2271 = vunpack.c.h.b16 %v2132
    %v2272 = vunpack.c.l.b16 %v2133
    %v2273 = vunpack.c.h.b16 %v2133
    %v2274 = vunpack.c.l.b16 %v2134
    %v2275 = vunpack.c.h.b16 %v2134
    %v2276 = vunpack.c.l.b16 %v2135
    %v2277 = vunpack.c.h.b16 %v2135
    %v2278 = vunpack.c.l.b16 %v2136
    %v2279 = vunpack.c.h.b16 %v2136
    %v2280 = vunpack.c.l.b16 %v2137
    %v2281 = vunpack.c.h.b16 %v2137
    %v2282 = vpack.c.b16 %v2192, %v2186
    %v2283 = vpack.c.b16 %v2193, %v2187
    %v2284 = vpack.c.b16 %v2194, %v2188
    %v2285 = vpack.c.b16 %v2195, %v2189
    %v2286 = vpack.c.b16 %v2196, %v2190
    %v2287 = vpack.c.b16 %v2197, %v2191
    %v2288 = vpack.c.b16 %v2204, %v2198
    %v2289 = vpack.c.b16 %v2205, %v2199
    %v2290 = vpack.c.b16 %v2206, %v2200
    %v2291 = vpack.c.b16 %v2207, %v2201
    %v2292 = vpack.c.b16 %v2208, %v2202
    %v2293 = vpack.c.b16 %v2209, %v2203
    %v2294 = vpack.c.b16 %v2216, %v2210
    %v2295 = vpack.c.b16 %v2217, %v2211
    %v2296 = vpack.c.b16 %v2218, %v2212
    %v2297 = vpack.c.b16 %v2219, %v2213
    %v2298 = vpack.c.b16 %v2220, %v2214
    %v2299 = vpack.c.b16 %v2221, %v2215
    %v2300 = vpack.c.b16 %v2228, %v2222
    %v2301 = vpack.c.b16 %v2229, %v2223
    %v2302 = vpack.c.b16 %v2230, %v2224
    %v2303 = vpack.c.b16 %v2231, %v2225
    %v2304 = vpack.c.b16 %v2232, %v2226
    %v2305 = vpack.c.b16 %v2233, %v2227
    %v2306 = vpack.c.b16 %v2240, %v2234
    %v2307 = vpack.c.b16 %v2241, %v2235
    %v2308 = vpack.c.b16 %v2242, %v2236
    %v2309 = vpack.c.b16 %v2243, %v2237
    %v2310 = vpack.c.b16 %v2244, %v2238
    %v2311 = vpack.c.b16 %v2245, %v2239
    %v2312 = vpack.c.b16 %v2252, %v2246
    %v2313 = vpack.c.b16 %v2253, %v2247
    %v2314 = vpack.c.b16 %v2254, %v2248
    %v2315 = vpack.c.b16 %v2255, %v2249
    %v2316 = vpack.c.b16 %v2256, %v2250
    %v2317 = vpack.c.b16 %v2257, %v2251
    %v2318 = vpack.c.b16 %v2264, %v2258
    %v2319 = vpack.c.b16 %v2265, %v2259
    %v2320 = vpack.c.b16 %v2266, %v2260
    %v2321 = vpack.c.b16 %v2267, %v2261
    %v2322 = vpack.c.b16 %v2268, %v2262
    %v2323 = vpack.c.b16 %v2269, %v2263
    %v2324 = vpack.c.b16 %v2276, %v2270
    %v2325 = vpack.c.b16 %v2277, %v2271
    %v2326 = vpack.c.b16 %v2278, %v2272
    %v2327 = vpack.c.b16 %v2279, %v2273
    %v2328 = vpack.c.b16 %v2280, %v2274
    %v2329 = vpack.c.b16 %v2281, %v2275
    %2378 = vmatpush.bf16.msra.mxu0 %v2324
    %2379 = vmatpush.bf16.msra.mxu0 %v2318
    %2380 = vmatpush.bf16.msra.mxu0 %v2312
    %2381 = vmatpush.bf16.msra.mxu0 %v2306
    %2382 = vmatpush.bf16.msra.mxu0 %v2300
    %2383 = vmatpush.bf16.msra.mxu0 %v2294
    %2384 = vmatpush.bf16.msra.mxu0 %v2288
    %2385 = vmatpush.bf16.msra.mxu0 %v2282
    %2386 = vmatmul.bf16.gmra.mxu0 %v2088
    %v2387 = vpop.f32.mrf.mxu0
    %v2388 = vadd.f32 0.0, %v2387
    %v2389 = vpop.f32.mrf.mxu0
    %2390 = vdwg.mxu0
    %2391 = vmatpush.bf16.msra.mxu0 %v2325
    %2392 = vmatpush.bf16.msra.mxu0 %v2319
    %2393 = vmatpush.bf16.msra.mxu0 %v2313
    %2394 = vmatpush.bf16.msra.mxu0 %v2307
    %2395 = vmatpush.bf16.msra.mxu0 %v2301
    %2396 = vmatpush.bf16.msra.mxu0 %v2295
    %2397 = vmatpush.bf16.msra.mxu0 %v2289
    %2398 = vmatpush.bf16.msra.mxu0 %v2283
    %2399 = vmatmul.bf16.gmra.mxu0 %v2088
    %v2400 = vpop.f32.mrf.mxu0
    %v2401 = vadd.f32 0.0, %v2400
    %v2402 = vpop.f32.mrf.mxu0
    %2403 = vdwg.mxu0
    %2404 = vmatpush.bf16.msra.mxu0 %v2326
    %2405 = vmatpush.bf16.msra.mxu0 %v2320
    %2406 = vmatpush.bf16.msra.mxu0 %v2314
    %2407 = vmatpush.bf16.msra.mxu0 %v2308
    %2408 = vmatpush.bf16.msra.mxu0 %v2302
    %2409 = vmatpush.bf16.msra.mxu0 %v2296
    %2410 = vmatpush.bf16.msra.mxu0 %v2290
    %2411 = vmatpush.bf16.msra.mxu0 %v2284
    %2412 = vmatmul.bf16.gmra.mxu0 %v2088
    %v2413 = vpop.f32.mrf.mxu0
    %v2414 = vadd.f32 0.0, %v2413
    %v2415 = vpop.f32.mrf.mxu0
    %2416 = vdwg.mxu0
    %2417 = vmatpush.bf16.msra.mxu0 %v2327
    %2418 = vmatpush.bf16.msra.mxu0 %v2321
    %2419 = vmatpush.bf16.msra.mxu0 %v2315
    %2420 = vmatpush.bf16.msra.mxu0 %v2309
    %2421 = vmatpush.bf16.msra.mxu0 %v2303
    %2422 = vmatpush.bf16.msra.mxu0 %v2297
    %2423 = vmatpush.bf16.msra.mxu0 %v2291
    %2424 = vmatpush.bf16.msra.mxu0 %v2285
    %2425 = vmatmul.bf16.gmra.mxu0 %v2088
    %v2426 = vpop.f32.mrf.mxu0
    %v2427 = vadd.f32 0.0, %v2426
    %v2428 = vpop.f32.mrf.mxu0
    %2429 = vdwg.mxu0
    %2430 = vmatpush.bf16.msra.mxu0 %v2328
    %2431 = vmatpush.bf16.msra.mxu0 %v2322
    %2432 = vmatpush.bf16.msra.mxu0 %v2316
    %2433 = vmatpush.bf16.msra.mxu0 %v2310
    %2434 = vmatpush.bf16.msra.mxu0 %v2304
    %2435 = vmatpush.bf16.msra.mxu0 %v2298
    %2436 = vmatpush.bf16.msra.mxu0 %v2292
    %2437 = vmatpush.bf16.msra.mxu0 %v2286
    %2438 = vmatmul.bf16.gmra.mxu0 %v2088
    %v2439 = vpop.f32.mrf.mxu0
    %v2440 = vadd.f32 0.0, %v2439
    %v2441 = vpop.f32.mrf.mxu0
    %2442 = vdwg.mxu0
    %2443 = vmatpush.bf16.msra.mxu0 %v2329
    %2444 = vmatpush.bf16.msra.mxu0 %v2323
    %2445 = vmatpush.bf16.msra.mxu0 %v2317
    %2446 = vmatpush.bf16.msra.mxu0 %v2311
    %2447 = vmatpush.bf16.msra.mxu0 %v2305
    %2448 = vmatpush.bf16.msra.mxu0 %v2299
    %2449 = vmatpush.bf16.msra.mxu0 %v2293
    %2450 = vmatpush.bf16.msra.mxu0 %v2287
    %2451 = vmatmul.bf16.gmra.mxu0 %v2088
    %v2452 = vpop.f32.mrf.mxu0
    %v2453 = vadd.f32 0.0, %v2452
    %v2454 = vpop.f32.mrf.mxu0
    %2455 = vdwg.mxu0
    %v2456 = vadd.f32 %v2017, %v2388
    %v2457 = vadd.f32 %v2030, %v2401
    %v2458 = vadd.f32 %v2043, %v2414
    %v2459 = vadd.f32 %v2056, %v2427
    %v2460 = vadd.f32 %v2069, %v2440
    %v2461 = vadd.f32 %v2082, %v2453
    %v2462 = vmul.f32 %v1258, %v1342
    %v2463 = vadd.f32 %v2462, %v1344
    %v2464 = vmax.f32 %v2463, 0.0
    %v2465 = vpack.c.bf16 %v2464, %v2464
    %s2466 = scalar_lea.vmem [#allocation7], 1152
    %v2467 = vld [vmem:[%s2466] sm:$0xff]
    %v2468 = vld [vmem:[%s2466 + $0x8] sm:$0xff]
    %v2469 = vld [vmem:[%s2466 + $0x10] sm:$0xff]
    %v2470 = vld [vmem:[%s2466 + $0x18] sm:$0xff]
    %v2471 = vld [vmem:[%s2466 + $0x20] sm:$0xff]
    %v2472 = vld [vmem:[%s2466 + $0x28] sm:$0xff]
    %v2473 = vld [vmem:[%s2466 + $0x30] sm:$0xff]
    %v2474 = vld [vmem:[%s2466 + $0x38] sm:$0xff]
    %v2475 = vld [vmem:[%s2466 + $0x40] sm:$0xff]
    %v2476 = vld [vmem:[%s2466 + $0x48] sm:$0xff]
    %v2477 = vld [vmem:[%s2466 + $0x50] sm:$0xff]
    %v2478 = vld [vmem:[%s2466 + $0x58] sm:$0xff]
    %v2479 = vld [vmem:[%s2466 + $0x60] sm:$0xff]
    %v2480 = vld [vmem:[%s2466 + $0x68] sm:$0xff]
    %v2481 = vld [vmem:[%s2466 + $0x70] sm:$0xff]
    %v2482 = vld [vmem:[%s2466 + $0x78] sm:$0xff]
    %v2483 = vld [vmem:[%s2466 + $0x80] sm:$0xff]
    %v2484 = vld [vmem:[%s2466 + $0x88] sm:$0xff]
    %v2485 = vld [vmem:[%s2466 + $0x90] sm:$0xff]
    %v2486 = vld [vmem:[%s2466 + $0x98] sm:$0xff]
    %v2487 = vld [vmem:[%s2466 + $0xa0] sm:$0xff]
    %v2488 = vld [vmem:[%s2466 + $0xa8] sm:$0xff]
    %v2489 = vld [vmem:[%s2466 + $0xb0] sm:$0xff]
    %v2490 = vld [vmem:[%s2466 + $0xb8] sm:$0xff]
    %v2491 = vld [vmem:[%s2466 + $0xc0] sm:$0xff]
    %v2492 = vld [vmem:[%s2466 + $0xc8] sm:$0xff]
    %v2493 = vld [vmem:[%s2466 + $0xd0] sm:$0xff]
    %v2494 = vld [vmem:[%s2466 + $0xd8] sm:$0xff]
    %v2495 = vld [vmem:[%s2466 + $0xe0] sm:$0xff]
    %v2496 = vld [vmem:[%s2466 + $0xe8] sm:$0xff]
    %v2497 = vld [vmem:[%s2466 + $0xf0] sm:$0xff]
    %v2498 = vld [vmem:[%s2466 + $0xf8] sm:$0xff]
    %v2499 = vld [vmem:[%s2466 + $0x100] sm:$0xff]
    %v2500 = vld [vmem:[%s2466 + $0x108] sm:$0xff]
    %v2501 = vld [vmem:[%s2466 + $0x110] sm:$0xff]
    %v2502 = vld [vmem:[%s2466 + $0x118] sm:$0xff]
    %v2503 = vld [vmem:[%s2466 + $0x120] sm:$0xff]
    %v2504 = vld [vmem:[%s2466 + $0x128] sm:$0xff]
    %v2505 = vld [vmem:[%s2466 + $0x130] sm:$0xff]
    %v2506 = vld [vmem:[%s2466 + $0x138] sm:$0xff]
    %v2507 = vld [vmem:[%s2466 + $0x140] sm:$0xff]
    %v2508 = vld [vmem:[%s2466 + $0x148] sm:$0xff]
    %v2509 = vld [vmem:[%s2466 + $0x150] sm:$0xff]
    %v2510 = vld [vmem:[%s2466 + $0x158] sm:$0xff]
    %v2511 = vld [vmem:[%s2466 + $0x160] sm:$0xff]
    %v2512 = vld [vmem:[%s2466 + $0x168] sm:$0xff]
    %v2513 = vld [vmem:[%s2466 + $0x170] sm:$0xff]
    %v2514 = vld [vmem:[%s2466 + $0x178] sm:$0xff]
    %v2563 = vunpack.c.l.b16 %v2467
    %v2564 = vunpack.c.h.b16 %v2467
    %v2565 = vunpack.c.l.b16 %v2468
    %v2566 = vunpack.c.h.b16 %v2468
    %v2567 = vunpack.c.l.b16 %v2469
    %v2568 = vunpack.c.h.b16 %v2469
    %v2569 = vunpack.c.l.b16 %v2470
    %v2570 = vunpack.c.h.b16 %v2470
    %v2571 = vunpack.c.l.b16 %v2471
    %v2572 = vunpack.c.h.b16 %v2471
    %v2573 = vunpack.c.l.b16 %v2472
    %v2574 = vunpack.c.h.b16 %v2472
    %v2575 = vunpack.c.l.b16 %v2473
    %v2576 = vunpack.c.h.b16 %v2473
    %v2577 = vunpack.c.l.b16 %v2474
    %v2578 = vunpack.c.h.b16 %v2474
    %v2579 = vunpack.c.l.b16 %v2475
    %v2580 = vunpack.c.h.b16 %v2475
    %v2581 = vunpack.c.l.b16 %v2476
    %v2582 = vunpack.c.h.b16 %v2476
    %v2583 = vunpack.c.l.b16 %v2477
    %v2584 = vunpack.c.h.b16 %v2477
    %v2585 = vunpack.c.l.b16 %v2478
    %v2586 = vunpack.c.h.b16 %v2478
    %v2587 = vunpack.c.l.b16 %v2479
    %v2588 = vunpack.c.h.b16 %v2479
    %v2589 = vunpack.c.l.b16 %v2480
    %v2590 = vunpack.c.h.b16 %v2480
    %v2591 = vunpack.c.l.b16 %v2481
    %v2592 = vunpack.c.h.b16 %v2481
    %v2593 = vunpack.c.l.b16 %v2482
    %v2594 = vunpack.c.h.b16 %v2482
    %v2595 = vunpack.c.l.b16 %v2483
    %v2596 = vunpack.c.h.b16 %v2483
    %v2597 = vunpack.c.l.b16 %v2484
    %v2598 = vunpack.c.h.b16 %v2484
    %v2599 = vunpack.c.l.b16 %v2485
    %v2600 = vunpack.c.h.b16 %v2485
    %v2601 = vunpack.c.l.b16 %v2486
    %v2602 = vunpack.c.h.b16 %v2486
    %v2603 = vunpack.c.l.b16 %v2487
    %v2604 = vunpack.c.h.b16 %v2487
    %v2605 = vunpack.c.l.b16 %v2488
    %v2606 = vunpack.c.h.b16 %v2488
    %v2607 = vunpack.c.l.b16 %v2489
    %v2608 = vunpack.c.h.b16 %v2489
    %v2609 = vunpack.c.l.b16 %v2490
    %v2610 = vunpack.c.h.b16 %v2490
    %v2611 = vunpack.c.l.b16 %v2491
    %v2612 = vunpack.c.h.b16 %v2491
    %v2613 = vunpack.c.l.b16 %v2492
    %v2614 = vunpack.c.h.b16 %v2492
    %v2615 = vunpack.c.l.b16 %v2493
    %v2616 = vunpack.c.h.b16 %v2493
    %v2617 = vunpack.c.l.b16 %v2494
    %v2618 = vunpack.c.h.b16 %v2494
    %v2619 = vunpack.c.l.b16 %v2495
    %v2620 = vunpack.c.h.b16 %v2495
    %v2621 = vunpack.c.l.b16 %v2496
    %v2622 = vunpack.c.h.b16 %v2496
    %v2623 = vunpack.c.l.b16 %v2497
    %v2624 = vunpack.c.h.b16 %v2497
    %v2625 = vunpack.c.l.b16 %v2498
    %v2626 = vunpack.c.h.b16 %v2498
    %v2627 = vunpack.c.l.b16 %v2499
    %v2628 = vunpack.c.h.b16 %v2499
    %v2629 = vunpack.c.l.b16 %v2500
    %v2630 = vunpack.c.h.b16 %v2500
    %v2631 = vunpack.c.l.b16 %v2501
    %v2632 = vunpack.c.h.b16 %v2501
    %v2633 = vunpack.c.l.b16 %v2502
    %v2634 = vunpack.c.h.b16 %v2502
    %v2635 = vunpack.c.l.b16 %v2503
    %v2636 = vunpack.c.h.b16 %v2503
    %v2637 = vunpack.c.l.b16 %v2504
    %v2638 = vunpack.c.h.b16 %v2504
    %v2639 = vunpack.c.l.b16 %v2505
    %v2640 = vunpack.c.h.b16 %v2505
    %v2641 = vunpack.c.l.b16 %v2506
    %v2642 = vunpack.c.h.b16 %v2506
    %v2643 = vunpack.c.l.b16 %v2507
    %v2644 = vunpack.c.h.b16 %v2507
    %v2645 = vunpack.c.l.b16 %v2508
    %v2646 = vunpack.c.h.b16 %v2508
    %v2647 = vunpack.c.l.b16 %v2509
    %v2648 = vunpack.c.h.b16 %v2509
    %v2649 = vunpack.c.l.b16 %v2510
    %v2650 = vunpack.c.h.b16 %v2510
    %v2651 = vunpack.c.l.b16 %v2511
    %v2652 = vunpack.c.h.b16 %v2511
    %v2653 = vunpack.c.l.b16 %v2512
    %v2654 = vunpack.c.h.b16 %v2512
    %v2655 = vunpack.c.l.b16 %v2513
    %v2656 = vunpack.c.h.b16 %v2513
    %v2657 = vunpack.c.l.b16 %v2514
    %v2658 = vunpack.c.h.b16 %v2514
    %v2659 = vpack.c.b16 %v2569, %v2563
    %v2660 = vpack.c.b16 %v2570, %v2564
    %v2661 = vpack.c.b16 %v2571, %v2565
    %v2662 = vpack.c.b16 %v2572, %v2566
    %v2663 = vpack.c.b16 %v2573, %v2567
    %v2664 = vpack.c.b16 %v2574, %v2568
    %v2665 = vpack.c.b16 %v2581, %v2575
    %v2666 = vpack.c.b16 %v2582, %v2576
    %v2667 = vpack.c.b16 %v2583, %v2577
    %v2668 = vpack.c.b16 %v2584, %v2578
    %v2669 = vpack.c.b16 %v2585, %v2579
    %v2670 = vpack.c.b16 %v2586, %v2580
    %v2671 = vpack.c.b16 %v2593, %v2587
    %v2672 = vpack.c.b16 %v2594, %v2588
    %v2673 = vpack.c.b16 %v2595, %v2589
    %v2674 = vpack.c.b16 %v2596, %v2590
    %v2675 = vpack.c.b16 %v2597, %v2591
    %v2676 = vpack.c.b16 %v2598, %v2592
    %v2677 = vpack.c.b16 %v2605, %v2599
    %v2678 = vpack.c.b16 %v2606, %v2600
    %v2679 = vpack.c.b16 %v2607, %v2601
    %v2680 = vpack.c.b16 %v2608, %v2602
    %v2681 = vpack.c.b16 %v2609, %v2603
    %v2682 = vpack.c.b16 %v2610, %v2604
    %v2683 = vpack.c.b16 %v2617, %v2611
    %v2684 = vpack.c.b16 %v2618, %v2612
    %v2685 = vpack.c.b16 %v2619, %v2613
    %v2686 = vpack.c.b16 %v2620, %v2614
    %v2687 = vpack.c.b16 %v2621, %v2615
    %v2688 = vpack.c.b16 %v2622, %v2616
    %v2689 = vpack.c.b16 %v2629, %v2623
    %v2690 = vpack.c.b16 %v2630, %v2624
    %v2691 = vpack.c.b16 %v2631, %v2625
    %v2692 = vpack.c.b16 %v2632, %v2626
    %v2693 = vpack.c.b16 %v2633, %v2627
    %v2694 = vpack.c.b16 %v2634, %v2628
    %v2695 = vpack.c.b16 %v2641, %v2635
    %v2696 = vpack.c.b16 %v2642, %v2636
    %v2697 = vpack.c.b16 %v2643, %v2637
    %v2698 = vpack.c.b16 %v2644, %v2638
    %v2699 = vpack.c.b16 %v2645, %v2639
    %v2700 = vpack.c.b16 %v2646, %v2640
    %v2701 = vpack.c.b16 %v2653, %v2647
    %v2702 = vpack.c.b16 %v2654, %v2648
    %v2703 = vpack.c.b16 %v2655, %v2649
    %v2704 = vpack.c.b16 %v2656, %v2650
    %v2705 = vpack.c.b16 %v2657, %v2651
    %v2706 = vpack.c.b16 %v2658, %v2652
    %2755 = vmatpush.bf16.msra.mxu0 %v2701
    %2756 = vmatpush.bf16.msra.mxu0 %v2695
    %2757 = vmatpush.bf16.msra.mxu0 %v2689
    %2758 = vmatpush.bf16.msra.mxu0 %v2683
    %2759 = vmatpush.bf16.msra.mxu0 %v2677
    %2760 = vmatpush.bf16.msra.mxu0 %v2671
    %2761 = vmatpush.bf16.msra.mxu0 %v2665
    %2762 = vmatpush.bf16.msra.mxu0 %v2659
    %2763 = vmatmul.bf16.gmra.mxu0 %v2465
    %v2764 = vpop.f32.mrf.mxu0
    %v2765 = vadd.f32 0.0, %v2764
    %v2766 = vpop.f32.mrf.mxu0
    %2767 = vdwg.mxu0
    %2768 = vmatpush.bf16.msra.mxu0 %v2702
    %2769 = vmatpush.bf16.msra.mxu0 %v2696
    %2770 = vmatpush.bf16.msra.mxu0 %v2690
    %2771 = vmatpush.bf16.msra.mxu0 %v2684
    %2772 = vmatpush.bf16.msra.mxu0 %v2678
    %2773 = vmatpush.bf16.msra.mxu0 %v2672
    %2774 = vmatpush.bf16.msra.mxu0 %v2666
    %2775 = vmatpush.bf16.msra.mxu0 %v2660
    %2776 = vmatmul.bf16.gmra.mxu0 %v2465
    %v2777 = vpop.f32.mrf.mxu0
    %v2778 = vadd.f32 0.0, %v2777
    %v2779 = vpop.f32.mrf.mxu0
    %2780 = vdwg.mxu0
    %2781 = vmatpush.bf16.msra.mxu0 %v2703
    %2782 = vmatpush.bf16.msra.mxu0 %v2697
    %2783 = vmatpush.bf16.msra.mxu0 %v2691
    %2784 = vmatpush.bf16.msra.mxu0 %v2685
    %2785 = vmatpush.bf16.msra.mxu0 %v2679
    %2786 = vmatpush.bf16.msra.mxu0 %v2673
    %2787 = vmatpush.bf16.msra.mxu0 %v2667
    %2788 = vmatpush.bf16.msra.mxu0 %v2661
    %2789 = vmatmul.bf16.gmra.mxu0 %v2465
    %v2790 = vpop.f32.mrf.mxu0
    %v2791 = vadd.f32 0.0, %v2790
    %v2792 = vpop.f32.mrf.mxu0
    %2793 = vdwg.mxu0
    %2794 = vmatpush.bf16.msra.mxu0 %v2704
    %2795 = vmatpush.bf16.msra.mxu0 %v2698
    %2796 = vmatpush.bf16.msra.mxu0 %v2692
    %2797 = vmatpush.bf16.msra.mxu0 %v2686
    %2798 = vmatpush.bf16.msra.mxu0 %v2680
    %2799 = vmatpush.bf16.msra.mxu0 %v2674
    %2800 = vmatpush.bf16.msra.mxu0 %v2668
    %2801 = vmatpush.bf16.msra.mxu0 %v2662
    %2802 = vmatmul.bf16.gmra.mxu0 %v2465
    %v2803 = vpop.f32.mrf.mxu0
    %v2804 = vadd.f32 0.0, %v2803
    %v2805 = vpop.f32.mrf.mxu0
    %2806 = vdwg.mxu0
    %2807 = vmatpush.bf16.msra.mxu0 %v2705
    %2808 = vmatpush.bf16.msra.mxu0 %v2699
    %2809 = vmatpush.bf16.msra.mxu0 %v2693
    %2810 = vmatpush.bf16.msra.mxu0 %v2687
    %2811 = vmatpush.bf16.msra.mxu0 %v2681
    %2812 = vmatpush.bf16.msra.mxu0 %v2675
    %2813 = vmatpush.bf16.msra.mxu0 %v2669
    %2814 = vmatpush.bf16.msra.mxu0 %v2663
    %2815 = vmatmul.bf16.gmra.mxu0 %v2465
    %v2816 = vpop.f32.mrf.mxu0
    %v2817 = vadd.f32 0.0, %v2816
    %v2818 = vpop.f32.mrf.mxu0
    %2819 = vdwg.mxu0
    %2820 = vmatpush.bf16.msra.mxu0 %v2706
    %2821 = vmatpush.bf16.msra.mxu0 %v2700
    %2822 = vmatpush.bf16.msra.mxu0 %v2694
    %2823 = vmatpush.bf16.msra.mxu0 %v2688
    %2824 = vmatpush.bf16.msra.mxu0 %v2682
    %2825 = vmatpush.bf16.msra.mxu0 %v2676
    %2826 = vmatpush.bf16.msra.mxu0 %v2670
    %2827 = vmatpush.bf16.msra.mxu0 %v2664
    %2828 = vmatmul.bf16.gmra.mxu0 %v2465
    %v2829 = vpop.f32.mrf.mxu0
    %v2830 = vadd.f32 0.0, %v2829
    %v2831 = vpop.f32.mrf.mxu0
    %2832 = vdwg.mxu0
    %v2833 = vadd.f32 %v2456, %v2765
    %v2834 = vadd.f32 %v2457, %v2778
    %v2835 = vadd.f32 %v2458, %v2791
    %v2836 = vadd.f32 %v2459, %v2804
    %v2837 = vadd.f32 %v2460, %v2817
    %v2838 = vadd.f32 %v2461, %v2830
    %v2839 = vld [vmem:[#allocation8] ss:$2 sm:$0x3f]
    %s2840 = scalar_lea.vmem [#allocation8], 1
    %v2841 = vld [vmem:[%s2840] ss:$2 sm:$0x3f]
    %v2842 = vrot.slane %v2833, 4
    %v2843 = vadd.f32 %v2833, %v2842
    %v2844 = vrot.slane %v2843, 2
    %v2845 = vadd.f32 %v2843, %v2844
    %v2846 = vrot.slane %v2845, 1
    %v2847 = vadd.f32 %v2845, %v2846
    %v2848 = vrot.slane %v2834, 4
    %v2849 = vadd.f32 %v2834, %v2848
    %v2850 = vrot.slane %v2849, 2
    %v2851 = vadd.f32 %v2849, %v2850
    %v2852 = vrot.slane %v2851, 1
    %v2853 = vadd.f32 %v2851, %v2852
    %v2854 = vrot.slane %v2835, 4
    %v2855 = vadd.f32 %v2835, %v2854
    %v2856 = vrot.slane %v2855, 2
    %v2857 = vadd.f32 %v2855, %v2856
    %v2858 = vrot.slane %v2857, 1
    %v2859 = vadd.f32 %v2857, %v2858
    %v2860 = vrot.slane %v2836, 4
    %v2861 = vadd.f32 %v2836, %v2860
    %v2862 = vrot.slane %v2861, 2
    %v2863 = vadd.f32 %v2861, %v2862
    %v2864 = vrot.slane %v2863, 1
    %v2865 = vadd.f32 %v2863, %v2864
    %v2866 = vrot.slane %v2837, 4
    %v2867 = vadd.f32 %v2837, %v2866
    %v2868 = vrot.slane %v2867, 2
    %v2869 = vadd.f32 %v2867, %v2868
    %v2870 = vrot.slane %v2869, 1
    %v2871 = vadd.f32 %v2869, %v2870
    %v2872 = vrot.slane %v2838, 4
    %v2873 = vadd.f32 %v2838, %v2872
    %v2874 = vrot.slane %v2873, 2
    %v2875 = vadd.f32 %v2873, %v2874
    %v2876 = vrot.slane %v2875, 1
    %v2877 = vadd.f32 %v2875, %v2876
    %v2878 = vmul.f32 %v2847, 0.125
    %v2879 = vmul.f32 %v2853, 0.125
    %v2880 = vmul.f32 %v2859, 0.125
    %v2881 = vmul.f32 %v2865, 0.125
    %v2882 = vmul.f32 %v2871, 0.125
    %v2883 = vmul.f32 %v2877, 0.125
    %v2884 = vmul.f32 %v2833, %v2833
    %v2885 = vmul.f32 %v2834, %v2834
    %v2886 = vmul.f32 %v2835, %v2835
    %v2887 = vmul.f32 %v2836, %v2836
    %v2888 = vmul.f32 %v2837, %v2837
    %v2889 = vmul.f32 %v2838, %v2838
    %v2890 = vrot.slane %v2884, 4
    %v2891 = vadd.f32 %v2884, %v2890
    %v2892 = vrot.slane %v2891, 2
    %v2893 = vadd.f32 %v2891, %v2892
    %v2894 = vrot.slane %v2893, 1
    %v2895 = vadd.f32 %v2893, %v2894
    %v2896 = vrot.slane %v2885, 4
    %v2897 = vadd.f32 %v2885, %v2896
    %v2898 = vrot.slane %v2897, 2
    %v2899 = vadd.f32 %v2897, %v2898
    %v2900 = vrot.slane %v2899, 1
    %v2901 = vadd.f32 %v2899, %v2900
    %v2902 = vrot.slane %v2886, 4
    %v2903 = vadd.f32 %v2886, %v2902
    %v2904 = vrot.slane %v2903, 2
    %v2905 = vadd.f32 %v2903, %v2904
    %v2906 = vrot.slane %v2905, 1
    %v2907 = vadd.f32 %v2905, %v2906
    %v2908 = vrot.slane %v2887, 4
    %v2909 = vadd.f32 %v2887, %v2908
    %v2910 = vrot.slane %v2909, 2
    %v2911 = vadd.f32 %v2909, %v2910
    %v2912 = vrot.slane %v2911, 1
    %v2913 = vadd.f32 %v2911, %v2912
    %v2914 = vrot.slane %v2888, 4
    %v2915 = vadd.f32 %v2888, %v2914
    %v2916 = vrot.slane %v2915, 2
    %v2917 = vadd.f32 %v2915, %v2916
    %v2918 = vrot.slane %v2917, 1
    %v2919 = vadd.f32 %v2917, %v2918
    %v2920 = vrot.slane %v2889, 4
    %v2921 = vadd.f32 %v2889, %v2920
    %v2922 = vrot.slane %v2921, 2
    %v2923 = vadd.f32 %v2921, %v2922
    %v2924 = vrot.slane %v2923, 1
    %v2925 = vadd.f32 %v2923, %v2924
    %v2926 = vmul.f32 %v2895, 0.125
    %v2927 = vmul.f32 %v2901, 0.125
    %v2928 = vmul.f32 %v2907, 0.125
    %v2929 = vmul.f32 %v2913, 0.125
    %v2930 = vmul.f32 %v2919, 0.125
    %v2931 = vmul.f32 %v2925, 0.125
    %v2932 = vmul.f32 %v2878, %v2878
    %v2933 = vmul.f32 %v2879, %v2879
    %v2934 = vmul.f32 %v2880, %v2880
    %v2935 = vmul.f32 %v2881, %v2881
    %v2936 = vmul.f32 %v2882, %v2882
    %v2937 = vmul.f32 %v2883, %v2883
    %v2938 = vsub.f32 %v2926, %v2932
    %v2939 = vsub.f32 %v2927, %v2933
    %v2940 = vsub.f32 %v2928, %v2934
    %v2941 = vsub.f32 %v2929, %v2935
    %v2942 = vsub.f32 %v2930, %v2936
    %v2943 = vsub.f32 %v2931, %v2937
    %v2944 = vmax.f32 %v2938, 0.0
    %v2945 = vmax.f32 %v2939, 0.0
    %v2946 = vmax.f32 %v2940, 0.0
    %v2947 = vmax.f32 %v2941, 0.0
    %v2948 = vmax.f32 %v2942, 0.0
    %v2949 = vmax.f32 %v2943, 0.0
    %v2950 = vadd.f32 %v2944, 1e-05
    %v2951 = vadd.f32 %v2945, 1e-05
    %v2952 = vadd.f32 %v2946, 1e-05
    %v2953 = vadd.f32 %v2947, 1e-05
    %v2954 = vadd.f32 %v2948, 1e-05
    %v2955 = vadd.f32 %v2949, 1e-05
    %v2956 = vrsqrt.pop %v2950
    %v2957 = vmul.f32 %v2956, %v2950
    %v2958 = vmul.f32 %v2957, %v2956
    %v2959 = vmul.f32 0.5, %v2958
    %v2960 = vsub.f32 1.5, %v2959
    %v2961 = vmul.f32 %v2956, %v2960
    %vm2962 = vweird.f32 %v2950
    %vm2963 = vweird.f32 %v2956
    %vm2964 = vmor %vm2962, %vm2963
    %v2965 = vsel %vm2964, %v2956, %v2961
    %v2966 = vrsqrt.pop %v2951
    %v2967 = vmul.f32 %v2966, %v2951
    %v2968 = vmul.f32 %v2967, %v2966
    %v2969 = vmul.f32 0.5, %v2968
    %v2970 = vsub.f32 1.5, %v2969
    %v2971 = vmul.f32 %v2966, %v2970
    %vm2972 = vweird.f32 %v2951
    %vm2973 = vweird.f32 %v2966
    %vm2974 = vmor %vm2972, %vm2973
    %v2975 = vsel %vm2974, %v2966, %v2971
    %v2976 = vrsqrt.pop %v2952
    %v2977 = vmul.f32 %v2976, %v2952
    %v2978 = vmul.f32 %v2977, %v2976
    %v2979 = vmul.f32 0.5, %v2978
    %v2980 = vsub.f32 1.5, %v2979
    %v2981 = vmul.f32 %v2976, %v2980
    %vm2982 = vweird.f32 %v2952
    %vm2983 = vweird.f32 %v2976
    %vm2984 = vmor %vm2982, %vm2983
    %v2985 = vsel %vm2984, %v2976, %v2981
    %v2986 = vrsqrt.pop %v2953
    %v2987 = vmul.f32 %v2986, %v2953
    %v2988 = vmul.f32 %v2987, %v2986
    %v2989 = vmul.f32 0.5, %v2988
    %v2990 = vsub.f32 1.5, %v2989
    %v2991 = vmul.f32 %v2986, %v2990
    %vm2992 = vweird.f32 %v2953
    %vm2993 = vweird.f32 %v2986
    %vm2994 = vmor %vm2992, %vm2993
    %v2995 = vsel %vm2994, %v2986, %v2991
    %v2996 = vrsqrt.pop %v2954
    %v2997 = vmul.f32 %v2996, %v2954
    %v2998 = vmul.f32 %v2997, %v2996
    %v2999 = vmul.f32 0.5, %v2998
    %v3000 = vsub.f32 1.5, %v2999
    %v3001 = vmul.f32 %v2996, %v3000
    %vm3002 = vweird.f32 %v2954
    %vm3003 = vweird.f32 %v2996
    %vm3004 = vmor %vm3002, %vm3003
    %v3005 = vsel %vm3004, %v2996, %v3001
    %v3006 = vrsqrt.pop %v2955
    %v3007 = vmul.f32 %v3006, %v2955
    %v3008 = vmul.f32 %v3007, %v3006
    %v3009 = vmul.f32 0.5, %v3008
    %v3010 = vsub.f32 1.5, %v3009
    %v3011 = vmul.f32 %v3006, %v3010
    %vm3012 = vweird.f32 %v2955
    %vm3013 = vweird.f32 %v3006
    %vm3014 = vmor %vm3012, %vm3013
    %v3015 = vsel %vm3014, %v3006, %v3011
    %v3022 = vrot.slane %v2975, 7
    %v3023 = vrot.slane %v2985, 6
    %v3024 = vrot.slane %v2995, 5
    %v3025 = vrot.slane %v3005, 4
    %v3026 = vrot.slane %v3015, 3
    %vm3027 = vcmask 1040384
    %v3028 = vsel %vm3027, %v2965, %v3022
    %vm3029 = vcmask 1041408
    %v3030 = vsel %vm3029, %v3028, %v3023
    %v3031 = vsel %vm1066, %v3024, %v3025
    %vm3032 = vcmask 1044483
    %v3033 = vsel %vm3032, %v3031, %v3026
    %vm3034 = vcmask 1042432
    %v3035 = vsel %vm3034, %v3030, %v3033
    %v3037 = vmul.f32 %v2839, %v3035
    %v3039 = vperm.slane %v3037, 0
    %v3040 = vperm.slane %v3037, 1
    %v3041 = vperm.slane %v3037, 2
    %v3042 = vperm.slane %v3037, 3
    %v3043 = vperm.slane %v3037, 4
    %v3044 = vperm.slane %v3037, 5
    %v3051 = vmul.f32 %v2878, %v3039
    %v3052 = vmul.f32 %v2879, %v3040
    %v3053 = vmul.f32 %v2880, %v3041
    %v3054 = vmul.f32 %v2881, %v3042
    %v3055 = vmul.f32 %v2882, %v3043
    %v3056 = vmul.f32 %v2883, %v3044
    %v3063 = vrot.slane %v3052, 7
    %v3064 = vrot.slane %v3053, 6
    %v3065 = vrot.slane %v3054, 5
    %v3066 = vrot.slane %v3055, 4
    %v3067 = vrot.slane %v3056, 3
    %v3068 = vsel %vm3027, %v3051, %v3063
    %v3069 = vsel %vm3029, %v3068, %v3064
    %v3070 = vsel %vm1066, %v3065, %v3066
    %v3071 = vsel %vm3032, %v3070, %v3067
    %v3072 = vsel %vm3034, %v3069, %v3071
    %v3074 = vsub.f32 %v2841, %v3072
    %v3075 = vmul.f32 %v2833, %v3039
    %v3076 = vmul.f32 %v2834, %v3040
    %v3077 = vmul.f32 %v2835, %v3041
    %v3078 = vmul.f32 %v2836, %v3042
    %v3079 = vmul.f32 %v2837, %v3043
    %v3080 = vmul.f32 %v2838, %v3044
    %v3082 = vperm.slane %v3074, 0
    %v3083 = vperm.slane %v3074, 1
    %v3084 = vperm.slane %v3074, 2
    %v3085 = vperm.slane %v3074, 3
    %v3086 = vperm.slane %v3074, 4
    %v3087 = vperm.slane %v3074, 5
    %v3094 = vadd.f32 %v3075, %v3082
    %v3095 = vadd.f32 %v3076, %v3083
    %v3096 = vadd.f32 %v3077, %v3084
    %v3097 = vadd.f32 %v3078, %v3085
    %v3098 = vadd.f32 %v3079, %v3086
    %v3099 = vadd.f32 %v3080, %v3087
    %v3100 = vmax.f32 %v3094, 0.0
    %v3101 = vmax.f32 %v3095, 0.0
    %v3102 = vmax.f32 %v3096, 0.0
    %v3103 = vmax.f32 %v3097, 0.0
    %v3104 = vmax.f32 %v3098, 0.0
    %v3105 = vmax.f32 %v3099, 0.0
    %v3106 = vpack.c.bf16 %v3100, %v3100
    %v3107 = vpack.c.bf16 %v3101, %v3101
    %v3108 = vpack.c.bf16 %v3102, %v3102
    %v3109 = vpack.c.bf16 %v3103, %v3103
    %v3110 = vpack.c.bf16 %v3104, %v3104
    %v3111 = vpack.c.bf16 %v3105, %v3105
    %v3112 = vld [vmem:[#allocation10] sm:$0xf]
    %v3113 = vld [vmem:[#allocation10 + $0x4] sm:$0xf]
    %v3114 = vld [vmem:[#allocation10 + $0x8] sm:$0xf]
    %v3115 = vld [vmem:[#allocation10 + $0xc] sm:$0xf]
    %v3116 = vld [vmem:[#allocation10 + $0x10] sm:$0xf]
    %v3117 = vld [vmem:[#allocation10 + $0x14] sm:$0xf]
    %v3118 = vld [vmem:[#allocation10 + $0x18] sm:$0xf]
    %v3119 = vld [vmem:[#allocation10 + $0x1c] sm:$0xf]
    %v3120 = vld [vmem:[#allocation10 + $0x20] sm:$0xf]
    %v3121 = vld [vmem:[#allocation10 + $0x24] sm:$0xf]
    %v3122 = vld [vmem:[#allocation10 + $0x28] sm:$0xf]
    %v3123 = vld [vmem:[#allocation10 + $0x2c] sm:$0xf]
    %v3124 = vld [vmem:[#allocation10 + $0x30] sm:$0xf]
    %v3125 = vld [vmem:[#allocation10 + $0x34] sm:$0xf]
    %v3126 = vld [vmem:[#allocation10 + $0x38] sm:$0xf]
    %v3127 = vld [vmem:[#allocation10 + $0x3c] sm:$0xf]
    %v3128 = vld [vmem:[#allocation10 + $0x40] sm:$0xf]
    %v3129 = vld [vmem:[#allocation10 + $0x44] sm:$0xf]
    %v3130 = vld [vmem:[#allocation10 + $0x48] sm:$0xf]
    %v3131 = vld [vmem:[#allocation10 + $0x4c] sm:$0xf]
    %v3132 = vld [vmem:[#allocation10 + $0x50] sm:$0xf]
    %v3133 = vld [vmem:[#allocation10 + $0x54] sm:$0xf]
    %v3134 = vld [vmem:[#allocation10 + $0x58] sm:$0xf]
    %v3135 = vld [vmem:[#allocation10 + $0x5c] sm:$0xf]
    %v3136 = vld [vmem:[#allocation10 + $0x60] sm:$0xf]
    %v3137 = vld [vmem:[#allocation10 + $0x64] sm:$0xf]
    %v3138 = vld [vmem:[#allocation10 + $0x68] sm:$0xf]
    %v3139 = vld [vmem:[#allocation10 + $0x6c] sm:$0xf]
    %v3140 = vld [vmem:[#allocation10 + $0x70] sm:$0xf]
    %v3141 = vld [vmem:[#allocation10 + $0x74] sm:$0xf]
    %v3142 = vld [vmem:[#allocation10 + $0x78] sm:$0xf]
    %v3143 = vld [vmem:[#allocation10 + $0x7c] sm:$0xf]
    %v3144 = vld [vmem:[#allocation10 + $0x80] sm:$0xf]
    %v3145 = vld [vmem:[#allocation10 + $0x84] sm:$0xf]
    %v3146 = vld [vmem:[#allocation10 + $0x88] sm:$0xf]
    %v3147 = vld [vmem:[#allocation10 + $0x8c] sm:$0xf]
    %v3148 = vld [vmem:[#allocation10 + $0x90] sm:$0xf]
    %v3149 = vld [vmem:[#allocation10 + $0x94] sm:$0xf]
    %v3150 = vld [vmem:[#allocation10 + $0x98] sm:$0xf]
    %v3151 = vld [vmem:[#allocation10 + $0x9c] sm:$0xf]
    %v3152 = vld [vmem:[#allocation10 + $0xa0] sm:$0xf]
    %v3153 = vld [vmem:[#allocation10 + $0xa4] sm:$0xf]
    %v3154 = vld [vmem:[#allocation10 + $0xa8] sm:$0xf]
    %v3155 = vld [vmem:[#allocation10 + $0xac] sm:$0xf]
    %v3156 = vld [vmem:[#allocation10 + $0xb0] sm:$0xf]
    %v3157 = vld [vmem:[#allocation10 + $0xb4] sm:$0xf]
    %v3158 = vld [vmem:[#allocation10 + $0xb8] sm:$0xf]
    %v3159 = vld [vmem:[#allocation10 + $0xbc] sm:$0xf]
    %v3160 = vld [vmem:[#allocation10 + $0xc0] sm:$0xf]
    %v3161 = vld [vmem:[#allocation10 + $0xc4] sm:$0xf]
    %v3162 = vld [vmem:[#allocation10 + $0xc8] sm:$0xf]
    %v3163 = vld [vmem:[#allocation10 + $0xcc] sm:$0xf]
    %v3164 = vld [vmem:[#allocation10 + $0xd0] sm:$0xf]
    %v3165 = vld [vmem:[#allocation10 + $0xd4] sm:$0xf]
    %v3166 = vld [vmem:[#allocation10 + $0xd8] sm:$0xf]
    %v3167 = vld [vmem:[#allocation10 + $0xdc] sm:$0xf]
    %v3168 = vld [vmem:[#allocation10 + $0xe0] sm:$0xf]
    %v3169 = vld [vmem:[#allocation10 + $0xe4] sm:$0xf]
    %v3170 = vld [vmem:[#allocation10 + $0xe8] sm:$0xf]
    %v3171 = vld [vmem:[#allocation10 + $0xec] sm:$0xf]
    %v3172 = vld [vmem:[#allocation10 + $0xf0] sm:$0xf]
    %v3173 = vld [vmem:[#allocation10 + $0xf4] sm:$0xf]
    %v3174 = vld [vmem:[#allocation10 + $0xf8] sm:$0xf]
    %v3175 = vld [vmem:[#allocation10 + $0xfc] sm:$0xf]
    %v3176 = vld [vmem:[#allocation10 + $0x100] sm:$0xf]
    %v3177 = vld [vmem:[#allocation10 + $0x104] sm:$0xf]
    %v3178 = vld [vmem:[#allocation10 + $0x108] sm:$0xf]
    %v3179 = vld [vmem:[#allocation10 + $0x10c] sm:$0xf]
    %v3180 = vld [vmem:[#allocation10 + $0x110] sm:$0xf]
    %v3181 = vld [vmem:[#allocation10 + $0x114] sm:$0xf]
    %v3182 = vld [vmem:[#allocation10 + $0x118] sm:$0xf]
    %v3183 = vld [vmem:[#allocation10 + $0x11c] sm:$0xf]
    %v3184 = vld [vmem:[#allocation10 + $0x120] sm:$0xf]
    %v3185 = vld [vmem:[#allocation10 + $0x124] sm:$0xf]
    %v3186 = vld [vmem:[#allocation10 + $0x128] sm:$0xf]
    %v3187 = vld [vmem:[#allocation10 + $0x12c] sm:$0xf]
    %v3188 = vld [vmem:[#allocation10 + $0x130] sm:$0xf]
    %v3189 = vld [vmem:[#allocation10 + $0x134] sm:$0xf]
    %v3190 = vld [vmem:[#allocation10 + $0x138] sm:$0xf]
    %v3191 = vld [vmem:[#allocation10 + $0x13c] sm:$0xf]
    %v3192 = vld [vmem:[#allocation10 + $0x140] sm:$0xf]
    %v3193 = vld [vmem:[#allocation10 + $0x144] sm:$0xf]
    %v3194 = vld [vmem:[#allocation10 + $0x148] sm:$0xf]
    %v3195 = vld [vmem:[#allocation10 + $0x14c] sm:$0xf]
    %v3196 = vld [vmem:[#allocation10 + $0x150] sm:$0xf]
    %v3197 = vld [vmem:[#allocation10 + $0x154] sm:$0xf]
    %v3198 = vld [vmem:[#allocation10 + $0x158] sm:$0xf]
    %v3199 = vld [vmem:[#allocation10 + $0x15c] sm:$0xf]
    %v3200 = vld [vmem:[#allocation10 + $0x160] sm:$0xf]
    %v3201 = vld [vmem:[#allocation10 + $0x164] sm:$0xf]
    %v3202 = vld [vmem:[#allocation10 + $0x168] sm:$0xf]
    %v3203 = vld [vmem:[#allocation10 + $0x16c] sm:$0xf]
    %v3204 = vld [vmem:[#allocation10 + $0x170] sm:$0xf]
    %v3205 = vld [vmem:[#allocation10 + $0x174] sm:$0xf]
    %v3206 = vld [vmem:[#allocation10 + $0x178] sm:$0xf]
    %v3207 = vld [vmem:[#allocation10 + $0x17c] sm:$0xf]
    %v3208 = vld [vmem:[#allocation10 + $0x180] sm:$0x1]
    %v3209 = vunpack.c.l.bf16 %v3208
    %v3210 = vperm.slane %v3209, 0
    %v3307 = vunpack.c.l.b16 %v3112
    %v3308 = vunpack.c.l.b16 %v3113
    %v3309 = vunpack.c.l.b16 %v3114
    %v3310 = vunpack.c.l.b16 %v3115
    %v3311 = vunpack.c.l.b16 %v3116
    %v3312 = vunpack.c.l.b16 %v3117
    %v3313 = vunpack.c.l.b16 %v3118
    %v3314 = vunpack.c.l.b16 %v3119
    %v3315 = vunpack.c.l.b16 %v3120
    %v3316 = vunpack.c.l.b16 %v3121
    %v3317 = vunpack.c.l.b16 %v3122
    %v3318 = vunpack.c.l.b16 %v3123
    %v3319 = vunpack.c.l.b16 %v3124
    %v3320 = vunpack.c.l.b16 %v3125
    %v3321 = vunpack.c.l.b16 %v3126
    %v3322 = vunpack.c.l.b16 %v3127
    %v3323 = vunpack.c.l.b16 %v3128
    %v3324 = vunpack.c.l.b16 %v3129
    %v3325 = vunpack.c.l.b16 %v3130
    %v3326 = vunpack.c.l.b16 %v3131
    %v3327 = vunpack.c.l.b16 %v3132
    %v3328 = vunpack.c.l.b16 %v3133
    %v3329 = vunpack.c.l.b16 %v3134
    %v3330 = vunpack.c.l.b16 %v3135
    %v3331 = vunpack.c.l.b16 %v3136
    %v3332 = vunpack.c.l.b16 %v3137
    %v3333 = vunpack.c.l.b16 %v3138
    %v3334 = vunpack.c.l.b16 %v3139
    %v3335 = vunpack.c.l.b16 %v3140
    %v3336 = vunpack.c.l.b16 %v3141
    %v3337 = vunpack.c.l.b16 %v3142
    %v3338 = vunpack.c.l.b16 %v3143
    %v3339 = vunpack.c.l.b16 %v3144
    %v3340 = vunpack.c.l.b16 %v3145
    %v3341 = vunpack.c.l.b16 %v3146
    %v3342 = vunpack.c.l.b16 %v3147
    %v3343 = vunpack.c.l.b16 %v3148
    %v3344 = vunpack.c.l.b16 %v3149
    %v3345 = vunpack.c.l.b16 %v3150
    %v3346 = vunpack.c.l.b16 %v3151
    %v3347 = vunpack.c.l.b16 %v3152
    %v3348 = vunpack.c.l.b16 %v3153
    %v3349 = vunpack.c.l.b16 %v3154
    %v3350 = vunpack.c.l.b16 %v3155
    %v3351 = vunpack.c.l.b16 %v3156
    %v3352 = vunpack.c.l.b16 %v3157
    %v3353 = vunpack.c.l.b16 %v3158
    %v3354 = vunpack.c.l.b16 %v3159
    %v3355 = vunpack.c.l.b16 %v3160
    %v3356 = vunpack.c.l.b16 %v3161
    %v3357 = vunpack.c.l.b16 %v3162
    %v3358 = vunpack.c.l.b16 %v3163
    %v3359 = vunpack.c.l.b16 %v3164
    %v3360 = vunpack.c.l.b16 %v3165
    %v3361 = vunpack.c.l.b16 %v3166
    %v3362 = vunpack.c.l.b16 %v3167
    %v3363 = vunpack.c.l.b16 %v3168
    %v3364 = vunpack.c.l.b16 %v3169
    %v3365 = vunpack.c.l.b16 %v3170
    %v3366 = vunpack.c.l.b16 %v3171
    %v3367 = vunpack.c.l.b16 %v3172
    %v3368 = vunpack.c.l.b16 %v3173
    %v3369 = vunpack.c.l.b16 %v3174
    %v3370 = vunpack.c.l.b16 %v3175
    %v3371 = vunpack.c.l.b16 %v3176
    %v3372 = vunpack.c.l.b16 %v3177
    %v3373 = vunpack.c.l.b16 %v3178
    %v3374 = vunpack.c.l.b16 %v3179
    %v3375 = vunpack.c.l.b16 %v3180
    %v3376 = vunpack.c.l.b16 %v3181
    %v3377 = vunpack.c.l.b16 %v3182
    %v3378 = vunpack.c.l.b16 %v3183
    %v3379 = vunpack.c.l.b16 %v3184
    %v3380 = vunpack.c.l.b16 %v3185
    %v3381 = vunpack.c.l.b16 %v3186
    %v3382 = vunpack.c.l.b16 %v3187
    %v3383 = vunpack.c.l.b16 %v3188
    %v3384 = vunpack.c.l.b16 %v3189
    %v3385 = vunpack.c.l.b16 %v3190
    %v3386 = vunpack.c.l.b16 %v3191
    %v3387 = vunpack.c.l.b16 %v3192
    %v3388 = vunpack.c.l.b16 %v3193
    %v3389 = vunpack.c.l.b16 %v3194
    %v3390 = vunpack.c.l.b16 %v3195
    %v3391 = vunpack.c.l.b16 %v3196
    %v3392 = vunpack.c.l.b16 %v3197
    %v3393 = vunpack.c.l.b16 %v3198
    %v3394 = vunpack.c.l.b16 %v3199
    %v3395 = vunpack.c.l.b16 %v3200
    %v3396 = vunpack.c.l.b16 %v3201
    %v3397 = vunpack.c.l.b16 %v3202
    %v3398 = vunpack.c.l.b16 %v3203
    %v3399 = vunpack.c.l.b16 %v3204
    %v3400 = vunpack.c.l.b16 %v3205
    %v3401 = vunpack.c.l.b16 %v3206
    %v3402 = vunpack.c.l.b16 %v3207
    %v3403 = vpack.c.b16 %v3308, %v3307
    %v3404 = vpack.c.b16 %v3310, %v3309
    %v3405 = vpack.c.b16 %v3312, %v3311
    %v3406 = vpack.c.b16 %v3314, %v3313
    %v3407 = vpack.c.b16 %v3316, %v3315
    %v3408 = vpack.c.b16 %v3318, %v3317
    %v3409 = vpack.c.b16 %v3320, %v3319
    %v3410 = vpack.c.b16 %v3322, %v3321
    %v3411 = vpack.c.b16 %v3324, %v3323
    %v3412 = vpack.c.b16 %v3326, %v3325
    %v3413 = vpack.c.b16 %v3328, %v3327
    %v3414 = vpack.c.b16 %v3330, %v3329
    %v3415 = vpack.c.b16 %v3332, %v3331
    %v3416 = vpack.c.b16 %v3334, %v3333
    %v3417 = vpack.c.b16 %v3336, %v3335
    %v3418 = vpack.c.b16 %v3338, %v3337
    %v3419 = vpack.c.b16 %v3340, %v3339
    %v3420 = vpack.c.b16 %v3342, %v3341
    %v3421 = vpack.c.b16 %v3344, %v3343
    %v3422 = vpack.c.b16 %v3346, %v3345
    %v3423 = vpack.c.b16 %v3348, %v3347
    %v3424 = vpack.c.b16 %v3350, %v3349
    %v3425 = vpack.c.b16 %v3352, %v3351
    %v3426 = vpack.c.b16 %v3354, %v3353
    %v3427 = vpack.c.b16 %v3356, %v3355
    %v3428 = vpack.c.b16 %v3358, %v3357
    %v3429 = vpack.c.b16 %v3360, %v3359
    %v3430 = vpack.c.b16 %v3362, %v3361
    %v3431 = vpack.c.b16 %v3364, %v3363
    %v3432 = vpack.c.b16 %v3366, %v3365
    %v3433 = vpack.c.b16 %v3368, %v3367
    %v3434 = vpack.c.b16 %v3370, %v3369
    %v3435 = vpack.c.b16 %v3372, %v3371
    %v3436 = vpack.c.b16 %v3374, %v3373
    %v3437 = vpack.c.b16 %v3376, %v3375
    %v3438 = vpack.c.b16 %v3378, %v3377
    %v3439 = vpack.c.b16 %v3380, %v3379
    %v3440 = vpack.c.b16 %v3382, %v3381
    %v3441 = vpack.c.b16 %v3384, %v3383
    %v3442 = vpack.c.b16 %v3386, %v3385
    %v3443 = vpack.c.b16 %v3388, %v3387
    %v3444 = vpack.c.b16 %v3390, %v3389
    %v3445 = vpack.c.b16 %v3392, %v3391
    %v3446 = vpack.c.b16 %v3394, %v3393
    %v3447 = vpack.c.b16 %v3396, %v3395
    %v3448 = vpack.c.b16 %v3398, %v3397
    %v3449 = vpack.c.b16 %v3400, %v3399
    %v3450 = vpack.c.b16 %v3402, %v3401
    %3499 = vmatpush.bf16.msra.mxu0 %v3410
    %3500 = vmatpush.bf16.msra.mxu0 %v3409
    %3501 = vmatpush.bf16.msra.mxu0 %v3408
    %3502 = vmatpush.bf16.msra.mxu0 %v3407
    %3503 = vmatpush.bf16.msra.mxu0 %v3406
    %3504 = vmatpush.bf16.msra.mxu0 %v3405
    %3505 = vmatpush.bf16.msra.mxu0 %v3404
    %3506 = vmatpush.bf16.msra.mxu0 %v3403
    %3507 = vmatmul.bf16.gmra.mxu0 %v3106
    %v3508 = vpop.f32.mrf.mxu0
    %v3509 = vadd.f32 %v3210, %v3508
    %v3510 = vpop.f32.mrf.mxu0
    %3511 = vdwg.mxu0
    %3512 = vmatpush.bf16.msra.mxu0 %v3418
    %3513 = vmatpush.bf16.msra.mxu0 %v3417
    %3514 = vmatpush.bf16.msra.mxu0 %v3416
    %3515 = vmatpush.bf16.msra.mxu0 %v3415
    %3516 = vmatpush.bf16.msra.mxu0 %v3414
    %3517 = vmatpush.bf16.msra.mxu0 %v3413
    %3518 = vmatpush.bf16.msra.mxu0 %v3412
    %3519 = vmatpush.bf16.msra.mxu0 %v3411
    %3520 = vmatmul.bf16.gmra.mxu0 %v3107
    %v3521 = vpop.f32.mrf.mxu0
    %v3522 = vadd.f32 %v3509, %v3521
    %v3523 = vpop.f32.mrf.mxu0
    %3524 = vdwg.mxu0
    %3525 = vmatpush.bf16.msra.mxu0 %v3426
    %3526 = vmatpush.bf16.msra.mxu0 %v3425
    %3527 = vmatpush.bf16.msra.mxu0 %v3424
    %3528 = vmatpush.bf16.msra.mxu0 %v3423
    %3529 = vmatpush.bf16.msra.mxu0 %v3422
    %3530 = vmatpush.bf16.msra.mxu0 %v3421
    %3531 = vmatpush.bf16.msra.mxu0 %v3420
    %3532 = vmatpush.bf16.msra.mxu0 %v3419
    %3533 = vmatmul.bf16.gmra.mxu0 %v3108
    %v3534 = vpop.f32.mrf.mxu0
    %v3535 = vadd.f32 %v3522, %v3534
    %v3536 = vpop.f32.mrf.mxu0
    %3537 = vdwg.mxu0
    %3538 = vmatpush.bf16.msra.mxu0 %v3434
    %3539 = vmatpush.bf16.msra.mxu0 %v3433
    %3540 = vmatpush.bf16.msra.mxu0 %v3432
    %3541 = vmatpush.bf16.msra.mxu0 %v3431
    %3542 = vmatpush.bf16.msra.mxu0 %v3430
    %3543 = vmatpush.bf16.msra.mxu0 %v3429
    %3544 = vmatpush.bf16.msra.mxu0 %v3428
    %3545 = vmatpush.bf16.msra.mxu0 %v3427
    %3546 = vmatmul.bf16.gmra.mxu0 %v3109
    %v3547 = vpop.f32.mrf.mxu0
    %v3548 = vadd.f32 %v3535, %v3547
    %v3549 = vpop.f32.mrf.mxu0
    %3550 = vdwg.mxu0
    %3551 = vmatpush.bf16.msra.mxu0 %v3442
    %3552 = vmatpush.bf16.msra.mxu0 %v3441
    %3553 = vmatpush.bf16.msra.mxu0 %v3440
    %3554 = vmatpush.bf16.msra.mxu0 %v3439
    %3555 = vmatpush.bf16.msra.mxu0 %v3438
    %3556 = vmatpush.bf16.msra.mxu0 %v3437
    %3557 = vmatpush.bf16.msra.mxu0 %v3436
    %3558 = vmatpush.bf16.msra.mxu0 %v3435
    %3559 = vmatmul.bf16.gmra.mxu0 %v3110
    %v3560 = vpop.f32.mrf.mxu0
    %v3561 = vadd.f32 %v3548, %v3560
    %v3562 = vpop.f32.mrf.mxu0
    %3563 = vdwg.mxu0
    %3564 = vmatpush.bf16.msra.mxu0 %v3450
    %3565 = vmatpush.bf16.msra.mxu0 %v3449
    %3566 = vmatpush.bf16.msra.mxu0 %v3448
    %3567 = vmatpush.bf16.msra.mxu0 %v3447
    %3568 = vmatpush.bf16.msra.mxu0 %v3446
    %3569 = vmatpush.bf16.msra.mxu0 %v3445
    %3570 = vmatpush.bf16.msra.mxu0 %v3444
    %3571 = vmatpush.bf16.msra.mxu0 %v3443
    %3572 = vmatmul.bf16.gmra.mxu0 %v3111
    %v3573 = vpop.f32.mrf.mxu0
    %v3574 = vadd.f32 %v3561, %v3573
    %v3575 = vpop.f32.mrf.mxu0
    %3576 = vdwg.mxu0
    %3577 = vst [vmem:[#allocation11] sm:$0xff] %v3574
    // Predicated region
    $region46: #{_forward_impl.2} parent=1 // pred_check
      _
    $region47: #{_forward_impl.2} parent=1 // pred_check_branch
      %3579 = sbr.rel (0) target = $region49
    $region48: #{_forward_impl.2} parent=1 // pred_region
      %3581 = vsyncadd [#allocation4], 0
      %s3583 = sshll.u32 [#allocation11], 4
      %s3584 = int_to_ptr.vmem [resolvable:$true] %s3583
      %s3585 = sshll.u32 %s6, 4
      %s3586 = int_to_ptr.hbm [resolvable:$true] %s3585
      %3588 = dma.vmem_to_hbm [thread:$0]  %s3584, 128, %s3586, [#allocation4]
    $region49: #{_forward_impl.2} parent=1 // pred_fallthru
      _
    // Predicated region
    $region50: #{_forward_impl.2} parent=1 // pred_check
      _
    $region51: #{_forward_impl.2} parent=1 // pred_check_branch
      %3590 = sbr.rel (0) target = $region53
    $region52: #{_forward_impl.2} parent=1 // pred_region
      %3592 = dma.done [#allocation4], 128
    $region53: #{_forward_impl.2} parent=1 // pred_fallthru
      _
    %3593 = vsyncpa [#allocation3], 1
    %3594 = vsyncpa [#allocation6], 1
    %3595 = vsyncpa [#allocation9], 1
    %3596 = vsyncpa [#allocation4], 1

</llo_original>
